<compile_context>
chip_gen: v7x
topology: tpu7x:2x2x1
jax: 0.10.0
libtpu: 0.0.40
codegen_flags: <defaults>
</compile_context>

<pallas_src>
import functools

import jax
import jax.numpy as jnp
from jax.experimental import pallas as pl
from jax.experimental.pallas import tpu as pltpu

EPS = 1e-5
LANE = 128
MIB = 1024 * 1024


# ---------------------------------------------------------------------------
# Helpers
# ---------------------------------------------------------------------------
def _round_up(x, m):
    return (x + m - 1) // m * m


def _fold_bn(gamma, beta, mean, var):
    scale = gamma / jnp.sqrt(var + EPS)
    bias = beta - mean * scale
    return scale, bias


def _pad2(a, rows, cols):
    r, c = a.shape
    return jnp.pad(a, ((0, rows - r), (0, cols - c)))


def _vmem_capacity_bytes():
    """Per-core VMEM capacity; conservative (v7x-sized) fallback on failure."""
    try:
        return int(pltpu.get_tpu_info().vmem_capacity_bytes)
    except Exception:
        return 64 * MIB


def _pick_chunk(cp_p, cout_p):
    """M-chunk so the f32 accumulators stay in vregs (multiple of 128, <=512)."""
    ch = (128 * 1024) // (4 * max(cp_p, cout_p))
    ch = (ch // 128) * 128
    return max(128, min(512, ch))


def _pick_row_tile(H, W, N, cin_p, cp_p, cout_p, cbytes, obytes, chunk, budget):
    """Largest row tile whose per-step VMEM footprint fits the budget.

    Ceil-div grid (ragged bottom tile handled by the validity mask), keeps
    >=2 grid steps when N == 1 (v7x megacore occupancy), and bounds the number
    of unrolled M-chunks to keep compile time sane.  Fails loudly if nothing
    fits (instead of silently degrading / overflowing the VMEM limit).
    """
    Wp = W + 2
    # Weights/biases have constant index maps but are still double-buffered by
    # the default pipeline.  TODO(synk): pipeline_mode=pl.Buffered(1) on the
    # weight specs would halve this term once single-buffering is exercised.
    wbytes = 2 * ((cin_p * cp_p + 9 * cp_p * cp_p + cp_p * cout_p) * cbytes
                  + (2 * cp_p + cout_p) * 4)

    def footprint(th):
        mh = (th + 2) * Wp
        mo = th * Wp
        f = 2 * mh * cin_p * cbytes                    # haloed x tile (2 bufs)
        f += 2 * mh * 4                                # validity mask (2 bufs)
        f += 2 * mo * cout_p * obytes                  # output tile (2 bufs)
        f += _round_up(mh + 2, 8) * cp_p * cbytes      # y1 scratch (1 buf)
        f += wbytes                                    # resident weights/biases
        f += 4 * chunk * max(cp_p, cout_p) * 4         # live chunk values/spill
        f += 2 * MIB                                   # compiler headroom
        return f

    min_tiles = 1 if N >= 2 else min(2, H)
    max_chunks = 64
    best = None
    for th in range(1, H + 1):
        n_tiles = -(-H // th)
        if n_tiles < min_tiles:
            continue
        if -(-(th * Wp) // chunk) > max_chunks:
            continue
        if footprint(th) <= budget:
            best = th if best is None else max(best, th)
    if best is None:
        raise ValueError(
            "fused Bottleneck row tile does not fit the VMEM budget: "
            f"footprint(th=1)={footprint(1)} B > budget={budget} B")
    return best, -(-H // best)


# ---------------------------------------------------------------------------
# Fused kernel
# ---------------------------------------------------------------------------
def bottleneck_kernel(x_ref, m_ref, w1_ref, b1_ref, w2_ref, b2_ref,
                      w3_ref, b3_ref, o_ref, y1_ref, *, wp, chunk, apply_relu):
    """One (batch, row-tile) step of the fused Bottleneck.

    x_ref : (1, (th+2)*wp, Cin_p)  haloed input tile, flattened (row, col)
    m_ref : (1, (th+2)*wp, 1)      1.0 inside the image, 0.0 on all padding
    w1_ref: (Cin_p, Cp_p)          conv1 weight, bn1 scale folded in
    w2_ref: (9, Cp_p, Cp_p)        conv2 3x3 taps (k = dy*3+dx), bn2 folded in
    w3_ref: (Cp_p, Cout_p)         conv3 weight, bn3 scale folded in
    b*_ref: (1, C) f32             folded BN biases
    o_ref : (1, th*wp, Cout_p)     output tile (padded-width geometry)
    y1_ref: (>= (th+2)*wp+2, Cp_p) VMEM scratch: stage-1 output, flat padded
    """
    mh = x_ref.shape[1]          # (th+2)*wp rows incl. row/col halo
    mo = o_ref.shape[1]          # th*wp output rows
    cp = w1_ref.shape[1]

    w1 = w1_ref[...]
    b1 = b1_ref[...]

    # ---- stage 1: 1x1 conv (+ folded bn1) + ReLU over the whole haloed tile,
    # chunked along rows so the f32 intermediates stay in vregs.  The validity
    # mask zeroes the conv2 padding ring (and the relu(b1) artefact on it).
    for m0 in range(0, mh, chunk):
        ch = min(chunk, mh - m0)
        y = jnp.dot(x_ref[0, pl.ds(m0, ch), :], w1,
                    preferred_element_type=jnp.float32)
        y = jnp.maximum(y + b1, 0.0) * m_ref[0, pl.ds(m0, ch), :]
        y1_ref[pl.ds(m0, ch), :] = y.astype(y1_ref.dtype)
    # Zero the tiny over-read tail (only feeds over-computed columns that the
    # wrapper drops, but keep it defined).
    tail = y1_ref.shape[0] - mh
    y1_ref[pl.ds(mh, tail), :] = jnp.zeros((tail, cp), y1_ref.dtype)

    w3 = w3_ref[...]
    b2 = b2_ref[...]
    b3 = b3_ref[...]

    # ---- stages 2+3 fused: 3x3 conv (+bn2) + ReLU, 1x1 conv (+bn3),
    # residual add (+ReLU), chunked over output rows.  Each tap is a
    # contiguous pl.ds slice of the flat y1 scratch; the f32 accumulator stays
    # live across the 9 consecutive dots (MRB-friendly on v7x) and is stored
    # exactly once per chunk, directly into the output.
    for m0 in range(0, mo, chunk):
        ch = min(chunk, mo - m0)
        acc = jnp.dot(y1_ref[pl.ds(m0, ch), :], w2_ref[0],
                      preferred_element_type=jnp.float32)
        for k in range(1, 9):
            dy, dx = divmod(k, 3)
            acc = acc + jnp.dot(y1_ref[pl.ds(m0 + dy * wp + dx, ch), :],
                                w2_ref[k], preferred_element_type=jnp.float32)
        y2 = jnp.maximum(acc + b2, 0.0)
        y3 = jnp.dot(y2.astype(w3.dtype), w3, preferred_element_type=jnp.float32)
        y3 = y3 + b3 + x_ref[0, pl.ds(m0 + wp + 1, ch), :].astype(jnp.float32)
        if apply_relu:
            y3 = jnp.maximum(y3, 0.0)
        o_ref[0, pl.ds(m0, ch), :] = y3.astype(o_ref.dtype)


# ---------------------------------------------------------------------------
# Wrapper
# ---------------------------------------------------------------------------
def bottleneck_forward(x_nchw, params, no_relu=False, fake_relu=False,
                       compute_dtype=None, out_dtype=jnp.float32):
    # bf16 MXU path by default (f32 accumulation + f32 bias/ReLU epilogue):
    # halves HBM read traffic / VMEM footprint on every generation.  Pass
    # compute_dtype=float32 for a bit-strict path.
    cdtype = jnp.dtype(jnp.bfloat16 if compute_dtype is None else compute_dtype)
    odtype = jnp.dtype(out_dtype)

    # NCHW (PyTorch) -> NHWC (lane-dense channels).
    # TODO(synk): in a full network, keep activations NHWC + channel-padded
    # between consecutive blocks so this pad/transpose/slice happens once per
    # network stage rather than once per block.
    x = jnp.transpose(x_nchw, (0, 2, 3, 1)).astype(jnp.float32)
    N, H, W, Cin = x.shape
    w1, w2, w3 = params["w1"], params["w2"], params["w3"]
    Cp = w1.shape[1]                  # planes
    Cout = w3.shape[1]                # planes * expansion
    if Cin != Cout:
        raise ValueError(
            "fused Bottleneck kernel assumes downsample is None "
            "(inplanes == planes * expansion, stride == 1)")
    # TODO(synk): downsample / stride>1 branch not implemented (module is used
    # here with downsample=None, stride=1).

    s1, b1 = _fold_bn(*params["bn1"])
    s2, b2 = _fold_bn(*params["bn2"])
    s3, b3 = _fold_bn(*params["bn3"])
    w1s = w1 * s1[None, :]
    w2s = (w2 * s2[None, None, None, :]).reshape(9, Cp, Cp)
    w3s = w3 * s3[None, :]

    Cin_p = _round_up(Cin, LANE)
    Cp_p = _round_up(Cp, LANE)
    Cout_p = _round_up(Cout, LANE)
    Wp = W + 2                        # conv2 halo columns

    # Generation-aware VMEM budgeting.
    chunk = _pick_chunk(Cp_p, Cout_p)
    cap = _vmem_capacity_bytes()
    vmem_limit = max(32 * MIB, min(cap - 16 * MIB, 100 * MIB))
    budget = int(0.8 * vmem_limit)
    th, n_tiles = _pick_row_tile(H, W, N, Cin_p, Cp_p, Cout_p,
                                 cdtype.itemsize, odtype.itemsize, chunk, budget)
    Hp = th * n_tiles
    Mh = (th + 2) * Wp
    Mo = th * Wp
    y1_rows = _round_up(Mh + 2, 8)    # +2: over-read by the wrap-around taps

    # Expanded haloed tiles: every grid step gets ONE contiguous (Mh, Cin_p)
    # block (one DMA, one stage-1 matmul pass); the 2 halo rows per tile are
    # duplicated once here on the host side.
    xp = jnp.pad(x, ((0, 0), (1, Hp - H + 1), (1, Wp - W - 1), (0, Cin_p - Cin)))
    win = jnp.arange(n_tiles)[:, None] * th + jnp.arange(th + 2)[None, :]
    xe = xp[:, win].reshape(N * n_tiles, Mh, Cin_p).astype(cdtype)

    # Validity mask in the padded geometry: zero on the conv2 padding ring,
    # on the relu(b1) artefact of the zero-padded border, and on any ragged
    # bottom rows introduced by the ceil-div grid.
    rows = (jnp.arange(n_tiles)[:, None, None] * th
            + jnp.arange(th + 2)[None, :, None] - 1)
    cols = jnp.arange(Wp)[None, None, :] - 1
    mask = ((rows >= 0) & (rows < H) & (cols >= 0) & (cols < W))
    mask = mask.astype(jnp.float32).reshape(n_tiles, Mh, 1)

    w1_p = _pad2(w1s, Cin_p, Cp_p).astype(cdtype)
    w2_p = jnp.pad(w2s, ((0, 0), (0, Cp_p - Cp), (0, Cp_p - Cp))).astype(cdtype)
    w3_p = _pad2(w3s, Cp_p, Cout_p).astype(cdtype)
    b1_p = jnp.pad(b1, (0, Cp_p - Cp)).reshape(1, Cp_p).astype(jnp.float32)
    b2_p = jnp.pad(b2, (0, Cp_p - Cp)).reshape(1, Cp_p).astype(jnp.float32)
    b3_p = jnp.pad(b3, (0, Cout_p - Cout)).reshape(1, Cout_p).astype(jnp.float32)

    # fake_relu's forward is identical to ReLU (only the backward differs).
    apply_relu = fake_relu or (not no_relu)
    # TODO(synk): FakeReLU straight-through gradient (custom VJP) not wired up;
    # only the forward pass is implemented here.

    imap_tile = lambda n, i: (n * n_tiles + i, 0, 0)
    imap_mask = lambda n, i: (i, 0, 0)
    const2 = lambda n, i: (0, 0)
    const3 = lambda n, i: (0, 0, 0)

    grid_spec = pltpu.PrefetchScalarGridSpec(
        num_scalar_prefetch=0,
        grid=(N, n_tiles),
        in_specs=[
            pl.BlockSpec((1, Mh, Cin_p), imap_tile),   # haloed x tile
            pl.BlockSpec((1, Mh, 1), imap_mask),       # validity mask
            pl.BlockSpec((Cin_p, Cp_p), const2),       # w1 (VMEM-resident)
            pl.BlockSpec((1, Cp_p), const2),           # b1
            pl.BlockSpec((9, Cp_p, Cp_p), const3),     # w2 (VMEM-resident)
            pl.BlockSpec((1, Cp_p), const2),           # b2
            pl.BlockSpec((Cp_p, Cout_p), const2),      # w3 (VMEM-resident)
            pl.BlockSpec((1, Cout_p), const2),         # b3
        ],
        out_specs=pl.BlockSpec((1, Mo, Cout_p), imap_tile),
        scratch_shapes=[pltpu.VMEM((y1_rows, Cp_p), cdtype)],
    )

    out_flat = pl.pallas_call(
        functools.partial(bottleneck_kernel, wp=Wp, chunk=chunk,
                          apply_relu=apply_relu),
        out_shape=jax.ShapeDtypeStruct((N * n_tiles, Mo, Cout_p), odtype),
        grid_spec=grid_spec,
        compiler_params=pltpu.CompilerParams(
            dimension_semantics=("parallel", "parallel"),
            vmem_limit_bytes=int(vmem_limit)),
    )(xe, mask, w1_p, b1_p, w2_p, b2_p, w3_p, b3_p)

    out = out_flat.reshape(N, Hp, Wp, Cout_p)[:, :H, :W, :Cout]
    return jnp.transpose(out, (0, 3, 1, 2))   # back to NCHW like PyTorch


# ---------------------------------------------------------------------------
# Pure-JAX reference (for correctness check)
# ---------------------------------------------------------------------------
def bottleneck_reference(x_nchw, params):
    x = jnp.transpose(x_nchw, (0, 2, 3, 1)).astype(jnp.float32)

    def bn(y, stats):
        g, b, m, v = stats
        return (y - m) / jnp.sqrt(v + EPS) * g + b

    y = jnp.einsum("nhwc,co->nhwo", x, params["w1"])
    y = jax.nn.relu(bn(y, params["bn1"]))
    y = jax.lax.conv_general_dilated(
        y, params["w2"], window_strides=(1, 1), padding="SAME",
        dimension_numbers=("NHWC", "HWIO", "NHWC"))
    y = jax.nn.relu(bn(y, params["bn2"]))
    y = jnp.einsum("nhwc,co->nhwo", y, params["w3"])
    y = bn(y, params["bn3"]) + x
    y = jax.nn.relu(y)
    return jnp.transpose(y, (0, 3, 1, 2))


# ---------------------------------------------------------------------------
def make_params(key, inplanes, planes):
    expansion = 4
    ks = jax.random.split(key, 6)

    def bn_stats(k, c):
        k1, k2, k3, k4 = jax.random.split(k, 4)
        gamma = jax.random.uniform(k1, (c,), jnp.float32, 0.5, 1.5)
        beta = 0.1 * jax.random.normal(k2, (c,), jnp.float32)
        mean = 0.1 * jax.random.normal(k3, (c,), jnp.float32)
        var = jax.random.uniform(k4, (c,), jnp.float32, 0.5, 1.5)
        return (gamma, beta, mean, var)

    return {
        # conv weights stored channels-last: (Cin, Cout) and (kh, kw, Cin, Cout)
        "w1": 0.1 * jax.random.normal(ks[0], (inplanes, planes), jnp.float32),
        "w2": 0.1 * jax.random.normal(ks[1], (3, 3, planes, planes), jnp.float32),
        "w3": 0.1 * jax.random.normal(ks[2], (planes, planes * expansion),
                                      jnp.float32),
        "bn1": bn_stats(ks[3], planes),
        "bn2": bn_stats(ks[4], planes),
        "bn3": bn_stats(ks[5], planes * expansion),
    }


if __name__ == "__main__":
    key = jax.random.PRNGKey(0)
    k_x, k_p = jax.random.split(key)

    N, inplanes, H, W = 2, 16, 16, 16   # inplanes == planes * expansion
    planes = 4

    x = jax.random.normal(k_x, (N, inplanes, H, W), jnp.float32)  # NCHW
    params = make_params(k_p, inplanes, planes)

    ref = jax.block_until_ready(bottleneck_reference(x, params))

    # f32 compute path (strict check)
    out = jax.block_until_ready(
        bottleneck_forward(x, params, compute_dtype=jnp.float32))
    assert out.shape == (N, planes * 4, H, W)
    assert jnp.allclose(out, ref, rtol=1e-4, atol=1e-4), (
        float(jnp.max(jnp.abs(out - ref))))

    # no_relu path: relu(no_relu output) must match the relu'd output
    out_nr = jax.block_until_ready(
        bottleneck_forward(x, params, no_relu=True, compute_dtype=jnp.float32))
    assert jnp.allclose(jnp.maximum(out_nr, 0.0), out, rtol=1e-5, atol=1e-5)

    # default path: bf16 MXU compute (f32 accumulation) — loose tolerance
    out_bf16 = jax.block_until_ready(bottleneck_forward(x, params))
    assert jnp.allclose(out_bf16, ref, rtol=1e-1, atol=1e-1), (
        float(jnp.max(jnp.abs(out_bf16 - ref))))

    print("KERNEL_OK")
</pallas_src>

<mosaic_0001>
module attributes {stable_mosaic.version = 11 : i64} {
  func.func @bottleneck_kernel(%arg0: i32, %arg1: i32, %arg2: memref<1x324x128xf32, #tpu.memory_space<vmem>>, %arg3: memref<1x324x1xf32, #tpu.memory_space<vmem>>, %arg4: memref<128x128xf32, #tpu.memory_space<vmem>>, %arg5: memref<1x128xf32, #tpu.memory_space<vmem>>, %arg6: memref<9x128x128xf32, #tpu.memory_space<vmem>>, %arg7: memref<1x128xf32, #tpu.memory_space<vmem>>, %arg8: memref<128x128xf32, #tpu.memory_space<vmem>>, %arg9: memref<1x128xf32, #tpu.memory_space<vmem>>, %arg10: memref<1x288x128xf32, #tpu.memory_space<vmem>>, %arg11: memref<328x128xf32, #tpu.memory_space<vmem>>) attributes {dimension_semantics = [#tpu.dimension_semantics<parallel>, #tpu.dimension_semantics<parallel>], iteration_bounds = array<i64: 2, 1>, scalar_prefetch = 0 : i64, scratch_operands = 1 : i64, tpu.core_type = #tpu.core_type<tc>, window_params = [{transform_indices = @transform_0, window_bounds = array<i64: 1, 324, 128>}, {transform_indices = @transform_1, window_bounds = array<i64: 1, 324, 1>}, {pipeline_mode = #tpu.pipeline_mode<synchronous>, transform_indices = @transform_2, window_bounds = array<i64: 128, 128>}, {pipeline_mode = #tpu.pipeline_mode<synchronous>, transform_indices = @transform_3, window_bounds = array<i64: 1, 128>}, {pipeline_mode = #tpu.pipeline_mode<synchronous>, transform_indices = @transform_4, window_bounds = array<i64: 9, 128, 128>}, {pipeline_mode = #tpu.pipeline_mode<synchronous>, transform_indices = @transform_5, window_bounds = array<i64: 1, 128>}, {pipeline_mode = #tpu.pipeline_mode<synchronous>, transform_indices = @transform_6, window_bounds = array<i64: 128, 128>}, {pipeline_mode = #tpu.pipeline_mode<synchronous>, transform_indices = @transform_7, window_bounds = array<i64: 1, 128>}, {transform_indices = @transform_8, window_bounds = array<i64: 1, 288, 128>}]} {
    %c0 = arith.constant 0 : index
    %c0_0 = arith.constant 0 : index
    %0 = vector.load %arg4[%c0, %c0_0] : memref<128x128xf32, #tpu.memory_space<vmem>>, vector<128x128xf32>
    %c0_1 = arith.constant 0 : index
    %c0_2 = arith.constant 0 : index
    %1 = vector.load %arg5[%c0_1, %c0_2] : memref<1x128xf32, #tpu.memory_space<vmem>>, vector<1x128xf32>
    %c0_3 = arith.constant 0 : index
    %c0_4 = arith.constant 0 : index
    %c0_5 = arith.constant 0 : index
    %2 = vector.load %arg2[%c0_3, %c0_4, %c0_5] : memref<1x324x128xf32, #tpu.memory_space<vmem>>, vector<1x256x128xf32>
    %3 = vector.shape_cast %2 : vector<1x256x128xf32> to vector<256x128xf32>
    %cst = arith.constant dense<0.000000e+00> : vector<256x128xf32>
    %4 = tpu.matmul %3, %0, %cst {dimension_numbers = #tpu.dot_dimension_numbers<[1], [0], [0], [1], [0, 0, 1, 1], [], []>} : vector<256x128xf32>, vector<128x128xf32>, vector<256x128xf32> -> vector<256x128xf32>
    %5 = vector.broadcast %1 : vector<1x128xf32> to vector<256x128xf32>
    %6 = arith.addf %4, %5 : vector<256x128xf32>
    %cst_6 = arith.constant 0.000000e+00 : f32
    %7 = vector.broadcast %cst_6 : f32 to vector<256x128xf32>
    %8 = arith.maximumf %6, %7 : vector<256x128xf32>
    %c0_7 = arith.constant 0 : index
    %c0_8 = arith.constant 0 : index
    %c0_9 = arith.constant 0 : index
    %9 = vector.load %arg3[%c0_7, %c0_8, %c0_9] : memref<1x324x1xf32, #tpu.memory_space<vmem>>, vector<1x256x1xf32>
    %10 = vector.shape_cast %9 : vector<1x256x1xf32> to vector<256x1xf32>
    %11 = vector.broadcast %10 : vector<256x1xf32> to vector<256x128xf32>
    %12 = arith.mulf %8, %11 : vector<256x128xf32>
    %c0_10 = arith.constant 0 : index
    %c0_11 = arith.constant 0 : index
    %13 = vector.load %arg11[%c0_10, %c0_11] : memref<328x128xf32, #tpu.memory_space<vmem>>, vector<256x128xf32>
    tpu.vector_store %arg11[%c0_10, %c0_11], %12 {strides = array<i32>} : memref<328x128xf32, #tpu.memory_space<vmem>>, vector<256x128xf32>,
    %c0_12 = arith.constant 0 : index
    %c256 = arith.constant 256 : index
    %c0_13 = arith.constant 0 : index
    %14 = vector.load %arg2[%c0_12, %c256, %c0_13] : memref<1x324x128xf32, #tpu.memory_space<vmem>>, vector<1x68x128xf32>
    %15 = vector.shape_cast %14 : vector<1x68x128xf32> to vector<68x128xf32>
    %cst_14 = arith.constant dense<0.000000e+00> : vector<68x128xf32>
    %16 = tpu.matmul %15, %0, %cst_14 {dimension_numbers = #tpu.dot_dimension_numbers<[1], [0], [0], [1], [0, 0, 1, 1], [], []>} : vector<68x128xf32>, vector<128x128xf32>, vector<68x128xf32> -> vector<68x128xf32>
    %17 = vector.broadcast %1 : vector<1x128xf32> to vector<68x128xf32>
    %18 = arith.addf %16, %17 : vector<68x128xf32>
    %cst_15 = arith.constant 0.000000e+00 : f32
    %19 = vector.broadcast %cst_15 : f32 to vector<68x128xf32>
    %20 = arith.maximumf %18, %19 : vector<68x128xf32>
    %c0_16 = arith.constant 0 : index
    %c256_17 = arith.constant 256 : index
    %c0_18 = arith.constant 0 : index
    %21 = vector.load %arg3[%c0_16, %c256_17, %c0_18] : memref<1x324x1xf32, #tpu.memory_space<vmem>>, vector<1x68x1xf32>
    %22 = vector.shape_cast %21 : vector<1x68x1xf32> to vector<68x1xf32>
    %23 = vector.broadcast %22 : vector<68x1xf32> to vector<68x128xf32>
    %24 = arith.mulf %20, %23 : vector<68x128xf32>
    %c256_19 = arith.constant 256 : index
    %c0_20 = arith.constant 0 : index
    %25 = vector.load %arg11[%c256_19, %c0_20] : memref<328x128xf32, #tpu.memory_space<vmem>>, vector<68x128xf32>
    tpu.vector_store %arg11[%c256_19, %c0_20], %24 {strides = array<i32>} : memref<328x128xf32, #tpu.memory_space<vmem>>, vector<68x128xf32>,
    %cst_21 = arith.constant 0.000000e+00 : f32
    %26 = vector.broadcast %cst_21 : f32 to vector<4x128xf32>
    %c324 = arith.constant 324 : index
    %c0_22 = arith.constant 0 : index
    %27 = vector.load %arg11[%c324, %c0_22] : memref<328x128xf32, #tpu.memory_space<vmem>>, vector<4x128xf32>
    tpu.vector_store %arg11[%c324, %c0_22], %26 {strides = array<i32>} : memref<328x128xf32, #tpu.memory_space<vmem>>, vector<4x128xf32>,
    %c0_23 = arith.constant 0 : index
    %c0_24 = arith.constant 0 : index
    %28 = vector.load %arg8[%c0_23, %c0_24] : memref<128x128xf32, #tpu.memory_space<vmem>>, vector<128x128xf32>
    %c0_25 = arith.constant 0 : index
    %c0_26 = arith.constant 0 : index
    %29 = vector.load %arg7[%c0_25, %c0_26] : memref<1x128xf32, #tpu.memory_space<vmem>>, vector<1x128xf32>
    %c0_27 = arith.constant 0 : index
    %c0_28 = arith.constant 0 : index
    %30 = vector.load %arg9[%c0_27, %c0_28] : memref<1x128xf32, #tpu.memory_space<vmem>>, vector<1x128xf32>
    %c0_29 = arith.constant 0 : index
    %c0_30 = arith.constant 0 : index
    %31 = vector.load %arg11[%c0_29, %c0_30] : memref<328x128xf32, #tpu.memory_space<vmem>>, vector<256x128xf32>
    %c0_31 = arith.constant 0 : index
    %c0_32 = arith.constant 0 : index
    %c0_33 = arith.constant 0 : index
    %32 = vector.load %arg6[%c0_31, %c0_32, %c0_33] : memref<9x128x128xf32, #tpu.memory_space<vmem>>, vector<1x128x128xf32>
    %33 = vector.shape_cast %32 : vector<1x128x128xf32> to vector<128x128xf32>
    %cst_34 = arith.constant dense<0.000000e+00> : vector<256x128xf32>
    %34 = tpu.matmul %31, %33, %cst_34 {dimension_numbers = #tpu.dot_dimension_numbers<[1], [0], [0], [1], [0, 0, 1, 1], [], []>} : vector<256x128xf32>, vector<128x128xf32>, vector<256x128xf32> -> vector<256x128xf32>
    %c1 = arith.constant 1 : index
    %c0_35 = arith.constant 0 : index
    %35 = vector.load %arg11[%c1, %c0_35] : memref<328x128xf32, #tpu.memory_space<vmem>>, vector<256x128xf32>
    %c1_36 = arith.constant 1 : index
    %c0_37 = arith.constant 0 : index
    %c0_38 = arith.constant 0 : index
    %36 = vector.load %arg6[%c1_36, %c0_37, %c0_38] : memref<9x128x128xf32, #tpu.memory_space<vmem>>, vector<1x128x128xf32>
    %37 = vector.shape_cast %36 : vector<1x128x128xf32> to vector<128x128xf32>
    %cst_39 = arith.constant dense<0.000000e+00> : vector<256x128xf32>
    %38 = tpu.matmul %35, %37, %cst_39 {dimension_numbers = #tpu.dot_dimension_numbers<[1], [0], [0], [1], [0, 0, 1, 1], [], []>} : vector<256x128xf32>, vector<128x128xf32>, vector<256x128xf32> -> vector<256x128xf32>
    %39 = arith.addf %34, %38 : vector<256x128xf32>
    %c2 = arith.constant 2 : index
    %c0_40 = arith.constant 0 : index
    %40 = vector.load %arg11[%c2, %c0_40] : memref<328x128xf32, #tpu.memory_space<vmem>>, vector<256x128xf32>
    %c2_41 = arith.constant 2 : index
    %c0_42 = arith.constant 0 : index
    %c0_43 = arith.constant 0 : index
    %41 = vector.load %arg6[%c2_41, %c0_42, %c0_43] : memref<9x128x128xf32, #tpu.memory_space<vmem>>, vector<1x128x128xf32>
    %42 = vector.shape_cast %41 : vector<1x128x128xf32> to vector<128x128xf32>
    %cst_44 = arith.constant dense<0.000000e+00> : vector<256x128xf32>
    %43 = tpu.matmul %40, %42, %cst_44 {dimension_numbers = #tpu.dot_dimension_numbers<[1], [0], [0], [1], [0, 0, 1, 1], [], []>} : vector<256x128xf32>, vector<128x128xf32>, vector<256x128xf32> -> vector<256x128xf32>
    %44 = arith.addf %39, %43 : vector<256x128xf32>
    %c18 = arith.constant 18 : index
    %c0_45 = arith.constant 0 : index
    %45 = vector.load %arg11[%c18, %c0_45] : memref<328x128xf32, #tpu.memory_space<vmem>>, vector<256x128xf32>
    %c3 = arith.constant 3 : index
    %c0_46 = arith.constant 0 : index
    %c0_47 = arith.constant 0 : index
    %46 = vector.load %arg6[%c3, %c0_46, %c0_47] : memref<9x128x128xf32, #tpu.memory_space<vmem>>, vector<1x128x128xf32>
    %47 = vector.shape_cast %46 : vector<1x128x128xf32> to vector<128x128xf32>
    %cst_48 = arith.constant dense<0.000000e+00> : vector<256x128xf32>
    %48 = tpu.matmul %45, %47, %cst_48 {dimension_numbers = #tpu.dot_dimension_numbers<[1], [0], [0], [1], [0, 0, 1, 1], [], []>} : vector<256x128xf32>, vector<128x128xf32>, vector<256x128xf32> -> vector<256x128xf32>
    %49 = arith.addf %44, %48 : vector<256x128xf32>
    %c19 = arith.constant 19 : index
    %c0_49 = arith.constant 0 : index
    %50 = vector.load %arg11[%c19, %c0_49] : memref<328x128xf32, #tpu.memory_space<vmem>>, vector<256x128xf32>
    %c4 = arith.constant 4 : index
    %c0_50 = arith.constant 0 : index
    %c0_51 = arith.constant 0 : index
    %51 = vector.load %arg6[%c4, %c0_50, %c0_51] : memref<9x128x128xf32, #tpu.memory_space<vmem>>, vector<1x128x128xf32>
    %52 = vector.shape_cast %51 : vector<1x128x128xf32> to vector<128x128xf32>
    %cst_52 = arith.constant dense<0.000000e+00> : vector<256x128xf32>
    %53 = tpu.matmul %50, %52, %cst_52 {dimension_numbers = #tpu.dot_dimension_numbers<[1], [0], [0], [1], [0, 0, 1, 1], [], []>} : vector<256x128xf32>, vector<128x128xf32>, vector<256x128xf32> -> vector<256x128xf32>
    %54 = arith.addf %49, %53 : vector<256x128xf32>
    %c20 = arith.constant 20 : index
    %c0_53 = arith.constant 0 : index
    %55 = vector.load %arg11[%c20, %c0_53] : memref<328x128xf32, #tpu.memory_space<vmem>>, vector<256x128xf32>
    %c5 = arith.constant 5 : index
    %c0_54 = arith.constant 0 : index
    %c0_55 = arith.constant 0 : index
    %56 = vector.load %arg6[%c5, %c0_54, %c0_55] : memref<9x128x128xf32, #tpu.memory_space<vmem>>, vector<1x128x128xf32>
    %57 = vector.shape_cast %56 : vector<1x128x128xf32> to vector<128x128xf32>
    %cst_56 = arith.constant dense<0.000000e+00> : vector<256x128xf32>
    %58 = tpu.matmul %55, %57, %cst_56 {dimension_numbers = #tpu.dot_dimension_numbers<[1], [0], [0], [1], [0, 0, 1, 1], [], []>} : vector<256x128xf32>, vector<128x128xf32>, vector<256x128xf32> -> vector<256x128xf32>
    %59 = arith.addf %54, %58 : vector<256x128xf32>
    %c36 = arith.constant 36 : index
    %c0_57 = arith.constant 0 : index
    %60 = vector.load %arg11[%c36, %c0_57] : memref<328x128xf32, #tpu.memory_space<vmem>>, vector<256x128xf32>
    %c6 = arith.constant 6 : index
    %c0_58 = arith.constant 0 : index
    %c0_59 = arith.constant 0 : index
    %61 = vector.load %arg6[%c6, %c0_58, %c0_59] : memref<9x128x128xf32, #tpu.memory_space<vmem>>, vector<1x128x128xf32>
    %62 = vector.shape_cast %61 : vector<1x128x128xf32> to vector<128x128xf32>
    %cst_60 = arith.constant dense<0.000000e+00> : vector<256x128xf32>
    %63 = tpu.matmul %60, %62, %cst_60 {dimension_numbers = #tpu.dot_dimension_numbers<[1], [0], [0], [1], [0, 0, 1, 1], [], []>} : vector<256x128xf32>, vector<128x128xf32>, vector<256x128xf32> -> vector<256x128xf32>
    %64 = arith.addf %59, %63 : vector<256x128xf32>
    %c37 = arith.constant 37 : index
    %c0_61 = arith.constant 0 : index
    %65 = vector.load %arg11[%c37, %c0_61] : memref<328x128xf32, #tpu.memory_space<vmem>>, vector<256x128xf32>
    %c7 = arith.constant 7 : index
    %c0_62 = arith.constant 0 : index
    %c0_63 = arith.constant 0 : index
    %66 = vector.load %arg6[%c7, %c0_62, %c0_63] : memref<9x128x128xf32, #tpu.memory_space<vmem>>, vector<1x128x128xf32>
    %67 = vector.shape_cast %66 : vector<1x128x128xf32> to vector<128x128xf32>
    %cst_64 = arith.constant dense<0.000000e+00> : vector<256x128xf32>
    %68 = tpu.matmul %65, %67, %cst_64 {dimension_numbers = #tpu.dot_dimension_numbers<[1], [0], [0], [1], [0, 0, 1, 1], [], []>} : vector<256x128xf32>, vector<128x128xf32>, vector<256x128xf32> -> vector<256x128xf32>
    %69 = arith.addf %64, %68 : vector<256x128xf32>
    %c38 = arith.constant 38 : index
    %c0_65 = arith.constant 0 : index
    %70 = vector.load %arg11[%c38, %c0_65] : memref<328x128xf32, #tpu.memory_space<vmem>>, vector<256x128xf32>
    %c8 = arith.constant 8 : index
    %c0_66 = arith.constant 0 : index
    %c0_67 = arith.constant 0 : index
    %71 = vector.load %arg6[%c8, %c0_66, %c0_67] : memref<9x128x128xf32, #tpu.memory_space<vmem>>, vector<1x128x128xf32>
    %72 = vector.shape_cast %71 : vector<1x128x128xf32> to vector<128x128xf32>
    %cst_68 = arith.constant dense<0.000000e+00> : vector<256x128xf32>
    %73 = tpu.matmul %70, %72, %cst_68 {dimension_numbers = #tpu.dot_dimension_numbers<[1], [0], [0], [1], [0, 0, 1, 1], [], []>} : vector<256x128xf32>, vector<128x128xf32>, vector<256x128xf32> -> vector<256x128xf32>
    %74 = arith.addf %69, %73 : vector<256x128xf32>
    %75 = vector.broadcast %29 : vector<1x128xf32> to vector<256x128xf32>
    %76 = arith.addf %74, %75 : vector<256x128xf32>
    %cst_69 = arith.constant 0.000000e+00 : f32
    %77 = vector.broadcast %cst_69 : f32 to vector<256x128xf32>
    %78 = arith.maximumf %76, %77 : vector<256x128xf32>
    %cst_70 = arith.constant dense<0.000000e+00> : vector<256x128xf32>
    %79 = tpu.matmul %78, %28, %cst_70 {dimension_numbers = #tpu.dot_dimension_numbers<[1], [0], [0], [1], [0, 0, 1, 1], [], []>} : vector<256x128xf32>, vector<128x128xf32>, vector<256x128xf32> -> vector<256x128xf32>
    %80 = vector.broadcast %30 : vector<1x128xf32> to vector<256x128xf32>
    %81 = arith.addf %79, %80 : vector<256x128xf32>
    %c0_71 = arith.constant 0 : index
    %c19_72 = arith.constant 19 : index
    %c0_73 = arith.constant 0 : index
    %82 = vector.load %arg2[%c0_71, %c19_72, %c0_73] : memref<1x324x128xf32, #tpu.memory_space<vmem>>, vector<1x256x128xf32>
    %83 = vector.shape_cast %82 : vector<1x256x128xf32> to vector<256x128xf32>
    %84 = arith.addf %81, %83 : vector<256x128xf32>
    %cst_74 = arith.constant 0.000000e+00 : f32
    %85 = vector.broadcast %cst_74 : f32 to vector<256x128xf32>
    %86 = arith.maximumf %84, %85 : vector<256x128xf32>
    %c0_75 = arith.constant 0 : index
    %c0_76 = arith.constant 0 : index
    %c0_77 = arith.constant 0 : index
    %87 = vector.load %arg10[%c0_75, %c0_76, %c0_77] : memref<1x288x128xf32, #tpu.memory_space<vmem>>, vector<1x256x128xf32>
    %88 = vector.shape_cast %87 : vector<1x256x128xf32> to vector<256x128xf32>
    %89 = vector.shape_cast %86 : vector<256x128xf32> to vector<1x256x128xf32>
    tpu.vector_store %arg10[%c0_75, %c0_76, %c0_77], %89 {strides = array<i32>} : memref<1x288x128xf32, #tpu.memory_space<vmem>>, vector<1x256x128xf32>,
    %c256_78 = arith.constant 256 : index
    %c0_79 = arith.constant 0 : index
    %90 = vector.load %arg11[%c256_78, %c0_79] : memref<328x128xf32, #tpu.memory_space<vmem>>, vector<32x128xf32>
    %c0_80 = arith.constant 0 : index
    %c0_81 = arith.constant 0 : index
    %c0_82 = arith.constant 0 : index
    %91 = vector.load %arg6[%c0_80, %c0_81, %c0_82] : memref<9x128x128xf32, #tpu.memory_space<vmem>>, vector<1x128x128xf32>
    %92 = vector.shape_cast %91 : vector<1x128x128xf32> to vector<128x128xf32>
    %cst_83 = arith.constant dense<0.000000e+00> : vector<32x128xf32>
    %93 = tpu.matmul %90, %92, %cst_83 {dimension_numbers = #tpu.dot_dimension_numbers<[1], [0], [0], [1], [0, 0, 1, 1], [], []>} : vector<32x128xf32>, vector<128x128xf32>, vector<32x128xf32> -> vector<32x128xf32>
    %c257 = arith.constant 257 : index
    %c0_84 = arith.constant 0 : index
    %94 = vector.load %arg11[%c257, %c0_84] : memref<328x128xf32, #tpu.memory_space<vmem>>, vector<32x128xf32>
    %c1_85 = arith.constant 1 : index
    %c0_86 = arith.constant 0 : index
    %c0_87 = arith.constant 0 : index
    %95 = vector.load %arg6[%c1_85, %c0_86, %c0_87] : memref<9x128x128xf32, #tpu.memory_space<vmem>>, vector<1x128x128xf32>
    %96 = vector.shape_cast %95 : vector<1x128x128xf32> to vector<128x128xf32>
    %cst_88 = arith.constant dense<0.000000e+00> : vector<32x128xf32>
    %97 = tpu.matmul %94, %96, %cst_88 {dimension_numbers = #tpu.dot_dimension_numbers<[1], [0], [0], [1], [0, 0, 1, 1], [], []>} : vector<32x128xf32>, vector<128x128xf32>, vector<32x128xf32> -> vector<32x128xf32>
    %98 = arith.addf %93, %97 : vector<32x128xf32>
    %c258 = arith.constant 258 : index
    %c0_89 = arith.constant 0 : index
    %99 = vector.load %arg11[%c258, %c0_89] : memref<328x128xf32, #tpu.memory_space<vmem>>, vector<32x128xf32>
    %c2_90 = arith.constant 2 : index
    %c0_91 = arith.constant 0 : index
    %c0_92 = arith.constant 0 : index
    %100 = vector.load %arg6[%c2_90, %c0_91, %c0_92] : memref<9x128x128xf32, #tpu.memory_space<vmem>>, vector<1x128x128xf32>
    %101 = vector.shape_cast %100 : vector<1x128x128xf32> to vector<128x128xf32>
    %cst_93 = arith.constant dense<0.000000e+00> : vector<32x128xf32>
    %102 = tpu.matmul %99, %101, %cst_93 {dimension_numbers = #tpu.dot_dimension_numbers<[1], [0], [0], [1], [0, 0, 1, 1], [], []>} : vector<32x128xf32>, vector<128x128xf32>, vector<32x128xf32> -> vector<32x128xf32>
    %103 = arith.addf %98, %102 : vector<32x128xf32>
    %c274 = arith.constant 274 : index
    %c0_94 = arith.constant 0 : index
    %104 = vector.load %arg11[%c274, %c0_94] : memref<328x128xf32, #tpu.memory_space<vmem>>, vector<32x128xf32>
    %c3_95 = arith.constant 3 : index
    %c0_96 = arith.constant 0 : index
    %c0_97 = arith.constant 0 : index
    %105 = vector.load %arg6[%c3_95, %c0_96, %c0_97] : memref<9x128x128xf32, #tpu.memory_space<vmem>>, vector<1x128x128xf32>
    %106 = vector.shape_cast %105 : vector<1x128x128xf32> to vector<128x128xf32>
    %cst_98 = arith.constant dense<0.000000e+00> : vector<32x128xf32>
    %107 = tpu.matmul %104, %106, %cst_98 {dimension_numbers = #tpu.dot_dimension_numbers<[1], [0], [0], [1], [0, 0, 1, 1], [], []>} : vector<32x128xf32>, vector<128x128xf32>, vector<32x128xf32> -> vector<32x128xf32>
    %108 = arith.addf %103, %107 : vector<32x128xf32>
    %c275 = arith.constant 275 : index
    %c0_99 = arith.constant 0 : index
    %109 = vector.load %arg11[%c275, %c0_99] : memref<328x128xf32, #tpu.memory_space<vmem>>, vector<32x128xf32>
    %c4_100 = arith.constant 4 : index
    %c0_101 = arith.constant 0 : index
    %c0_102 = arith.constant 0 : index
    %110 = vector.load %arg6[%c4_100, %c0_101, %c0_102] : memref<9x128x128xf32, #tpu.memory_space<vmem>>, vector<1x128x128xf32>
    %111 = vector.shape_cast %110 : vector<1x128x128xf32> to vector<128x128xf32>
    %cst_103 = arith.constant dense<0.000000e+00> : vector<32x128xf32>
    %112 = tpu.matmul %109, %111, %cst_103 {dimension_numbers = #tpu.dot_dimension_numbers<[1], [0], [0], [1], [0, 0, 1, 1], [], []>} : vector<32x128xf32>, vector<128x128xf32>, vector<32x128xf32> -> vector<32x128xf32>
    %113 = arith.addf %108, %112 : vector<32x128xf32>
    %c276 = arith.constant 276 : index
    %c0_104 = arith.constant 0 : index
    %114 = vector.load %arg11[%c276, %c0_104] : memref<328x128xf32, #tpu.memory_space<vmem>>, vector<32x128xf32>
    %c5_105 = arith.constant 5 : index
    %c0_106 = arith.constant 0 : index
    %c0_107 = arith.constant 0 : index
    %115 = vector.load %arg6[%c5_105, %c0_106, %c0_107] : memref<9x128x128xf32, #tpu.memory_space<vmem>>, vector<1x128x128xf32>
    %116 = vector.shape_cast %115 : vector<1x128x128xf32> to vector<128x128xf32>
    %cst_108 = arith.constant dense<0.000000e+00> : vector<32x128xf32>
    %117 = tpu.matmul %114, %116, %cst_108 {dimension_numbers = #tpu.dot_dimension_numbers<[1], [0], [0], [1], [0, 0, 1, 1], [], []>} : vector<32x128xf32>, vector<128x128xf32>, vector<32x128xf32> -> vector<32x128xf32>
    %118 = arith.addf %113, %117 : vector<32x128xf32>
    %c292 = arith.constant 292 : index
    %c0_109 = arith.constant 0 : index
    %119 = vector.load %arg11[%c292, %c0_109] : memref<328x128xf32, #tpu.memory_space<vmem>>, vector<32x128xf32>
    %c6_110 = arith.constant 6 : index
    %c0_111 = arith.constant 0 : index
    %c0_112 = arith.constant 0 : index
    %120 = vector.load %arg6[%c6_110, %c0_111, %c0_112] : memref<9x128x128xf32, #tpu.memory_space<vmem>>, vector<1x128x128xf32>
    %121 = vector.shape_cast %120 : vector<1x128x128xf32> to vector<128x128xf32>
    %cst_113 = arith.constant dense<0.000000e+00> : vector<32x128xf32>
    %122 = tpu.matmul %119, %121, %cst_113 {dimension_numbers = #tpu.dot_dimension_numbers<[1], [0], [0], [1], [0, 0, 1, 1], [], []>} : vector<32x128xf32>, vector<128x128xf32>, vector<32x128xf32> -> vector<32x128xf32>
    %123 = arith.addf %118, %122 : vector<32x128xf32>
    %c293 = arith.constant 293 : index
    %c0_114 = arith.constant 0 : index
    %124 = vector.load %arg11[%c293, %c0_114] : memref<328x128xf32, #tpu.memory_space<vmem>>, vector<32x128xf32>
    %c7_115 = arith.constant 7 : index
    %c0_116 = arith.constant 0 : index
    %c0_117 = arith.constant 0 : index
    %125 = vector.load %arg6[%c7_115, %c0_116, %c0_117] : memref<9x128x128xf32, #tpu.memory_space<vmem>>, vector<1x128x128xf32>
    %126 = vector.shape_cast %125 : vector<1x128x128xf32> to vector<128x128xf32>
    %cst_118 = arith.constant dense<0.000000e+00> : vector<32x128xf32>
    %127 = tpu.matmul %124, %126, %cst_118 {dimension_numbers = #tpu.dot_dimension_numbers<[1], [0], [0], [1], [0, 0, 1, 1], [], []>} : vector<32x128xf32>, vector<128x128xf32>, vector<32x128xf32> -> vector<32x128xf32>
    %128 = arith.addf %123, %127 : vector<32x128xf32>
    %c294 = arith.constant 294 : index
    %c0_119 = arith.constant 0 : index
    %129 = vector.load %arg11[%c294, %c0_119] : memref<328x128xf32, #tpu.memory_space<vmem>>, vector<32x128xf32>
    %c8_120 = arith.constant 8 : index
    %c0_121 = arith.constant 0 : index
    %c0_122 = arith.constant 0 : index
    %130 = vector.load %arg6[%c8_120, %c0_121, %c0_122] : memref<9x128x128xf32, #tpu.memory_space<vmem>>, vector<1x128x128xf32>
    %131 = vector.shape_cast %130 : vector<1x128x128xf32> to vector<128x128xf32>
    %cst_123 = arith.constant dense<0.000000e+00> : vector<32x128xf32>
    %132 = tpu.matmul %129, %131, %cst_123 {dimension_numbers = #tpu.dot_dimension_numbers<[1], [0], [0], [1], [0, 0, 1, 1], [], []>} : vector<32x128xf32>, vector<128x128xf32>, vector<32x128xf32> -> vector<32x128xf32>
    %133 = arith.addf %128, %132 : vector<32x128xf32>
    %134 = vector.broadcast %29 : vector<1x128xf32> to vector<32x128xf32>
    %135 = arith.addf %133, %134 : vector<32x128xf32>
    %cst_124 = arith.constant 0.000000e+00 : f32
    %136 = vector.broadcast %cst_124 : f32 to vector<32x128xf32>
    %137 = arith.maximumf %135, %136 : vector<32x128xf32>
    %cst_125 = arith.constant dense<0.000000e+00> : vector<32x128xf32>
    %138 = tpu.matmul %137, %28, %cst_125 {dimension_numbers = #tpu.dot_dimension_numbers<[1], [0], [0], [1], [0, 0, 1, 1], [], []>} : vector<32x128xf32>, vector<128x128xf32>, vector<32x128xf32> -> vector<32x128xf32>
    %139 = vector.broadcast %30 : vector<1x128xf32> to vector<32x128xf32>
    %140 = arith.addf %138, %139 : vector<32x128xf32>
    %c0_126 = arith.constant 0 : index
    %c275_127 = arith.constant 275 : index
    %c0_128 = arith.constant 0 : index
    %141 = vector.load %arg2[%c0_126, %c275_127, %c0_128] : memref<1x324x128xf32, #tpu.memory_space<vmem>>, vector<1x32x128xf32>
    %142 = vector.shape_cast %141 : vector<1x32x128xf32> to vector<32x128xf32>
    %143 = arith.addf %140, %142 : vector<32x128xf32>
    %cst_129 = arith.constant 0.000000e+00 : f32
    %144 = vector.broadcast %cst_129 : f32 to vector<32x128xf32>
    %145 = arith.maximumf %143, %144 : vector<32x128xf32>
    %c0_130 = arith.constant 0 : index
    %c256_131 = arith.constant 256 : index
    %c0_132 = arith.constant 0 : index
    %146 = vector.load %arg10[%c0_130, %c256_131, %c0_132] : memref<1x288x128xf32, #tpu.memory_space<vmem>>, vector<1x32x128xf32>
    %147 = vector.shape_cast %146 : vector<1x32x128xf32> to vector<32x128xf32>
    %148 = vector.shape_cast %145 : vector<32x128xf32> to vector<1x32x128xf32>
    tpu.vector_store %arg10[%c0_130, %c256_131, %c0_132], %148 {strides = array<i32>} : memref<1x288x128xf32, #tpu.memory_space<vmem>>, vector<1x32x128xf32>,
    return
  }
  func.func @transform_0(%arg0: i32, %arg1: i32) -> (i32, i32, i32) {
    %c1_i32 = arith.constant 1 : i32
    %0 = arith.muli %arg0, %c1_i32 : i32
    %1 = arith.addi %0, %arg1 : i32
    %c0_i32 = arith.constant 0 : i32
    %c0_i32_0 = arith.constant 0 : i32
    %c0_i32_1 = arith.constant 0 : i32
    return %1, %c0_i32, %c0_i32_0 : i32, i32, i32
  }
  func.func @transform_1(%arg0: i32, %arg1: i32) -> (i32, i32, i32) {
    %c0_i32 = arith.constant 0 : i32
    %c0_i32_0 = arith.constant 0 : i32
    %c0_i32_1 = arith.constant 0 : i32
    return %arg1, %c0_i32, %c0_i32_0 : i32, i32, i32
  }
  func.func @transform_2(%arg0: i32, %arg1: i32) -> (i32, i32) {
    %c0_i32 = arith.constant 0 : i32
    %c0_i32_0 = arith.constant 0 : i32
    %c0_i32_1 = arith.constant 0 : i32
    return %c0_i32, %c0_i32_0 : i32, i32
  }
  func.func @transform_3(%arg0: i32, %arg1: i32) -> (i32, i32) {
    %c0_i32 = arith.constant 0 : i32
    %c0_i32_0 = arith.constant 0 : i32
    %c0_i32_1 = arith.constant 0 : i32
    return %c0_i32, %c0_i32_0 : i32, i32
  }
  func.func @transform_4(%arg0: i32, %arg1: i32) -> (i32, i32, i32) {
    %c0_i32 = arith.constant 0 : i32
    %c0_i32_0 = arith.constant 0 : i32
    %c0_i32_1 = arith.constant 0 : i32
    %c0_i32_2 = arith.constant 0 : i32
    return %c0_i32, %c0_i32_0, %c0_i32_1 : i32, i32, i32
  }
  func.func @transform_5(%arg0: i32, %arg1: i32) -> (i32, i32) {
    %c0_i32 = arith.constant 0 : i32
    %c0_i32_0 = arith.constant 0 : i32
    %c0_i32_1 = arith.constant 0 : i32
    return %c0_i32, %c0_i32_0 : i32, i32
  }
  func.func @transform_6(%arg0: i32, %arg1: i32) -> (i32, i32) {
    %c0_i32 = arith.constant 0 : i32
    %c0_i32_0 = arith.constant 0 : i32
    %c0_i32_1 = arith.constant 0 : i32
    return %c0_i32, %c0_i32_0 : i32, i32
  }
  func.func @transform_7(%arg0: i32, %arg1: i32) -> (i32, i32) {
    %c0_i32 = arith.constant 0 : i32
    %c0_i32_0 = arith.constant 0 : i32
    %c0_i32_1 = arith.constant 0 : i32
    return %c0_i32, %c0_i32_0 : i32, i32
  }
  func.func @transform_8(%arg0: i32, %arg1: i32) -> (i32, i32, i32) {
    %c1_i32 = arith.constant 1 : i32
    %0 = arith.muli %arg0, %c1_i32 : i32
    %1 = arith.addi %0, %arg1 : i32
    %c0_i32 = arith.constant 0 : i32
    %c0_i32_0 = arith.constant 0 : i32
    %c0_i32_1 = arith.constant 0 : i32
    return %1, %c0_i32, %c0_i32_0 : i32, i32, i32
  }
}

</mosaic_0001>

<llo_original>
// kernel: tpu_custom_call.1
$region0: #{tpu_custom_call.1}
  #allocation0 [shape = 'u32[]', space=smem, size = 0x4, offset = 0x4, fixed_abs, tag = 'smem constant byte address 0x4 - core index']
  #allocation1 [shape = 'u32[144,128]{1,0:T(1,128)}', space=vmem, size = 0x12000, scoped, tag = 'internal scratch']
  #allocation2 [shape = 'f32[328,128]{1,0:T(8,128)}', space=vmem, size = 0x29000, scoped, tag = 'scratch operand']
  %s0 = inlined_call_operand.vmem [shape: f32[2,324,128], index: 0, kind: input, shape index: {}]
  %s1 = inlined_call_operand.vmem [shape: f32[1,324,1], index: 1, kind: input, shape index: {}]
  %s2 = inlined_call_operand.vmem [shape: f32[128,128], index: 2, kind: input, shape index: {}]
  %s3 = inlined_call_operand.vmem [shape: f32[1,128], index: 3, kind: input, shape index: {}]
  %s4 = inlined_call_operand.vmem [shape: f32[9,128,128], index: 4, kind: input, shape index: {}]
  %s5 = inlined_call_operand.vmem [shape: f32[1,128], index: 5, kind: input, shape index: {}]
  %s6 = inlined_call_operand.vmem [shape: f32[128,128], index: 6, kind: input, shape index: {}]
  %s7 = inlined_call_operand.vmem [shape: f32[1,128], index: 7, kind: input, shape index: {}]
  %s8 = inlined_call_operand.hbm [shape: f32[2,288,128], index: 8, kind: output, shape index: {}]
  %s9 = sld [smem:[#allocation0]]
  $region65: #{tpu_custom_call.1} parent=0
    _
  %s11 = ssub.s32 1, %s9
  %s12 = scalar_select 0, %s11, %s9
  $region1: #{tpu_custom_call.1} parent=0
    #allocation3 [shape = 'u8[294912]{0}', space=vmem, size = 0x48000, scoped, tag = 'output window, operand 0']
    #allocation4 [shape = 's32[2]{0}', space=sflag, size = 0x8, scoped, tag = 'scoped memory for tpu_custom_call.1']
    %13 = vsyncpa [#allocation4], 0
    %s14 = scalar_lea.sflag [#allocation4], 1
    %15 = vsyncpa %s14, 0
    loop: start=0, step=1, limit=4
    $region2: #{tpu_custom_call.1} parent=1 // loop_pre_header
      _
    $region3: #{tpu_custom_call.1} parent=1 // loop_header
      %s17 = sphi 0, %s21
      %p18 = scmp.ge.s32.totalorder %s17, 4
      %s24 = sphi 0, %s36
      %s25 = sphi 0, %s32
      %s26 = sphi 0, %s24
      %s27 = sphi 0, %s25
      %s28 = sphi 0, %s26
      %s29 = sphi 0, %s27
      %s41 = sphi 0, %s43
      %s44 = sphi 0, %s41
      %s45 = sphi 0, %s44
      %s61 = sphi 0, %s45
      %s67 = sphi 0, %s69
      %s70 = sphi 0, %s67
      %s71 = sphi 0, %s70
      %s87 = sphi 0, %s71
      %s91 = sphi 0, %s91
      %s93 = sphi 0, %s91
      %s94 = sphi 0, %s93
      %s108 = sphi 0, %s94
      %s112 = sphi 0, %s112
      %s114 = sphi 0, %s112
      %s115 = sphi 0, %s114
      %s129 = sphi 0, %s115
      %s133 = sphi 0, %s133
      %s135 = sphi 0, %s133
      %s136 = sphi 0, %s135
      %s150 = sphi 0, %s136
      %s154 = sphi 0, %s154
      %s156 = sphi 0, %s154
      %s157 = sphi 0, %s156
      %s171 = sphi 0, %s157
      %s175 = sphi 0, %s175
      %s177 = sphi 0, %s175
      %s178 = sphi 0, %s177
      %s192 = sphi 0, %s178
      %s196 = sphi 0, %s196
      %s198 = sphi 0, %s196
      %s199 = sphi 0, %s198
      %s213 = sphi 0, %s199
      %s221 = sphi 0, %s223
      %s224 = sphi 0, %s221
      %s225 = sphi 0, %s224
      %s241 = sphi 0, %s225
    $region4: #{tpu_custom_call.1} parent=1 // loop_header_branch
      %20 = sbr.rel (%p18) target = $region8
    $region5: #{tpu_custom_call.1} parent=1 // loop_body
      %s22 = ssub.s32 %s17, 1
      %s23 = ssub.s32 %s17, 2
      %s30 = sadd.s32 1, %s25
      %p31 = scmp.ge.s32.totalorder %s30, 1
      %s32 = scalar_select %p31, 0, %s30
      %s33 = sadd.s32 1, %s24
      %s34 = scalar_select %p31, %s33, %s24
      %p35 = scmp.ge.s32.totalorder %s34, 2
      %s36 = scalar_select %p35, 0, %s34
      %s37 = sadd.s32 %s24, %s25
      %s38 = sadd.s32 %s36, %s32
      %s39 = ssub.s32 %s37, %s38
      %p40 = scmp.eq.s32.totalorder %s39, 0
      %s42 = sadd.s32 %s41, 1
      %s43 = scalar_select %p40, %s41, %s42
      %p46 = pneg %p40
      %p47 = scmp.eq.s32.totalorder %s17, 1
      %p48 = por %p46, %p47
      %p49 = scmp.ne.s32.totalorder %s41, %s44
      %p50 = scmp.eq.s32.totalorder %s17, 0
      %p51 = por %p49, %p50
      %p52 = scmp.ne.s32.totalorder %s41, %s44
      %p53 = scmp.eq.s32.totalorder %s22, 1
      %p54 = por %p52, %p53
      %p55 = scmp.ne.s32.totalorder %s44, %s45
      %p56 = scmp.eq.s32.totalorder %s22, 0
      %p57 = por %p55, %p56
      %p58 = scmp.ne.s32.totalorder %s44, %s45
      %p59 = scmp.eq.s32.totalorder %s23, 1
      %p60 = por %p58, %p59
      %p62 = scmp.ne.s32.totalorder %s45, %s61
      %p63 = scmp.eq.s32.totalorder %s23, 0
      %p64 = por %p62, %p63
      %s65 = ssub.s32 %s25, %s32
      %p66 = scmp.eq.s32.totalorder %s65, 0
      %s68 = sadd.s32 %s67, 1
      %s69 = scalar_select %p66, %s67, %s68
      %p72 = pneg %p66
      %p73 = scmp.eq.s32.totalorder %s17, 1
      %p74 = por %p72, %p73
      %p75 = scmp.ne.s32.totalorder %s67, %s70
      %p76 = scmp.eq.s32.totalorder %s17, 0
      %p77 = por %p75, %p76
      %p78 = scmp.ne.s32.totalorder %s67, %s70
      %p79 = scmp.eq.s32.totalorder %s22, 1
      %p80 = por %p78, %p79
      %p81 = scmp.ne.s32.totalorder %s70, %s71
      %p82 = scmp.eq.s32.totalorder %s22, 0
      %p83 = por %p81, %p82
      %p84 = scmp.ne.s32.totalorder %s70, %s71
      %p85 = scmp.eq.s32.totalorder %s23, 1
      %p86 = por %p84, %p85
      %p88 = scmp.ne.s32.totalorder %s71, %s87
      %p89 = scmp.eq.s32.totalorder %s23, 0
      %p90 = por %p88, %p89
      %s92 = sadd.s32 %s91, 1
      %p95 = scmp.eq.s32.totalorder %s17, 1
      %p96 = scmp.ne.s32.totalorder %s91, %s93
      %p97 = scmp.eq.s32.totalorder %s17, 0
      %p98 = por %p96, %p97
      %p99 = scmp.ne.s32.totalorder %s91, %s93
      %p100 = scmp.eq.s32.totalorder %s22, 1
      %p101 = por %p99, %p100
      %p102 = scmp.ne.s32.totalorder %s93, %s94
      %p103 = scmp.eq.s32.totalorder %s22, 0
      %p104 = por %p102, %p103
      %p105 = scmp.ne.s32.totalorder %s93, %s94
      %p106 = scmp.eq.s32.totalorder %s23, 1
      %p107 = por %p105, %p106
      %p109 = scmp.ne.s32.totalorder %s94, %s108
      %p110 = scmp.eq.s32.totalorder %s23, 0
      %p111 = por %p109, %p110
      %s113 = sadd.s32 %s112, 1
      %p116 = scmp.eq.s32.totalorder %s17, 1
      %p117 = scmp.ne.s32.totalorder %s112, %s114
      %p118 = scmp.eq.s32.totalorder %s17, 0
      %p119 = por %p117, %p118
      %p120 = scmp.ne.s32.totalorder %s112, %s114
      %p121 = scmp.eq.s32.totalorder %s22, 1
      %p122 = por %p120, %p121
      %p123 = scmp.ne.s32.totalorder %s114, %s115
      %p124 = scmp.eq.s32.totalorder %s22, 0
      %p125 = por %p123, %p124
      %p126 = scmp.ne.s32.totalorder %s114, %s115
      %p127 = scmp.eq.s32.totalorder %s23, 1
      %p128 = por %p126, %p127
      %p130 = scmp.ne.s32.totalorder %s115, %s129
      %p131 = scmp.eq.s32.totalorder %s23, 0
      %p132 = por %p130, %p131
      %s134 = sadd.s32 %s133, 1
      %p137 = scmp.eq.s32.totalorder %s17, 1
      %p138 = scmp.ne.s32.totalorder %s133, %s135
      %p139 = scmp.eq.s32.totalorder %s17, 0
      %p140 = por %p138, %p139
      %p141 = scmp.ne.s32.totalorder %s133, %s135
      %p142 = scmp.eq.s32.totalorder %s22, 1
      %p143 = por %p141, %p142
      %p144 = scmp.ne.s32.totalorder %s135, %s136
      %p145 = scmp.eq.s32.totalorder %s22, 0
      %p146 = por %p144, %p145
      %p147 = scmp.ne.s32.totalorder %s135, %s136
      %p148 = scmp.eq.s32.totalorder %s23, 1
      %p149 = por %p147, %p148
      %p151 = scmp.ne.s32.totalorder %s136, %s150
      %p152 = scmp.eq.s32.totalorder %s23, 0
      %p153 = por %p151, %p152
      %s155 = sadd.s32 %s154, 1
      %p158 = scmp.eq.s32.totalorder %s17, 1
      %p159 = scmp.ne.s32.totalorder %s154, %s156
      %p160 = scmp.eq.s32.totalorder %s17, 0
      %p161 = por %p159, %p160
      %p162 = scmp.ne.s32.totalorder %s154, %s156
      %p163 = scmp.eq.s32.totalorder %s22, 1
      %p164 = por %p162, %p163
      %p165 = scmp.ne.s32.totalorder %s156, %s157
      %p166 = scmp.eq.s32.totalorder %s22, 0
      %p167 = por %p165, %p166
      %p168 = scmp.ne.s32.totalorder %s156, %s157
      %p169 = scmp.eq.s32.totalorder %s23, 1
      %p170 = por %p168, %p169
      %p172 = scmp.ne.s32.totalorder %s157, %s171
      %p173 = scmp.eq.s32.totalorder %s23, 0
      %p174 = por %p172, %p173
      %s176 = sadd.s32 %s175, 1
      %p179 = scmp.eq.s32.totalorder %s17, 1
      %p180 = scmp.ne.s32.totalorder %s175, %s177
      %p181 = scmp.eq.s32.totalorder %s17, 0
      %p182 = por %p180, %p181
      %p183 = scmp.ne.s32.totalorder %s175, %s177
      %p184 = scmp.eq.s32.totalorder %s22, 1
      %p185 = por %p183, %p184
      %p186 = scmp.ne.s32.totalorder %s177, %s178
      %p187 = scmp.eq.s32.totalorder %s22, 0
      %p188 = por %p186, %p187
      %p189 = scmp.ne.s32.totalorder %s177, %s178
      %p190 = scmp.eq.s32.totalorder %s23, 1
      %p191 = por %p189, %p190
      %p193 = scmp.ne.s32.totalorder %s178, %s192
      %p194 = scmp.eq.s32.totalorder %s23, 0
      %p195 = por %p193, %p194
      %s197 = sadd.s32 %s196, 1
      %p200 = scmp.eq.s32.totalorder %s17, 1
      %p201 = scmp.ne.s32.totalorder %s196, %s198
      %p202 = scmp.eq.s32.totalorder %s17, 0
      %p203 = por %p201, %p202
      %p204 = scmp.ne.s32.totalorder %s196, %s198
      %p205 = scmp.eq.s32.totalorder %s22, 1
      %p206 = por %p204, %p205
      %p207 = scmp.ne.s32.totalorder %s198, %s199
      %p208 = scmp.eq.s32.totalorder %s22, 0
      %p209 = por %p207, %p208
      %p210 = scmp.ne.s32.totalorder %s198, %s199
      %p211 = scmp.eq.s32.totalorder %s23, 1
      %p212 = por %p210, %p211
      %p214 = scmp.ne.s32.totalorder %s199, %s213
      %p215 = scmp.eq.s32.totalorder %s23, 0
      %p216 = por %p214, %p215
      %s217 = sadd.s32 %s24, %s25
      %s218 = sadd.s32 %s36, %s32
      %s219 = ssub.s32 %s217, %s218
      %p220 = scmp.eq.s32.totalorder %s219, 0
      %s222 = sadd.s32 %s221, 1
      %s223 = scalar_select %p220, %s221, %s222
      %p226 = pneg %p220
      %p227 = scmp.eq.s32.totalorder %s17, 1
      %p228 = por %p226, %p227
      %p229 = scmp.ne.s32.totalorder %s221, %s224
      %p230 = scmp.eq.s32.totalorder %s17, 0
      %p231 = por %p229, %p230
      %p232 = scmp.ne.s32.totalorder %s221, %s224
      %p233 = scmp.eq.s32.totalorder %s22, 1
      %p234 = por %p232, %p233
      %p235 = scmp.ne.s32.totalorder %s224, %s225
      %p236 = scmp.eq.s32.totalorder %s22, 0
      %p237 = por %p235, %p236
      %p238 = scmp.ne.s32.totalorder %s224, %s225
      %p239 = scmp.eq.s32.totalorder %s23, 1
      %p240 = por %p238, %p239
      %p242 = scmp.ne.s32.totalorder %s225, %s241
      %p243 = scmp.eq.s32.totalorder %s23, 0
      %p244 = por %p242, %p243
      %p245 = scmp.le.s32.totalorder 1, %s17
      %p246 = scmp.lt.s32.totalorder %s17, 3
      %p247 = pnand %p245, %p246
      %p248 = pneg %p247
      // Predicated region
      $region9: #{tpu_custom_call.1} parent=5 // pred_check
        _
      $region10: #{tpu_custom_call.1} parent=5 // pred_check_branch
        %250 = sbr.rel (%p247) target = $region12
      $region11: #{tpu_custom_call.1} parent=5 // pred_region
        %s251 = ssub.s32 %s17, 1
        // Predicated region
        $region13: #{tpu_custom_call.1} parent=11 // pred_check
          %p252 = pneg %p83
        $region14: #{tpu_custom_call.1} parent=11 // pred_check_branch
          %254 = sbr.rel (%p252) target = $region16
        $region15: #{tpu_custom_call.1} parent=11 // pred_region
          %p255 = scmp.lt.s32.totalorder %s27, 0
          %s256 = scalar_select %p255, %s27, 0
          %s257 = smul.addr %s256, 41
          %s258 = smul.addr %s257, 8
          %s259 = scalar_lea.vmem %s1, %s258
        $region16: #{tpu_custom_call.1} parent=11 // pred_fallthru
          _
        // Predicated region
        $region17: #{tpu_custom_call.1} parent=11 // pred_check
          %p260 = pneg %p104
        $region18: #{tpu_custom_call.1} parent=11 // pred_check_branch
          %262 = sbr.rel (%p260) target = $region20
        $region19: #{tpu_custom_call.1} parent=11 // pred_region
          _
        $region20: #{tpu_custom_call.1} parent=11 // pred_fallthru
          _
        // Predicated region
        $region21: #{tpu_custom_call.1} parent=11 // pred_check
          %p263 = pneg %p125
        $region22: #{tpu_custom_call.1} parent=11 // pred_check_branch
          %265 = sbr.rel (%p263) target = $region24
        $region23: #{tpu_custom_call.1} parent=11 // pred_region
          _
        $region24: #{tpu_custom_call.1} parent=11 // pred_fallthru
          _
        // Predicated region
        $region25: #{tpu_custom_call.1} parent=11 // pred_check
          %p266 = pneg %p146
        $region26: #{tpu_custom_call.1} parent=11 // pred_check_branch
          %268 = sbr.rel (%p266) target = $region28
        $region27: #{tpu_custom_call.1} parent=11 // pred_region
          _
        $region28: #{tpu_custom_call.1} parent=11 // pred_fallthru
          _
        // Predicated region
        $region29: #{tpu_custom_call.1} parent=11 // pred_check
          %p269 = pneg %p167
        $region30: #{tpu_custom_call.1} parent=11 // pred_check_branch
          %271 = sbr.rel (%p269) target = $region32
        $region31: #{tpu_custom_call.1} parent=11 // pred_region
          _
        $region32: #{tpu_custom_call.1} parent=11 // pred_fallthru
          _
        // Predicated region
        $region33: #{tpu_custom_call.1} parent=11 // pred_check
          %p272 = pneg %p188
        $region34: #{tpu_custom_call.1} parent=11 // pred_check_branch
          %274 = sbr.rel (%p272) target = $region36
        $region35: #{tpu_custom_call.1} parent=11 // pred_region
          _
        $region36: #{tpu_custom_call.1} parent=11 // pred_fallthru
          _
        // Predicated region
        $region37: #{tpu_custom_call.1} parent=11 // pred_check
          %p275 = pneg %p209
        $region38: #{tpu_custom_call.1} parent=11 // pred_check_branch
          %277 = sbr.rel (%p275) target = $region40
        $region39: #{tpu_custom_call.1} parent=11 // pred_region
          _
        $region40: #{tpu_custom_call.1} parent=11 // pred_fallthru
          _
      $region12: #{tpu_custom_call.1} parent=5 // pred_fallthru
        _
      %p278 = scmp.lt.s32.totalorder %s17, 2
      // Predicated region
      $region41: #{tpu_custom_call.1} parent=5 // pred_check
        %p279 = pneg %p278
      $region42: #{tpu_custom_call.1} parent=5 // pred_check_branch
        %281 = sbr.rel (%p279) target = $region44
      $region43: #{tpu_custom_call.1} parent=5 // pred_region
        // Predicated region
        $region45: #{tpu_custom_call.1} parent=43 // pred_check
          %p282 = pneg %p51
        $region46: #{tpu_custom_call.1} parent=43 // pred_check_branch
          %284 = sbr.rel (%p282) target = $region48
        $region47: #{tpu_custom_call.1} parent=43 // pred_region
          %s285 = sadd.s32 %s24, %s25
          %p286 = scmp.lt.s32.totalorder %s285, 1
          %s287 = scalar_select %p286, %s285, 1
          %s288 = smul.addr %s287, 41
          %s289 = smul.addr %s288, 8
          %s290 = scalar_lea.vmem %s0, %s289
          %s291 = sadd.s32 %s24, %s25
        $region48: #{tpu_custom_call.1} parent=43 // pred_fallthru
          _
      $region44: #{tpu_custom_call.1} parent=5 // pred_fallthru
        _
      %p292 = scmp.le.s32.totalorder 1, %s17
      %p293 = scmp.lt.s32.totalorder %s17, 3
      %p294 = pnand %p292, %p293
      %p295 = pneg %p294
      // Predicated region
      $region49: #{tpu_custom_call.1} parent=5 // pred_check
        _
      $region50: #{tpu_custom_call.1} parent=5 // pred_check_branch
        %297 = sbr.rel (%p294) target = $region52
      $region51: #{tpu_custom_call.1} parent=5 // pred_region
        %s298 = ssub.s32 %s17, 1
        %s299 = sadd.s32 %s26, %s27
        %p300 = scmp.lt.s32.totalorder %s299, 1
        %s301 = scalar_select %p300, %s299, 1
        %s302 = smul.addr %s301, 41
        %s303 = smul.addr %s302, 8
        %s304 = scalar_lea.vmem %s0, %s303
        %p305 = pneg %p57
        %p306 = pneg %p54
        %p307 = scmp.lt.s32.totalorder %s27, 0
        %s308 = scalar_select %p307, %s27, 0
        %s309 = smul.addr %s308, 41
        %s310 = smul.addr %s309, 8
        %s311 = scalar_lea.vmem %s1, %s310
        %p312 = pneg %p83
        %p313 = pneg %p80
        %p314 = pneg %p104
        %p315 = pneg %p101
        %p316 = pneg %p125
        %p317 = pneg %p122
        %p318 = pneg %p146
        %p319 = pneg %p143
        %p320 = pneg %p167
        %p321 = pneg %p164
        %p322 = pneg %p188
        %p323 = pneg %p185
        %p324 = pneg %p209
        %p325 = pneg %p206
        %p326 = pneg %p237
        %p327 = pneg %p234
        %s328 = sand.u32 %s224, 1
        %s329 = scalar_lea.sflag [#allocation4], %s328
        %s330 = sand.u32 %s224, 1
        %s331 = smul.addr %s330, 288
        %s332 = scalar_lea.vmem [#allocation3], %s331
        %s333 = sadd.s32 %s26, %s27
        %p334 = scmp.lt.s32.totalorder %s333, 1
        %s335 = scalar_select %p334, %s333, 1
        %s336 = smul.addr %s335, 41
        %s337 = smul.addr %s336, 8
        %s338 = scalar_lea.vmem %s0, %s337
        %s339 = sadd.s32 %s26, %s27
        %p340 = scmp.lt.s32.totalorder %s27, 0
        %s341 = scalar_select %p340, %s27, 0
        %s342 = smul.addr %s341, 41
        %s343 = smul.addr %s342, 8
        %s344 = scalar_lea.vmem %s1, %s343
        %s345 = sadd.s32 %s26, %s27
        %v346 = vld [vmem:[%s2] sm:$0xff]
        %v347 = vld [vmem:[%s2 + $0x8] sm:$0xff]
        %v348 = vld [vmem:[%s2 + $0x10] sm:$0xff]
        %v349 = vld [vmem:[%s2 + $0x18] sm:$0xff]
        %v350 = vld [vmem:[%s2 + $0x20] sm:$0xff]
        %v351 = vld [vmem:[%s2 + $0x28] sm:$0xff]
        %v352 = vld [vmem:[%s2 + $0x30] sm:$0xff]
        %v353 = vld [vmem:[%s2 + $0x38] sm:$0xff]
        %v354 = vld [vmem:[%s2 + $0x40] sm:$0xff]
        %v355 = vld [vmem:[%s2 + $0x48] sm:$0xff]
        %v356 = vld [vmem:[%s2 + $0x50] sm:$0xff]
        %v357 = vld [vmem:[%s2 + $0x58] sm:$0xff]
        %v358 = vld [vmem:[%s2 + $0x60] sm:$0xff]
        %v359 = vld [vmem:[%s2 + $0x68] sm:$0xff]
        %v360 = vld [vmem:[%s2 + $0x70] sm:$0xff]
        %v361 = vld [vmem:[%s2 + $0x78] sm:$0xff]
        %v362 = vld [vmem:[%s3] sm:$0x1]
        %v363 = vld [vmem:[%s338] sm:$0xff]
        %v364 = vld [vmem:[%s338 + $0x8] sm:$0xff]
        %v365 = vld [vmem:[%s338 + $0x10] sm:$0xff]
        %v366 = vld [vmem:[%s338 + $0x18] sm:$0xff]
        %v367 = vld [vmem:[%s338 + $0x20] sm:$0xff]
        %v368 = vld [vmem:[%s338 + $0x28] sm:$0xff]
        %v369 = vld [vmem:[%s338 + $0x30] sm:$0xff]
        %v370 = vld [vmem:[%s338 + $0x38] sm:$0xff]
        %v371 = vld [vmem:[%s338 + $0x40] sm:$0xff]
        %v372 = vld [vmem:[%s338 + $0x48] sm:$0xff]
        %v373 = vld [vmem:[%s338 + $0x50] sm:$0xff]
        %v374 = vld [vmem:[%s338 + $0x58] sm:$0xff]
        %v375 = vld [vmem:[%s338 + $0x60] sm:$0xff]
        %v376 = vld [vmem:[%s338 + $0x68] sm:$0xff]
        %v377 = vld [vmem:[%s338 + $0x70] sm:$0xff]
        %v378 = vld [vmem:[%s338 + $0x78] sm:$0xff]
        %v379 = vld [vmem:[%s338 + $0x80] sm:$0xff]
        %v380 = vld [vmem:[%s338 + $0x88] sm:$0xff]
        %v381 = vld [vmem:[%s338 + $0x90] sm:$0xff]
        %v382 = vld [vmem:[%s338 + $0x98] sm:$0xff]
        %v383 = vld [vmem:[%s338 + $0xa0] sm:$0xff]
        %v384 = vld [vmem:[%s338 + $0xa8] sm:$0xff]
        %v385 = vld [vmem:[%s338 + $0xb0] sm:$0xff]
        %v386 = vld [vmem:[%s338 + $0xb8] sm:$0xff]
        %v387 = vld [vmem:[%s338 + $0xc0] sm:$0xff]
        %v388 = vld [vmem:[%s338 + $0xc8] sm:$0xff]
        %v389 = vld [vmem:[%s338 + $0xd0] sm:$0xff]
        %v390 = vld [vmem:[%s338 + $0xd8] sm:$0xff]
        %v391 = vld [vmem:[%s338 + $0xe0] sm:$0xff]
        %v392 = vld [vmem:[%s338 + $0xe8] sm:$0xff]
        %v393 = vld [vmem:[%s338 + $0xf0] sm:$0xff]
        %v394 = vld [vmem:[%s338 + $0xf8] sm:$0xff]
        %v396 = vlaneseq
        %v397 = vshrl.u32 %v396, 7
        %v398 = vsub.s32 0, %v397
        %v399 = vrot.slane %v362, %v398
        %401 = vmatprep.subr.mxu0 0.0
        %402 = vmatpush1.msra.mxu0 %v346
        %403 = vmatprep.subr.mxu0 0.0
        %404 = vmatpush1.msra.mxu0 %v347
        %405 = vmatprep.subr.mxu0 0.0
        %406 = vmatpush1.msra.mxu0 %v348
        %407 = vmatprep.subr.mxu0 0.0
        %408 = vmatpush1.msra.mxu0 %v349
        %409 = vmatprep.subr.mxu0 0.0
        %410 = vmatpush1.msra.mxu0 %v350
        %411 = vmatprep.subr.mxu0 0.0
        %412 = vmatpush1.msra.mxu0 %v351
        %413 = vmatprep.subr.mxu0 0.0
        %414 = vmatpush1.msra.mxu0 %v352
        %415 = vmatprep.subr.mxu0 0.0
        %416 = vmatpush1.msra.mxu0 %v353
        %417 = vmatprep.subr.mxu0 0.0
        %418 = vmatpush1.msra.mxu0 %v354
        %419 = vmatprep.subr.mxu0 0.0
        %420 = vmatpush1.msra.mxu0 %v355
        %421 = vmatprep.subr.mxu0 0.0
        %422 = vmatpush1.msra.mxu0 %v356
        %423 = vmatprep.subr.mxu0 0.0
        %424 = vmatpush1.msra.mxu0 %v357
        %425 = vmatprep.subr.mxu0 0.0
        %426 = vmatpush1.msra.mxu0 %v358
        %427 = vmatprep.subr.mxu0 0.0
        %428 = vmatpush1.msra.mxu0 %v359
        %429 = vmatprep.subr.mxu0 0.0
        %430 = vmatpush1.msra.mxu0 %v360
        %431 = vmatprep.subr.mxu0 0.0
        %432 = vmatpush1.msra.mxu0 %v361
        %433 = vmatprep.subr.mxu0 0.0
        %434 = vmatpush1.msra.mxu0 0.0
        %435 = vmatprep.subr.mxu0 0.0
        %436 = vmatpush1.msra.mxu0 0.0
        %437 = vmatprep.subr.mxu0 0.0
        %438 = vmatpush1.msra.mxu0 0.0
        %439 = vmatprep.subr.mxu0 0.0
        %440 = vmatpush1.msra.mxu0 0.0
        %441 = vmatprep.subr.mxu0 0.0
        %442 = vmatpush1.msra.mxu0 0.0
        %443 = vmatprep.subr.mxu0 0.0
        %444 = vmatpush1.msra.mxu0 0.0
        %445 = vmatprep.subr.mxu0 0.0
        %446 = vmatpush1.msra.mxu0 0.0
        %447 = vmatprep.subr.mxu0 0.0
        %448 = vmatpush1.msra.mxu0 0.0
        %449 = vmatprep.subr.mxu0 0.0
        %450 = vmatpush1.msra.mxu0 0.0
        %451 = vmatprep.subr.mxu0 0.0
        %452 = vmatpush1.msra.mxu0 0.0
        %453 = vmatprep.subr.mxu0 0.0
        %454 = vmatpush1.msra.mxu0 0.0
        %455 = vmatprep.subr.mxu0 0.0
        %456 = vmatpush1.msra.mxu0 0.0
        %457 = vmatprep.subr.mxu0 0.0
        %458 = vmatpush1.msra.mxu0 0.0
        %459 = vmatprep.subr.mxu0 0.0
        %460 = vmatpush1.msra.mxu0 0.0
        %461 = vmatprep.subr.mxu0 0.0
        %462 = vmatpush1.msra.mxu0 0.0
        %463 = vmatprep.subr.mxu0 0.0
        %464 = vmatpush1.msra.mxu0 0.0
        %465 = vmatprep.mubr.f32.mxu0 0.0
        %466 = vmatmul.mubr.f32.gmra.mrb[0].mxu0 %v363
        %v467 = vpop.f32.mrb[0].mxu0
        %v468 = vadd.f32 %v399, %v467
        %v469 = vpop.f32.mrb[0].mxu0
        %470 = vmatprep.mubr.f32.mxu0 0.0
        %471 = vmatmul.mubr.f32.gmra.mrb[0].mxu0 %v364
        %v472 = vpop.f32.mrb[0].mxu0
        %v473 = vadd.f32 %v399, %v472
        %v474 = vpop.f32.mrb[0].mxu0
        %475 = vmatprep.mubr.f32.mxu0 0.0
        %476 = vmatmul.mubr.f32.gmra.mrb[0].mxu0 %v365
        %v477 = vpop.f32.mrb[0].mxu0
        %v478 = vadd.f32 %v399, %v477
        %v479 = vpop.f32.mrb[0].mxu0
        %480 = vmatprep.mubr.f32.mxu0 0.0
        %481 = vmatmul.mubr.f32.gmra.mrb[0].mxu0 %v366
        %v482 = vpop.f32.mrb[0].mxu0
        %v483 = vadd.f32 %v399, %v482
        %v484 = vpop.f32.mrb[0].mxu0
        %485 = vmatprep.mubr.f32.mxu0 0.0
        %486 = vmatmul.mubr.f32.gmra.mrb[0].mxu0 %v367
        %v487 = vpop.f32.mrb[0].mxu0
        %v488 = vadd.f32 %v399, %v487
        %v489 = vpop.f32.mrb[0].mxu0
        %490 = vmatprep.mubr.f32.mxu0 0.0
        %491 = vmatmul.mubr.f32.gmra.mrb[0].mxu0 %v368
        %v492 = vpop.f32.mrb[0].mxu0
        %v493 = vadd.f32 %v399, %v492
        %v494 = vpop.f32.mrb[0].mxu0
        %495 = vmatprep.mubr.f32.mxu0 0.0
        %496 = vmatmul.mubr.f32.gmra.mrb[0].mxu0 %v369
        %v497 = vpop.f32.mrb[0].mxu0
        %v498 = vadd.f32 %v399, %v497
        %v499 = vpop.f32.mrb[0].mxu0
        %500 = vmatprep.mubr.f32.mxu0 0.0
        %501 = vmatmul.mubr.f32.gmra.mrb[0].mxu0 %v370
        %v502 = vpop.f32.mrb[0].mxu0
        %v503 = vadd.f32 %v399, %v502
        %v504 = vpop.f32.mrb[0].mxu0
        %505 = vmatprep.mubr.f32.mxu0 0.0
        %506 = vmatmul.mubr.f32.gmra.mrb[0].mxu0 %v371
        %v507 = vpop.f32.mrb[0].mxu0
        %v508 = vadd.f32 %v399, %v507
        %v509 = vpop.f32.mrb[0].mxu0
        %510 = vmatprep.mubr.f32.mxu0 0.0
        %511 = vmatmul.mubr.f32.gmra.mrb[0].mxu0 %v372
        %v512 = vpop.f32.mrb[0].mxu0
        %v513 = vadd.f32 %v399, %v512
        %v514 = vpop.f32.mrb[0].mxu0
        %515 = vmatprep.mubr.f32.mxu0 0.0
        %516 = vmatmul.mubr.f32.gmra.mrb[0].mxu0 %v373
        %v517 = vpop.f32.mrb[0].mxu0
        %v518 = vadd.f32 %v399, %v517
        %v519 = vpop.f32.mrb[0].mxu0
        %520 = vmatprep.mubr.f32.mxu0 0.0
        %521 = vmatmul.mubr.f32.gmra.mrb[0].mxu0 %v374
        %v522 = vpop.f32.mrb[0].mxu0
        %v523 = vadd.f32 %v399, %v522
        %v524 = vpop.f32.mrb[0].mxu0
        %525 = vmatprep.mubr.f32.mxu0 0.0
        %526 = vmatmul.mubr.f32.gmra.mrb[0].mxu0 %v375
        %v527 = vpop.f32.mrb[0].mxu0
        %v528 = vadd.f32 %v399, %v527
        %v529 = vpop.f32.mrb[0].mxu0
        %530 = vmatprep.mubr.f32.mxu0 0.0
        %531 = vmatmul.mubr.f32.gmra.mrb[0].mxu0 %v376
        %v532 = vpop.f32.mrb[0].mxu0
        %v533 = vadd.f32 %v399, %v532
        %v534 = vpop.f32.mrb[0].mxu0
        %535 = vmatprep.mubr.f32.mxu0 0.0
        %536 = vmatmul.mubr.f32.gmra.mrb[0].mxu0 %v377
        %v537 = vpop.f32.mrb[0].mxu0
        %v538 = vadd.f32 %v399, %v537
        %v539 = vpop.f32.mrb[0].mxu0
        %540 = vmatprep.mubr.f32.mxu0 0.0
        %541 = vmatmul.mubr.f32.gmra.mrb[0].mxu0 %v378
        %v542 = vpop.f32.mrb[0].mxu0
        %v543 = vadd.f32 %v399, %v542
        %v544 = vpop.f32.mrb[0].mxu0
        %545 = vmatprep.mubr.f32.mxu0 0.0
        %546 = vmatmul.mubr.f32.gmra.mrb[0].mxu0 %v379
        %v547 = vpop.f32.mrb[0].mxu0
        %v548 = vadd.f32 %v399, %v547
        %v549 = vpop.f32.mrb[0].mxu0
        %550 = vmatprep.mubr.f32.mxu0 0.0
        %551 = vmatmul.mubr.f32.gmra.mrb[0].mxu0 %v380
        %v552 = vpop.f32.mrb[0].mxu0
        %v553 = vadd.f32 %v399, %v552
        %v554 = vpop.f32.mrb[0].mxu0
        %555 = vmatprep.mubr.f32.mxu0 0.0
        %556 = vmatmul.mubr.f32.gmra.mrb[0].mxu0 %v381
        %v557 = vpop.f32.mrb[0].mxu0
        %v558 = vadd.f32 %v399, %v557
        %v559 = vpop.f32.mrb[0].mxu0
        %560 = vmatprep.mubr.f32.mxu0 0.0
        %561 = vmatmul.mubr.f32.gmra.mrb[0].mxu0 %v382
        %v562 = vpop.f32.mrb[0].mxu0
        %v563 = vadd.f32 %v399, %v562
        %v564 = vpop.f32.mrb[0].mxu0
        %565 = vmatprep.mubr.f32.mxu0 0.0
        %566 = vmatmul.mubr.f32.gmra.mrb[0].mxu0 %v383
        %v567 = vpop.f32.mrb[0].mxu0
        %v568 = vadd.f32 %v399, %v567
        %v569 = vpop.f32.mrb[0].mxu0
        %570 = vmatprep.mubr.f32.mxu0 0.0
        %571 = vmatmul.mubr.f32.gmra.mrb[0].mxu0 %v384
        %v572 = vpop.f32.mrb[0].mxu0
        %v573 = vadd.f32 %v399, %v572
        %v574 = vpop.f32.mrb[0].mxu0
        %575 = vmatprep.mubr.f32.mxu0 0.0
        %576 = vmatmul.mubr.f32.gmra.mrb[0].mxu0 %v385
        %v577 = vpop.f32.mrb[0].mxu0
        %v578 = vadd.f32 %v399, %v577
        %v579 = vpop.f32.mrb[0].mxu0
        %580 = vmatprep.mubr.f32.mxu0 0.0
        %581 = vmatmul.mubr.f32.gmra.mrb[0].mxu0 %v386
        %v582 = vpop.f32.mrb[0].mxu0
        %v583 = vadd.f32 %v399, %v582
        %v584 = vpop.f32.mrb[0].mxu0
        %585 = vmatprep.mubr.f32.mxu0 0.0
        %586 = vmatmul.mubr.f32.gmra.mrb[0].mxu0 %v387
        %v587 = vpop.f32.mrb[0].mxu0
        %v588 = vadd.f32 %v399, %v587
        %v589 = vpop.f32.mrb[0].mxu0
        %590 = vmatprep.mubr.f32.mxu0 0.0
        %591 = vmatmul.mubr.f32.gmra.mrb[0].mxu0 %v388
        %v592 = vpop.f32.mrb[0].mxu0
        %v593 = vadd.f32 %v399, %v592
        %v594 = vpop.f32.mrb[0].mxu0
        %595 = vmatprep.mubr.f32.mxu0 0.0
        %596 = vmatmul.mubr.f32.gmra.mrb[0].mxu0 %v389
        %v597 = vpop.f32.mrb[0].mxu0
        %v598 = vadd.f32 %v399, %v597
        %v599 = vpop.f32.mrb[0].mxu0
        %600 = vmatprep.mubr.f32.mxu0 0.0
        %601 = vmatmul.mubr.f32.gmra.mrb[0].mxu0 %v390
        %v602 = vpop.f32.mrb[0].mxu0
        %v603 = vadd.f32 %v399, %v602
        %v604 = vpop.f32.mrb[0].mxu0
        %605 = vmatprep.mubr.f32.mxu0 0.0
        %606 = vmatmul.mubr.f32.gmra.mrb[0].mxu0 %v391
        %v607 = vpop.f32.mrb[0].mxu0
        %v608 = vadd.f32 %v399, %v607
        %v609 = vpop.f32.mrb[0].mxu0
        %610 = vmatprep.mubr.f32.mxu0 0.0
        %611 = vmatmul.mubr.f32.gmra.mrb[0].mxu0 %v392
        %v612 = vpop.f32.mrb[0].mxu0
        %v613 = vadd.f32 %v399, %v612
        %v614 = vpop.f32.mrb[0].mxu0
        %615 = vmatprep.mubr.f32.mxu0 0.0
        %616 = vmatmul.mubr.f32.gmra.mrb[0].mxu0 %v393
        %v617 = vpop.f32.mrb[0].mxu0
        %v618 = vadd.f32 %v399, %v617
        %v619 = vpop.f32.mrb[0].mxu0
        %620 = vmatprep.mubr.f32.mxu0 0.0
        %621 = vmatmul.mubr.f32.gmra.mrb[0].mxu0 %v394
        %v622 = vpop.f32.mrb[0].mxu0
        %v623 = vadd.f32 %v399, %v622
        %v624 = vpop.f32.mrb[0].mxu0
        %625 = vdwg.mxu0
        %v626 = vmax.f32 %v468, 0.0
        %v627 = vmax.f32 %v473, 0.0
        %v628 = vmax.f32 %v478, 0.0
        %v629 = vmax.f32 %v483, 0.0
        %v630 = vmax.f32 %v488, 0.0
        %v631 = vmax.f32 %v493, 0.0
        %v632 = vmax.f32 %v498, 0.0
        %v633 = vmax.f32 %v503, 0.0
        %v634 = vmax.f32 %v508, 0.0
        %v635 = vmax.f32 %v513, 0.0
        %v636 = vmax.f32 %v518, 0.0
        %v637 = vmax.f32 %v523, 0.0
        %v638 = vmax.f32 %v528, 0.0
        %v639 = vmax.f32 %v533, 0.0
        %v640 = vmax.f32 %v538, 0.0
        %v641 = vmax.f32 %v543, 0.0
        %v642 = vmax.f32 %v548, 0.0
        %v643 = vmax.f32 %v553, 0.0
        %v644 = vmax.f32 %v558, 0.0
        %v645 = vmax.f32 %v563, 0.0
        %v646 = vmax.f32 %v568, 0.0
        %v647 = vmax.f32 %v573, 0.0
        %v648 = vmax.f32 %v578, 0.0
        %v649 = vmax.f32 %v583, 0.0
        %v650 = vmax.f32 %v588, 0.0
        %v651 = vmax.f32 %v593, 0.0
        %v652 = vmax.f32 %v598, 0.0
        %v653 = vmax.f32 %v603, 0.0
        %v654 = vmax.f32 %v608, 0.0
        %v655 = vmax.f32 %v613, 0.0
        %v656 = vmax.f32 %v618, 0.0
        %v657 = vmax.f32 %v623, 0.0
        %v658 = vld [vmem:[%s344] sm:$0xff]
        %v659 = vld [vmem:[%s344 + $0x8] sm:$0xff]
        %v660 = vld [vmem:[%s344 + $0x10] sm:$0xff]
        %v661 = vld [vmem:[%s344 + $0x18] sm:$0xff]
        %v662 = vld [vmem:[%s344 + $0x20] sm:$0xff]
        %v663 = vld [vmem:[%s344 + $0x28] sm:$0xff]
        %v664 = vld [vmem:[%s344 + $0x30] sm:$0xff]
        %v665 = vld [vmem:[%s344 + $0x38] sm:$0xff]
        %v666 = vld [vmem:[%s344 + $0x40] sm:$0xff]
        %v667 = vld [vmem:[%s344 + $0x48] sm:$0xff]
        %v668 = vld [vmem:[%s344 + $0x50] sm:$0xff]
        %v669 = vld [vmem:[%s344 + $0x58] sm:$0xff]
        %v670 = vld [vmem:[%s344 + $0x60] sm:$0xff]
        %v671 = vld [vmem:[%s344 + $0x68] sm:$0xff]
        %v672 = vld [vmem:[%s344 + $0x70] sm:$0xff]
        %v673 = vld [vmem:[%s344 + $0x78] sm:$0xff]
        %v674 = vld [vmem:[%s344 + $0x80] sm:$0xff]
        %v675 = vld [vmem:[%s344 + $0x88] sm:$0xff]
        %v676 = vld [vmem:[%s344 + $0x90] sm:$0xff]
        %v677 = vld [vmem:[%s344 + $0x98] sm:$0xff]
        %v678 = vld [vmem:[%s344 + $0xa0] sm:$0xff]
        %v679 = vld [vmem:[%s344 + $0xa8] sm:$0xff]
        %v680 = vld [vmem:[%s344 + $0xb0] sm:$0xff]
        %v681 = vld [vmem:[%s344 + $0xb8] sm:$0xff]
        %v682 = vld [vmem:[%s344 + $0xc0] sm:$0xff]
        %v683 = vld [vmem:[%s344 + $0xc8] sm:$0xff]
        %v684 = vld [vmem:[%s344 + $0xd0] sm:$0xff]
        %v685 = vld [vmem:[%s344 + $0xd8] sm:$0xff]
        %v686 = vld [vmem:[%s344 + $0xe0] sm:$0xff]
        %v687 = vld [vmem:[%s344 + $0xe8] sm:$0xff]
        %v688 = vld [vmem:[%s344 + $0xf0] sm:$0xff]
        %v689 = vld [vmem:[%s344 + $0xf8] sm:$0xff]
        %691 = vset.pattern.permute.xlu0 0
        %692 = vperm.xlu0 %691, %v658
        %v693 = vpop.permute.xlu0 %692
        %696 = vset.pattern.permute.xlu0 0
        %697 = vperm.xlu0 %696, %v659
        %v698 = vpop.permute.xlu0 %697
        %701 = vset.pattern.permute.xlu0 0
        %702 = vperm.xlu0 %701, %v660
        %v703 = vpop.permute.xlu0 %702
        %706 = vset.pattern.permute.xlu0 0
        %707 = vperm.xlu0 %706, %v661
        %v708 = vpop.permute.xlu0 %707
        %711 = vset.pattern.permute.xlu0 0
        %712 = vperm.xlu0 %711, %v662
        %v713 = vpop.permute.xlu0 %712
        %716 = vset.pattern.permute.xlu0 0
        %717 = vperm.xlu0 %716, %v663
        %v718 = vpop.permute.xlu0 %717
        %721 = vset.pattern.permute.xlu0 0
        %722 = vperm.xlu0 %721, %v664
        %v723 = vpop.permute.xlu0 %722
        %726 = vset.pattern.permute.xlu0 0
        %727 = vperm.xlu0 %726, %v665
        %v728 = vpop.permute.xlu0 %727
        %731 = vset.pattern.permute.xlu0 0
        %732 = vperm.xlu0 %731, %v666
        %v733 = vpop.permute.xlu0 %732
        %736 = vset.pattern.permute.xlu0 0
        %737 = vperm.xlu0 %736, %v667
        %v738 = vpop.permute.xlu0 %737
        %741 = vset.pattern.permute.xlu0 0
        %742 = vperm.xlu0 %741, %v668
        %v743 = vpop.permute.xlu0 %742
        %746 = vset.pattern.permute.xlu0 0
        %747 = vperm.xlu0 %746, %v669
        %v748 = vpop.permute.xlu0 %747
        %751 = vset.pattern.permute.xlu0 0
        %752 = vperm.xlu0 %751, %v670
        %v753 = vpop.permute.xlu0 %752
        %756 = vset.pattern.permute.xlu0 0
        %757 = vperm.xlu0 %756, %v671
        %v758 = vpop.permute.xlu0 %757
        %761 = vset.pattern.permute.xlu0 0
        %762 = vperm.xlu0 %761, %v672
        %v763 = vpop.permute.xlu0 %762
        %766 = vset.pattern.permute.xlu0 0
        %767 = vperm.xlu0 %766, %v673
        %v768 = vpop.permute.xlu0 %767
        %771 = vset.pattern.permute.xlu0 0
        %772 = vperm.xlu0 %771, %v674
        %v773 = vpop.permute.xlu0 %772
        %776 = vset.pattern.permute.xlu0 0
        %777 = vperm.xlu0 %776, %v675
        %v778 = vpop.permute.xlu0 %777
        %781 = vset.pattern.permute.xlu0 0
        %782 = vperm.xlu0 %781, %v676
        %v783 = vpop.permute.xlu0 %782
        %786 = vset.pattern.permute.xlu0 0
        %787 = vperm.xlu0 %786, %v677
        %v788 = vpop.permute.xlu0 %787
        %791 = vset.pattern.permute.xlu0 0
        %792 = vperm.xlu0 %791, %v678
        %v793 = vpop.permute.xlu0 %792
        %796 = vset.pattern.permute.xlu0 0
        %797 = vperm.xlu0 %796, %v679
        %v798 = vpop.permute.xlu0 %797
        %801 = vset.pattern.permute.xlu0 0
        %802 = vperm.xlu0 %801, %v680
        %v803 = vpop.permute.xlu0 %802
        %806 = vset.pattern.permute.xlu0 0
        %807 = vperm.xlu0 %806, %v681
        %v808 = vpop.permute.xlu0 %807
        %811 = vset.pattern.permute.xlu0 0
        %812 = vperm.xlu0 %811, %v682
        %v813 = vpop.permute.xlu0 %812
        %816 = vset.pattern.permute.xlu0 0
        %817 = vperm.xlu0 %816, %v683
        %v818 = vpop.permute.xlu0 %817
        %821 = vset.pattern.permute.xlu0 0
        %822 = vperm.xlu0 %821, %v684
        %v823 = vpop.permute.xlu0 %822
        %826 = vset.pattern.permute.xlu0 0
        %827 = vperm.xlu0 %826, %v685
        %v828 = vpop.permute.xlu0 %827
        %831 = vset.pattern.permute.xlu0 0
        %832 = vperm.xlu0 %831, %v686
        %v833 = vpop.permute.xlu0 %832
        %836 = vset.pattern.permute.xlu0 0
        %837 = vperm.xlu0 %836, %v687
        %v838 = vpop.permute.xlu0 %837
        %841 = vset.pattern.permute.xlu0 0
        %842 = vperm.xlu0 %841, %v688
        %v843 = vpop.permute.xlu0 %842
        %846 = vset.pattern.permute.xlu0 0
        %847 = vperm.xlu0 %846, %v689
        %v848 = vpop.permute.xlu0 %847
        %v850 = vmul.f32 %v626, %v693
        %v851 = vmul.f32 %v627, %v698
        %v852 = vmul.f32 %v628, %v703
        %v853 = vmul.f32 %v629, %v708
        %v854 = vmul.f32 %v630, %v713
        %v855 = vmul.f32 %v631, %v718
        %v856 = vmul.f32 %v632, %v723
        %v857 = vmul.f32 %v633, %v728
        %v858 = vmul.f32 %v634, %v733
        %v859 = vmul.f32 %v635, %v738
        %v860 = vmul.f32 %v636, %v743
        %v861 = vmul.f32 %v637, %v748
        %v862 = vmul.f32 %v638, %v753
        %v863 = vmul.f32 %v639, %v758
        %v864 = vmul.f32 %v640, %v763
        %v865 = vmul.f32 %v641, %v768
        %v866 = vmul.f32 %v642, %v773
        %v867 = vmul.f32 %v643, %v778
        %v868 = vmul.f32 %v644, %v783
        %v869 = vmul.f32 %v645, %v788
        %v870 = vmul.f32 %v646, %v793
        %v871 = vmul.f32 %v647, %v798
        %v872 = vmul.f32 %v648, %v803
        %v873 = vmul.f32 %v649, %v808
        %v874 = vmul.f32 %v650, %v813
        %v875 = vmul.f32 %v651, %v818
        %v876 = vmul.f32 %v652, %v823
        %v877 = vmul.f32 %v653, %v828
        %v878 = vmul.f32 %v654, %v833
        %v879 = vmul.f32 %v655, %v838
        %v880 = vmul.f32 %v656, %v843
        %v881 = vmul.f32 %v657, %v848
        %882 = vst [vmem:[#allocation2] sm:$0xff] %v850
        %883 = vst [vmem:[#allocation2 + $0x8] sm:$0xff] %v851
        %884 = vst [vmem:[#allocation2 + $0x10] sm:$0xff] %v852
        %885 = vst [vmem:[#allocation2 + $0x18] sm:$0xff] %v853
        %886 = vst [vmem:[#allocation2 + $0x20] sm:$0xff] %v854
        %887 = vst [vmem:[#allocation2 + $0x28] sm:$0xff] %v855
        %888 = vst [vmem:[#allocation2 + $0x30] sm:$0xff] %v856
        %889 = vst [vmem:[#allocation2 + $0x38] sm:$0xff] %v857
        %890 = vst [vmem:[#allocation2 + $0x40] sm:$0xff] %v858
        %891 = vst [vmem:[#allocation2 + $0x48] sm:$0xff] %v859
        %892 = vst [vmem:[#allocation2 + $0x50] sm:$0xff] %v860
        %893 = vst [vmem:[#allocation2 + $0x58] sm:$0xff] %v861
        %894 = vst [vmem:[#allocation2 + $0x60] sm:$0xff] %v862
        %895 = vst [vmem:[#allocation2 + $0x68] sm:$0xff] %v863
        %896 = vst [vmem:[#allocation2 + $0x70] sm:$0xff] %v864
        %897 = vst [vmem:[#allocation2 + $0x78] sm:$0xff] %v865
        %898 = vst [vmem:[#allocation2 + $0x80] sm:$0xff] %v866
        %899 = vst [vmem:[#allocation2 + $0x88] sm:$0xff] %v867
        %900 = vst [vmem:[#allocation2 + $0x90] sm:$0xff] %v868
        %901 = vst [vmem:[#allocation2 + $0x98] sm:$0xff] %v869
        %902 = vst [vmem:[#allocation2 + $0xa0] sm:$0xff] %v870
        %903 = vst [vmem:[#allocation2 + $0xa8] sm:$0xff] %v871
        %904 = vst [vmem:[#allocation2 + $0xb0] sm:$0xff] %v872
        %905 = vst [vmem:[#allocation2 + $0xb8] sm:$0xff] %v873
        %906 = vst [vmem:[#allocation2 + $0xc0] sm:$0xff] %v874
        %907 = vst [vmem:[#allocation2 + $0xc8] sm:$0xff] %v875
        %908 = vst [vmem:[#allocation2 + $0xd0] sm:$0xff] %v876
        %909 = vst [vmem:[#allocation2 + $0xd8] sm:$0xff] %v877
        %910 = vst [vmem:[#allocation2 + $0xe0] sm:$0xff] %v878
        %911 = vst [vmem:[#allocation2 + $0xe8] sm:$0xff] %v879
        %912 = vst [vmem:[#allocation2 + $0xf0] sm:$0xff] %v880
        %913 = vst [vmem:[#allocation2 + $0xf8] sm:$0xff] %v881
        %v914 = vld [vmem:[%s338 + $0x100] sm:$0xff]
        %v915 = vld [vmem:[%s338 + $0x108] sm:$0xff]
        %v916 = vld [vmem:[%s338 + $0x110] sm:$0xff]
        %v917 = vld [vmem:[%s338 + $0x118] sm:$0xff]
        %v918 = vld [vmem:[%s338 + $0x120] sm:$0xff]
        %v919 = vld [vmem:[%s338 + $0x128] sm:$0xff]
        %v920 = vld [vmem:[%s338 + $0x130] sm:$0xff]
        %v921 = vld [vmem:[%s338 + $0x138] sm:$0xff]
        %v922 = vld [vmem:[%s338 + $0x140] sm:$0xf]
        %923 = vmatprep.subr.mxu0 0.0
        %924 = vmatpush1.msra.mxu0 %v346
        %925 = vmatprep.subr.mxu0 0.0
        %926 = vmatpush1.msra.mxu0 %v347
        %927 = vmatprep.subr.mxu0 0.0
        %928 = vmatpush1.msra.mxu0 %v348
        %929 = vmatprep.subr.mxu0 0.0
        %930 = vmatpush1.msra.mxu0 %v349
        %931 = vmatprep.subr.mxu0 0.0
        %932 = vmatpush1.msra.mxu0 %v350
        %933 = vmatprep.subr.mxu0 0.0
        %934 = vmatpush1.msra.mxu0 %v351
        %935 = vmatprep.subr.mxu0 0.0
        %936 = vmatpush1.msra.mxu0 %v352
        %937 = vmatprep.subr.mxu0 0.0
        %938 = vmatpush1.msra.mxu0 %v353
        %939 = vmatprep.subr.mxu0 0.0
        %940 = vmatpush1.msra.mxu0 %v354
        %941 = vmatprep.subr.mxu0 0.0
        %942 = vmatpush1.msra.mxu0 %v355
        %943 = vmatprep.subr.mxu0 0.0
        %944 = vmatpush1.msra.mxu0 %v356
        %945 = vmatprep.subr.mxu0 0.0
        %946 = vmatpush1.msra.mxu0 %v357
        %947 = vmatprep.subr.mxu0 0.0
        %948 = vmatpush1.msra.mxu0 %v358
        %949 = vmatprep.subr.mxu0 0.0
        %950 = vmatpush1.msra.mxu0 %v359
        %951 = vmatprep.subr.mxu0 0.0
        %952 = vmatpush1.msra.mxu0 %v360
        %953 = vmatprep.subr.mxu0 0.0
        %954 = vmatpush1.msra.mxu0 %v361
        %955 = vmatprep.subr.mxu0 0.0
        %956 = vmatpush1.msra.mxu0 0.0
        %957 = vmatprep.subr.mxu0 0.0
        %958 = vmatpush1.msra.mxu0 0.0
        %959 = vmatprep.subr.mxu0 0.0
        %960 = vmatpush1.msra.mxu0 0.0
        %961 = vmatprep.subr.mxu0 0.0
        %962 = vmatpush1.msra.mxu0 0.0
        %963 = vmatprep.subr.mxu0 0.0
        %964 = vmatpush1.msra.mxu0 0.0
        %965 = vmatprep.subr.mxu0 0.0
        %966 = vmatpush1.msra.mxu0 0.0
        %967 = vmatprep.subr.mxu0 0.0
        %968 = vmatpush1.msra.mxu0 0.0
        %969 = vmatprep.subr.mxu0 0.0
        %970 = vmatpush1.msra.mxu0 0.0
        %971 = vmatprep.subr.mxu0 0.0
        %972 = vmatpush1.msra.mxu0 0.0
        %973 = vmatprep.subr.mxu0 0.0
        %974 = vmatpush1.msra.mxu0 0.0
        %975 = vmatprep.subr.mxu0 0.0
        %976 = vmatpush1.msra.mxu0 0.0
        %977 = vmatprep.subr.mxu0 0.0
        %978 = vmatpush1.msra.mxu0 0.0
        %979 = vmatprep.subr.mxu0 0.0
        %980 = vmatpush1.msra.mxu0 0.0
        %981 = vmatprep.subr.mxu0 0.0
        %982 = vmatpush1.msra.mxu0 0.0
        %983 = vmatprep.subr.mxu0 0.0
        %984 = vmatpush1.msra.mxu0 0.0
        %985 = vmatprep.subr.mxu0 0.0
        %986 = vmatpush1.msra.mxu0 0.0
        %987 = vmatprep.mubr.f32.mxu0 0.0
        %988 = vmatmul.mubr.f32.gmra.mrb[0].mxu0 %v914
        %v989 = vpop.f32.mrb[0].mxu0
        %v990 = vadd.f32 %v399, %v989
        %v991 = vpop.f32.mrb[0].mxu0
        %992 = vmatprep.mubr.f32.mxu0 0.0
        %993 = vmatmul.mubr.f32.gmra.mrb[0].mxu0 %v915
        %v994 = vpop.f32.mrb[0].mxu0
        %v995 = vadd.f32 %v399, %v994
        %v996 = vpop.f32.mrb[0].mxu0
        %997 = vmatprep.mubr.f32.mxu0 0.0
        %998 = vmatmul.mubr.f32.gmra.mrb[0].mxu0 %v916
        %v999 = vpop.f32.mrb[0].mxu0
        %v1000 = vadd.f32 %v399, %v999
        %v1001 = vpop.f32.mrb[0].mxu0
        %1002 = vmatprep.mubr.f32.mxu0 0.0
        %1003 = vmatmul.mubr.f32.gmra.mrb[0].mxu0 %v917
        %v1004 = vpop.f32.mrb[0].mxu0
        %v1005 = vadd.f32 %v399, %v1004
        %v1006 = vpop.f32.mrb[0].mxu0
        %1007 = vmatprep.mubr.f32.mxu0 0.0
        %1008 = vmatmul.mubr.f32.gmra.mrb[0].mxu0 %v918
        %v1009 = vpop.f32.mrb[0].mxu0
        %v1010 = vadd.f32 %v399, %v1009
        %v1011 = vpop.f32.mrb[0].mxu0
        %1012 = vmatprep.mubr.f32.mxu0 0.0
        %1013 = vmatmul.mubr.f32.gmra.mrb[0].mxu0 %v919
        %v1014 = vpop.f32.mrb[0].mxu0
        %v1015 = vadd.f32 %v399, %v1014
        %v1016 = vpop.f32.mrb[0].mxu0
        %1017 = vmatprep.mubr.f32.mxu0 0.0
        %1018 = vmatmul.mubr.f32.gmra.mrb[0].mxu0 %v920
        %v1019 = vpop.f32.mrb[0].mxu0
        %v1020 = vadd.f32 %v399, %v1019
        %v1021 = vpop.f32.mrb[0].mxu0
        %1022 = vmatprep.mubr.f32.mxu0 0.0
        %1023 = vmatmul.mubr.f32.gmra.mrb[0].mxu0 %v921
        %v1024 = vpop.f32.mrb[0].mxu0
        %v1025 = vadd.f32 %v399, %v1024
        %v1026 = vpop.f32.mrb[0].mxu0
        %1027 = vmatprep.mubr.f32.mxu0 0.0
        %1028 = vmatmul.mubr.f32.gmra.mrb[0].mxu0 %v922
        %v1029 = vpop.f32.mrb[0].mxu0
        %v1030 = vadd.f32 %v399, %v1029
        %v1031 = vpop.f32.mrb[0].mxu0
        %1032 = vdwg.mxu0
        %v1033 = vmax.f32 %v990, 0.0
        %v1034 = vmax.f32 %v995, 0.0
        %v1035 = vmax.f32 %v1000, 0.0
        %v1036 = vmax.f32 %v1005, 0.0
        %v1037 = vmax.f32 %v1010, 0.0
        %v1038 = vmax.f32 %v1015, 0.0
        %v1039 = vmax.f32 %v1020, 0.0
        %v1040 = vmax.f32 %v1025, 0.0
        %v1041 = vmax.f32 %v1030, 0.0
        %v1042 = vld [vmem:[%s344 + $0x100] sm:$0xff]
        %v1043 = vld [vmem:[%s344 + $0x108] sm:$0xff]
        %v1044 = vld [vmem:[%s344 + $0x110] sm:$0xff]
        %v1045 = vld [vmem:[%s344 + $0x118] sm:$0xff]
        %v1046 = vld [vmem:[%s344 + $0x120] sm:$0xff]
        %v1047 = vld [vmem:[%s344 + $0x128] sm:$0xff]
        %v1048 = vld [vmem:[%s344 + $0x130] sm:$0xff]
        %v1049 = vld [vmem:[%s344 + $0x138] sm:$0xff]
        %v1050 = vld [vmem:[%s344 + $0x140] sm:$0xf]
        %1052 = vset.pattern.permute.xlu0 0
        %1053 = vperm.xlu0 %1052, %v1042
        %v1054 = vpop.permute.xlu0 %1053
        %1057 = vset.pattern.permute.xlu0 0
        %1058 = vperm.xlu0 %1057, %v1043
        %v1059 = vpop.permute.xlu0 %1058
        %1062 = vset.pattern.permute.xlu0 0
        %1063 = vperm.xlu0 %1062, %v1044
        %v1064 = vpop.permute.xlu0 %1063
        %1067 = vset.pattern.permute.xlu0 0
        %1068 = vperm.xlu0 %1067, %v1045
        %v1069 = vpop.permute.xlu0 %1068
        %1072 = vset.pattern.permute.xlu0 0
        %1073 = vperm.xlu0 %1072, %v1046
        %v1074 = vpop.permute.xlu0 %1073
        %1077 = vset.pattern.permute.xlu0 0
        %1078 = vperm.xlu0 %1077, %v1047
        %v1079 = vpop.permute.xlu0 %1078
        %1082 = vset.pattern.permute.xlu0 0
        %1083 = vperm.xlu0 %1082, %v1048
        %v1084 = vpop.permute.xlu0 %1083
        %1087 = vset.pattern.permute.xlu0 0
        %1088 = vperm.xlu0 %1087, %v1049
        %v1089 = vpop.permute.xlu0 %1088
        %1092 = vset.pattern.permute.xlu0 0
        %1093 = vperm.xlu0 %1092, %v1050
        %v1094 = vpop.permute.xlu0 %1093
        %v1096 = vmul.f32 %v1033, %v1054
        %v1097 = vmul.f32 %v1034, %v1059
        %v1098 = vmul.f32 %v1035, %v1064
        %v1099 = vmul.f32 %v1036, %v1069
        %v1100 = vmul.f32 %v1037, %v1074
        %v1101 = vmul.f32 %v1038, %v1079
        %v1102 = vmul.f32 %v1039, %v1084
        %v1103 = vmul.f32 %v1040, %v1089
        %v1104 = vmul.f32 %v1041, %v1094
        %1105 = vst [vmem:[#allocation2 + $0x100] sm:$0xff] %v1096
        %1106 = vst [vmem:[#allocation2 + $0x108] sm:$0xff] %v1097
        %1107 = vst [vmem:[#allocation2 + $0x110] sm:$0xff] %v1098
        %1108 = vst [vmem:[#allocation2 + $0x118] sm:$0xff] %v1099
        %1109 = vst [vmem:[#allocation2 + $0x120] sm:$0xff] %v1100
        %1110 = vst [vmem:[#allocation2 + $0x128] sm:$0xff] %v1101
        %1111 = vst [vmem:[#allocation2 + $0x130] sm:$0xff] %v1102
        %1112 = vst [vmem:[#allocation2 + $0x138] sm:$0xff] %v1103
        %1113 = vst [vmem:[#allocation2 + $0x140] sm:$0xf] %v1104
        %1114 = vst [vmem:[#allocation2 + $0x144] sm:$0xf] 0.0
        %v1115 = vld [vmem:[%s6] sm:$0xff]
        %v1116 = vld [vmem:[%s6 + $0x8] sm:$0xff]
        %v1117 = vld [vmem:[%s6 + $0x10] sm:$0xff]
        %v1118 = vld [vmem:[%s6 + $0x18] sm:$0xff]
        %v1119 = vld [vmem:[%s6 + $0x20] sm:$0xff]
        %v1120 = vld [vmem:[%s6 + $0x28] sm:$0xff]
        %v1121 = vld [vmem:[%s6 + $0x30] sm:$0xff]
        %v1122 = vld [vmem:[%s6 + $0x38] sm:$0xff]
        %v1123 = vld [vmem:[%s6 + $0x40] sm:$0xff]
        %v1124 = vld [vmem:[%s6 + $0x48] sm:$0xff]
        %v1125 = vld [vmem:[%s6 + $0x50] sm:$0xff]
        %v1126 = vld [vmem:[%s6 + $0x58] sm:$0xff]
        %v1127 = vld [vmem:[%s6 + $0x60] sm:$0xff]
        %v1128 = vld [vmem:[%s6 + $0x68] sm:$0xff]
        %v1129 = vld [vmem:[%s6 + $0x70] sm:$0xff]
        %v1130 = vld [vmem:[%s6 + $0x78] sm:$0xff]
        %v1131 = vld [vmem:[%s5] sm:$0x1]
        %v1132 = vld [vmem:[%s7] sm:$0x1]
        %v1133 = vld [vmem:[#allocation2] sm:$0xff]
        %v1134 = vld [vmem:[#allocation2 + $0x8] sm:$0xff]
        %v1135 = vld [vmem:[#allocation2 + $0x10] sm:$0xff]
        %v1136 = vld [vmem:[#allocation2 + $0x18] sm:$0xff]
        %v1137 = vld [vmem:[#allocation2 + $0x20] sm:$0xff]
        %v1138 = vld [vmem:[#allocation2 + $0x28] sm:$0xff]
        %v1139 = vld [vmem:[#allocation2 + $0x30] sm:$0xff]
        %v1140 = vld [vmem:[#allocation2 + $0x38] sm:$0xff]
        %v1141 = vld [vmem:[#allocation2 + $0x40] sm:$0xff]
        %v1142 = vld [vmem:[#allocation2 + $0x48] sm:$0xff]
        %v1143 = vld [vmem:[#allocation2 + $0x50] sm:$0xff]
        %v1144 = vld [vmem:[#allocation2 + $0x58] sm:$0xff]
        %v1145 = vld [vmem:[#allocation2 + $0x60] sm:$0xff]
        %v1146 = vld [vmem:[#allocation2 + $0x68] sm:$0xff]
        %v1147 = vld [vmem:[#allocation2 + $0x70] sm:$0xff]
        %v1148 = vld [vmem:[#allocation2 + $0x78] sm:$0xff]
        %v1149 = vld [vmem:[#allocation2 + $0x80] sm:$0xff]
        %v1150 = vld [vmem:[#allocation2 + $0x88] sm:$0xff]
        %v1151 = vld [vmem:[#allocation2 + $0x90] sm:$0xff]
        %v1152 = vld [vmem:[#allocation2 + $0x98] sm:$0xff]
        %v1153 = vld [vmem:[#allocation2 + $0xa0] sm:$0xff]
        %v1154 = vld [vmem:[#allocation2 + $0xa8] sm:$0xff]
        %v1155 = vld [vmem:[#allocation2 + $0xb0] sm:$0xff]
        %v1156 = vld [vmem:[#allocation2 + $0xb8] sm:$0xff]
        %v1157 = vld [vmem:[#allocation2 + $0xc0] sm:$0xff]
        %v1158 = vld [vmem:[#allocation2 + $0xc8] sm:$0xff]
        %v1159 = vld [vmem:[#allocation2 + $0xd0] sm:$0xff]
        %v1160 = vld [vmem:[#allocation2 + $0xd8] sm:$0xff]
        %v1161 = vld [vmem:[#allocation2 + $0xe0] sm:$0xff]
        %v1162 = vld [vmem:[#allocation2 + $0xe8] sm:$0xff]
        %v1163 = vld [vmem:[#allocation2 + $0xf0] sm:$0xff]
        %v1164 = vld [vmem:[#allocation2 + $0xf8] sm:$0xff]
        %v1165 = vld [vmem:[%s4] sm:$0xff]
        %v1166 = vld [vmem:[%s4 + $0x8] sm:$0xff]
        %v1167 = vld [vmem:[%s4 + $0x10] sm:$0xff]
        %v1168 = vld [vmem:[%s4 + $0x18] sm:$0xff]
        %v1169 = vld [vmem:[%s4 + $0x20] sm:$0xff]
        %v1170 = vld [vmem:[%s4 + $0x28] sm:$0xff]
        %v1171 = vld [vmem:[%s4 + $0x30] sm:$0xff]
        %v1172 = vld [vmem:[%s4 + $0x38] sm:$0xff]
        %v1173 = vld [vmem:[%s4 + $0x40] sm:$0xff]
        %v1174 = vld [vmem:[%s4 + $0x48] sm:$0xff]
        %v1175 = vld [vmem:[%s4 + $0x50] sm:$0xff]
        %v1176 = vld [vmem:[%s4 + $0x58] sm:$0xff]
        %v1177 = vld [vmem:[%s4 + $0x60] sm:$0xff]
        %v1178 = vld [vmem:[%s4 + $0x68] sm:$0xff]
        %v1179 = vld [vmem:[%s4 + $0x70] sm:$0xff]
        %v1180 = vld [vmem:[%s4 + $0x78] sm:$0xff]
        %v1181 = vld [vmem:[#allocation2 + $0x1] sm:$0xff]
        %v1182 = vld [vmem:[#allocation2 + $0x9] sm:$0xff]
        %v1183 = vld [vmem:[#allocation2 + $0x11] sm:$0xff]
        %v1184 = vld [vmem:[#allocation2 + $0x19] sm:$0xff]
        %v1185 = vld [vmem:[#allocation2 + $0x21] sm:$0xff]
        %v1186 = vld [vmem:[#allocation2 + $0x29] sm:$0xff]
        %v1187 = vld [vmem:[#allocation2 + $0x31] sm:$0xff]
        %v1188 = vld [vmem:[#allocation2 + $0x39] sm:$0xff]
        %v1189 = vld [vmem:[#allocation2 + $0x41] sm:$0xff]
        %v1190 = vld [vmem:[#allocation2 + $0x49] sm:$0xff]
        %v1191 = vld [vmem:[#allocation2 + $0x51] sm:$0xff]
        %v1192 = vld [vmem:[#allocation2 + $0x59] sm:$0xff]
        %v1193 = vld [vmem:[#allocation2 + $0x61] sm:$0xff]
        %v1194 = vld [vmem:[#allocation2 + $0x69] sm:$0xff]
        %v1195 = vld [vmem:[#allocation2 + $0x71] sm:$0xff]
        %v1196 = vld [vmem:[#allocation2 + $0x79] sm:$0xff]
        %v1197 = vld [vmem:[#allocation2 + $0x81] sm:$0xff]
        %v1198 = vld [vmem:[#allocation2 + $0x89] sm:$0xff]
        %v1199 = vld [vmem:[#allocation2 + $0x91] sm:$0xff]
        %v1200 = vld [vmem:[#allocation2 + $0x99] sm:$0xff]
        %v1201 = vld [vmem:[#allocation2 + $0xa1] sm:$0xff]
        %v1202 = vld [vmem:[#allocation2 + $0xa9] sm:$0xff]
        %v1203 = vld [vmem:[#allocation2 + $0xb1] sm:$0xff]
        %v1204 = vld [vmem:[#allocation2 + $0xb9] sm:$0xff]
        %v1205 = vld [vmem:[#allocation2 + $0xc1] sm:$0xff]
        %v1206 = vld [vmem:[#allocation2 + $0xc9] sm:$0xff]
        %v1207 = vld [vmem:[#allocation2 + $0xd1] sm:$0xff]
        %v1208 = vld [vmem:[#allocation2 + $0xd9] sm:$0xff]
        %v1209 = vld [vmem:[#allocation2 + $0xe1] sm:$0xff]
        %v1210 = vld [vmem:[#allocation2 + $0xe9] sm:$0xff]
        %v1211 = vld [vmem:[#allocation2 + $0xf1] sm:$0xff]
        %v1212 = vld [vmem:[#allocation2 + $0xf9] sm:$0xff]
        %s1213 = scalar_lea.vmem %s4, 128
        %v1214 = vld [vmem:[%s1213] sm:$0xff]
        %v1215 = vld [vmem:[%s1213 + $0x8] sm:$0xff]
        %v1216 = vld [vmem:[%s1213 + $0x10] sm:$0xff]
        %v1217 = vld [vmem:[%s1213 + $0x18] sm:$0xff]
        %v1218 = vld [vmem:[%s1213 + $0x20] sm:$0xff]
        %v1219 = vld [vmem:[%s1213 + $0x28] sm:$0xff]
        %v1220 = vld [vmem:[%s1213 + $0x30] sm:$0xff]
        %v1221 = vld [vmem:[%s1213 + $0x38] sm:$0xff]
        %v1222 = vld [vmem:[%s1213 + $0x40] sm:$0xff]
        %v1223 = vld [vmem:[%s1213 + $0x48] sm:$0xff]
        %v1224 = vld [vmem:[%s1213 + $0x50] sm:$0xff]
        %v1225 = vld [vmem:[%s1213 + $0x58] sm:$0xff]
        %v1226 = vld [vmem:[%s1213 + $0x60] sm:$0xff]
        %v1227 = vld [vmem:[%s1213 + $0x68] sm:$0xff]
        %v1228 = vld [vmem:[%s1213 + $0x70] sm:$0xff]
        %v1229 = vld [vmem:[%s1213 + $0x78] sm:$0xff]
        %1230 = vmatprep.subr.mxu0 0.0
        %1231 = vmatpush1.msra.mxu0 %v1214
        %1232 = vmatprep.subr.mxu0 0.0
        %1233 = vmatpush1.msra.mxu0 %v1215
        %1234 = vmatprep.subr.mxu0 0.0
        %1235 = vmatpush1.msra.mxu0 %v1216
        %1236 = vmatprep.subr.mxu0 0.0
        %1237 = vmatpush1.msra.mxu0 %v1217
        %1238 = vmatprep.subr.mxu0 0.0
        %1239 = vmatpush1.msra.mxu0 %v1218
        %1240 = vmatprep.subr.mxu0 0.0
        %1241 = vmatpush1.msra.mxu0 %v1219
        %1242 = vmatprep.subr.mxu0 0.0
        %1243 = vmatpush1.msra.mxu0 %v1220
        %1244 = vmatprep.subr.mxu0 0.0
        %1245 = vmatpush1.msra.mxu0 %v1221
        %1246 = vmatprep.subr.mxu0 0.0
        %1247 = vmatpush1.msra.mxu0 %v1222
        %1248 = vmatprep.subr.mxu0 0.0
        %1249 = vmatpush1.msra.mxu0 %v1223
        %1250 = vmatprep.subr.mxu0 0.0
        %1251 = vmatpush1.msra.mxu0 %v1224
        %1252 = vmatprep.subr.mxu0 0.0
        %1253 = vmatpush1.msra.mxu0 %v1225
        %1254 = vmatprep.subr.mxu0 0.0
        %1255 = vmatpush1.msra.mxu0 %v1226
        %1256 = vmatprep.subr.mxu0 0.0
        %1257 = vmatpush1.msra.mxu0 %v1227
        %1258 = vmatprep.subr.mxu0 0.0
        %1259 = vmatpush1.msra.mxu0 %v1228
        %1260 = vmatprep.subr.mxu0 0.0
        %1261 = vmatpush1.msra.mxu0 %v1229
        %1262 = vmatprep.subr.mxu0 0.0
        %1263 = vmatpush1.msra.mxu0 0.0
        %1264 = vmatprep.subr.mxu0 0.0
        %1265 = vmatpush1.msra.mxu0 0.0
        %1266 = vmatprep.subr.mxu0 0.0
        %1267 = vmatpush1.msra.mxu0 0.0
        %1268 = vmatprep.subr.mxu0 0.0
        %1269 = vmatpush1.msra.mxu0 0.0
        %1270 = vmatprep.subr.mxu0 0.0
        %1271 = vmatpush1.msra.mxu0 0.0
        %1272 = vmatprep.subr.mxu0 0.0
        %1273 = vmatpush1.msra.mxu0 0.0
        %1274 = vmatprep.subr.mxu0 0.0
        %1275 = vmatpush1.msra.mxu0 0.0
        %1276 = vmatprep.subr.mxu0 0.0
        %1277 = vmatpush1.msra.mxu0 0.0
        %1278 = vmatprep.subr.mxu0 0.0
        %1279 = vmatpush1.msra.mxu0 0.0
        %1280 = vmatprep.subr.mxu0 0.0
        %1281 = vmatpush1.msra.mxu0 0.0
        %1282 = vmatprep.subr.mxu0 0.0
        %1283 = vmatpush1.msra.mxu0 0.0
        %1284 = vmatprep.subr.mxu0 0.0
        %1285 = vmatpush1.msra.mxu0 0.0
        %1286 = vmatprep.subr.mxu0 0.0
        %1287 = vmatpush1.msra.mxu0 0.0
        %1288 = vmatprep.subr.mxu0 0.0
        %1289 = vmatpush1.msra.mxu0 0.0
        %1290 = vmatprep.subr.mxu0 0.0
        %1291 = vmatpush1.msra.mxu0 0.0
        %1292 = vmatprep.subr.mxu0 0.0
        %1293 = vmatpush1.msra.mxu0 0.0
        %1294 = vmatprep.mubr.f32.mxu0 0.0
        %1295 = vmatmul.mubr.f32.gmra.mrb[0].mxu0 %v1181
        %v1296 = vpop.f32.mrb[0].mxu0
        %v1297 = vadd.f32 0.0, %v1296
        %v1298 = vpop.f32.mrb[0].mxu0
        %1299 = vmatprep.mubr.f32.mxu0 0.0
        %1300 = vmatmul.mubr.f32.gmra.mrb[0].mxu0 %v1182
        %v1301 = vpop.f32.mrb[0].mxu0
        %v1302 = vadd.f32 0.0, %v1301
        %v1303 = vpop.f32.mrb[0].mxu0
        %1304 = vmatprep.mubr.f32.mxu0 0.0
        %1305 = vmatmul.mubr.f32.gmra.mrb[0].mxu0 %v1183
        %v1306 = vpop.f32.mrb[0].mxu0
        %v1307 = vadd.f32 0.0, %v1306
        %v1308 = vpop.f32.mrb[0].mxu0
        %1309 = vmatprep.mubr.f32.mxu0 0.0
        %1310 = vmatmul.mubr.f32.gmra.mrb[0].mxu0 %v1184
        %v1311 = vpop.f32.mrb[0].mxu0
        %v1312 = vadd.f32 0.0, %v1311
        %v1313 = vpop.f32.mrb[0].mxu0
        %1314 = vmatprep.mubr.f32.mxu0 0.0
        %1315 = vmatmul.mubr.f32.gmra.mrb[0].mxu0 %v1185
        %v1316 = vpop.f32.mrb[0].mxu0
        %v1317 = vadd.f32 0.0, %v1316
        %v1318 = vpop.f32.mrb[0].mxu0
        %1319 = vmatprep.mubr.f32.mxu0 0.0
        %1320 = vmatmul.mubr.f32.gmra.mrb[0].mxu0 %v1186
        %v1321 = vpop.f32.mrb[0].mxu0
        %v1322 = vadd.f32 0.0, %v1321
        %v1323 = vpop.f32.mrb[0].mxu0
        %1324 = vmatprep.mubr.f32.mxu0 0.0
        %1325 = vmatmul.mubr.f32.gmra.mrb[0].mxu0 %v1187
        %v1326 = vpop.f32.mrb[0].mxu0
        %v1327 = vadd.f32 0.0, %v1326
        %v1328 = vpop.f32.mrb[0].mxu0
        %1329 = vmatprep.mubr.f32.mxu0 0.0
        %1330 = vmatmul.mubr.f32.gmra.mrb[0].mxu0 %v1188
        %v1331 = vpop.f32.mrb[0].mxu0
        %v1332 = vadd.f32 0.0, %v1331
        %v1333 = vpop.f32.mrb[0].mxu0
        %1334 = vmatprep.mubr.f32.mxu0 0.0
        %1335 = vmatmul.mubr.f32.gmra.mrb[0].mxu0 %v1189
        %v1336 = vpop.f32.mrb[0].mxu0
        %v1337 = vadd.f32 0.0, %v1336
        %v1338 = vpop.f32.mrb[0].mxu0
        %1339 = vmatprep.mubr.f32.mxu0 0.0
        %1340 = vmatmul.mubr.f32.gmra.mrb[0].mxu0 %v1190
        %v1341 = vpop.f32.mrb[0].mxu0
        %v1342 = vadd.f32 0.0, %v1341
        %v1343 = vpop.f32.mrb[0].mxu0
        %1344 = vmatprep.mubr.f32.mxu0 0.0
        %1345 = vmatmul.mubr.f32.gmra.mrb[0].mxu0 %v1191
        %v1346 = vpop.f32.mrb[0].mxu0
        %v1347 = vadd.f32 0.0, %v1346
        %v1348 = vpop.f32.mrb[0].mxu0
        %1349 = vmatprep.mubr.f32.mxu0 0.0
        %1350 = vmatmul.mubr.f32.gmra.mrb[0].mxu0 %v1192
        %v1351 = vpop.f32.mrb[0].mxu0
        %v1352 = vadd.f32 0.0, %v1351
        %v1353 = vpop.f32.mrb[0].mxu0
        %1354 = vmatprep.mubr.f32.mxu0 0.0
        %1355 = vmatmul.mubr.f32.gmra.mrb[0].mxu0 %v1193
        %v1356 = vpop.f32.mrb[0].mxu0
        %v1357 = vadd.f32 0.0, %v1356
        %v1358 = vpop.f32.mrb[0].mxu0
        %1359 = vmatprep.mubr.f32.mxu0 0.0
        %1360 = vmatmul.mubr.f32.gmra.mrb[0].mxu0 %v1194
        %v1361 = vpop.f32.mrb[0].mxu0
        %v1362 = vadd.f32 0.0, %v1361
        %v1363 = vpop.f32.mrb[0].mxu0
        %1364 = vmatprep.mubr.f32.mxu0 0.0
        %1365 = vmatmul.mubr.f32.gmra.mrb[0].mxu0 %v1195
        %v1366 = vpop.f32.mrb[0].mxu0
        %v1367 = vadd.f32 0.0, %v1366
        %v1368 = vpop.f32.mrb[0].mxu0
        %1369 = vmatprep.mubr.f32.mxu0 0.0
        %1370 = vmatmul.mubr.f32.gmra.mrb[0].mxu0 %v1196
        %v1371 = vpop.f32.mrb[0].mxu0
        %v1372 = vadd.f32 0.0, %v1371
        %v1373 = vpop.f32.mrb[0].mxu0
        %1374 = vmatprep.mubr.f32.mxu0 0.0
        %1375 = vmatmul.mubr.f32.gmra.mrb[0].mxu0 %v1197
        %v1376 = vpop.f32.mrb[0].mxu0
        %v1377 = vadd.f32 0.0, %v1376
        %v1378 = vpop.f32.mrb[0].mxu0
        %1379 = vmatprep.mubr.f32.mxu0 0.0
        %1380 = vmatmul.mubr.f32.gmra.mrb[0].mxu0 %v1198
        %v1381 = vpop.f32.mrb[0].mxu0
        %v1382 = vadd.f32 0.0, %v1381
        %v1383 = vpop.f32.mrb[0].mxu0
        %1384 = vmatprep.mubr.f32.mxu0 0.0
        %1385 = vmatmul.mubr.f32.gmra.mrb[0].mxu0 %v1199
        %v1386 = vpop.f32.mrb[0].mxu0
        %v1387 = vadd.f32 0.0, %v1386
        %v1388 = vpop.f32.mrb[0].mxu0
        %1389 = vmatprep.mubr.f32.mxu0 0.0
        %1390 = vmatmul.mubr.f32.gmra.mrb[0].mxu0 %v1200
        %v1391 = vpop.f32.mrb[0].mxu0
        %v1392 = vadd.f32 0.0, %v1391
        %v1393 = vpop.f32.mrb[0].mxu0
        %1394 = vmatprep.mubr.f32.mxu0 0.0
        %1395 = vmatmul.mubr.f32.gmra.mrb[0].mxu0 %v1201
        %v1396 = vpop.f32.mrb[0].mxu0
        %v1397 = vadd.f32 0.0, %v1396
        %v1398 = vpop.f32.mrb[0].mxu0
        %1399 = vmatprep.mubr.f32.mxu0 0.0
        %1400 = vmatmul.mubr.f32.gmra.mrb[0].mxu0 %v1202
        %v1401 = vpop.f32.mrb[0].mxu0
        %v1402 = vadd.f32 0.0, %v1401
        %v1403 = vpop.f32.mrb[0].mxu0
        %1404 = vmatprep.mubr.f32.mxu0 0.0
        %1405 = vmatmul.mubr.f32.gmra.mrb[0].mxu0 %v1203
        %v1406 = vpop.f32.mrb[0].mxu0
        %v1407 = vadd.f32 0.0, %v1406
        %v1408 = vpop.f32.mrb[0].mxu0
        %1409 = vmatprep.mubr.f32.mxu0 0.0
        %1410 = vmatmul.mubr.f32.gmra.mrb[0].mxu0 %v1204
        %v1411 = vpop.f32.mrb[0].mxu0
        %v1412 = vadd.f32 0.0, %v1411
        %v1413 = vpop.f32.mrb[0].mxu0
        %1414 = vmatprep.mubr.f32.mxu0 0.0
        %1415 = vmatmul.mubr.f32.gmra.mrb[0].mxu0 %v1205
        %v1416 = vpop.f32.mrb[0].mxu0
        %v1417 = vadd.f32 0.0, %v1416
        %v1418 = vpop.f32.mrb[0].mxu0
        %1419 = vmatprep.mubr.f32.mxu0 0.0
        %1420 = vmatmul.mubr.f32.gmra.mrb[0].mxu0 %v1206
        %v1421 = vpop.f32.mrb[0].mxu0
        %v1422 = vadd.f32 0.0, %v1421
        %v1423 = vpop.f32.mrb[0].mxu0
        %1424 = vmatprep.mubr.f32.mxu0 0.0
        %1425 = vmatmul.mubr.f32.gmra.mrb[0].mxu0 %v1207
        %v1426 = vpop.f32.mrb[0].mxu0
        %v1427 = vadd.f32 0.0, %v1426
        %v1428 = vpop.f32.mrb[0].mxu0
        %1429 = vmatprep.mubr.f32.mxu0 0.0
        %1430 = vmatmul.mubr.f32.gmra.mrb[0].mxu0 %v1208
        %v1431 = vpop.f32.mrb[0].mxu0
        %v1432 = vadd.f32 0.0, %v1431
        %v1433 = vpop.f32.mrb[0].mxu0
        %1434 = vmatprep.mubr.f32.mxu0 0.0
        %1435 = vmatmul.mubr.f32.gmra.mrb[0].mxu0 %v1209
        %v1436 = vpop.f32.mrb[0].mxu0
        %v1437 = vadd.f32 0.0, %v1436
        %v1438 = vpop.f32.mrb[0].mxu0
        %1439 = vmatprep.mubr.f32.mxu0 0.0
        %1440 = vmatmul.mubr.f32.gmra.mrb[0].mxu0 %v1210
        %v1441 = vpop.f32.mrb[0].mxu0
        %v1442 = vadd.f32 0.0, %v1441
        %v1443 = vpop.f32.mrb[0].mxu0
        %1444 = vmatprep.mubr.f32.mxu0 0.0
        %1445 = vmatmul.mubr.f32.gmra.mrb[0].mxu0 %v1211
        %v1446 = vpop.f32.mrb[0].mxu0
        %v1447 = vadd.f32 0.0, %v1446
        %v1448 = vpop.f32.mrb[0].mxu0
        %1449 = vmatprep.mubr.f32.mxu0 0.0
        %1450 = vmatmul.mubr.f32.gmra.mrb[0].mxu0 %v1212
        %v1451 = vpop.f32.mrb[0].mxu0
        %v1452 = vadd.f32 0.0, %v1451
        %v1453 = vpop.f32.mrb[0].mxu0
        %1454 = vdwg.mxu0
        %1455 = vmatprep.subr.mxu0 0.0
        %1456 = vmatpush1.msra.mxu0 %v1165
        %1457 = vmatprep.subr.mxu0 0.0
        %1458 = vmatpush1.msra.mxu0 %v1166
        %1459 = vmatprep.subr.mxu0 0.0
        %1460 = vmatpush1.msra.mxu0 %v1167
        %1461 = vmatprep.subr.mxu0 0.0
        %1462 = vmatpush1.msra.mxu0 %v1168
        %1463 = vmatprep.subr.mxu0 0.0
        %1464 = vmatpush1.msra.mxu0 %v1169
        %1465 = vmatprep.subr.mxu0 0.0
        %1466 = vmatpush1.msra.mxu0 %v1170
        %1467 = vmatprep.subr.mxu0 0.0
        %1468 = vmatpush1.msra.mxu0 %v1171
        %1469 = vmatprep.subr.mxu0 0.0
        %1470 = vmatpush1.msra.mxu0 %v1172
        %1471 = vmatprep.subr.mxu0 0.0
        %1472 = vmatpush1.msra.mxu0 %v1173
        %1473 = vmatprep.subr.mxu0 0.0
        %1474 = vmatpush1.msra.mxu0 %v1174
        %1475 = vmatprep.subr.mxu0 0.0
        %1476 = vmatpush1.msra.mxu0 %v1175
        %1477 = vmatprep.subr.mxu0 0.0
        %1478 = vmatpush1.msra.mxu0 %v1176
        %1479 = vmatprep.subr.mxu0 0.0
        %1480 = vmatpush1.msra.mxu0 %v1177
        %1481 = vmatprep.subr.mxu0 0.0
        %1482 = vmatpush1.msra.mxu0 %v1178
        %1483 = vmatprep.subr.mxu0 0.0
        %1484 = vmatpush1.msra.mxu0 %v1179
        %1485 = vmatprep.subr.mxu0 0.0
        %1486 = vmatpush1.msra.mxu0 %v1180
        %1487 = vmatprep.subr.mxu0 0.0
        %1488 = vmatpush1.msra.mxu0 0.0
        %1489 = vmatprep.subr.mxu0 0.0
        %1490 = vmatpush1.msra.mxu0 0.0
        %1491 = vmatprep.subr.mxu0 0.0
        %1492 = vmatpush1.msra.mxu0 0.0
        %1493 = vmatprep.subr.mxu0 0.0
        %1494 = vmatpush1.msra.mxu0 0.0
        %1495 = vmatprep.subr.mxu0 0.0
        %1496 = vmatpush1.msra.mxu0 0.0
        %1497 = vmatprep.subr.mxu0 0.0
        %1498 = vmatpush1.msra.mxu0 0.0
        %1499 = vmatprep.subr.mxu0 0.0
        %1500 = vmatpush1.msra.mxu0 0.0
        %1501 = vmatprep.subr.mxu0 0.0
        %1502 = vmatpush1.msra.mxu0 0.0
        %1503 = vmatprep.subr.mxu0 0.0
        %1504 = vmatpush1.msra.mxu0 0.0
        %1505 = vmatprep.subr.mxu0 0.0
        %1506 = vmatpush1.msra.mxu0 0.0
        %1507 = vmatprep.subr.mxu0 0.0
        %1508 = vmatpush1.msra.mxu0 0.0
        %1509 = vmatprep.subr.mxu0 0.0
        %1510 = vmatpush1.msra.mxu0 0.0
        %1511 = vmatprep.subr.mxu0 0.0
        %1512 = vmatpush1.msra.mxu0 0.0
        %1513 = vmatprep.subr.mxu0 0.0
        %1514 = vmatpush1.msra.mxu0 0.0
        %1515 = vmatprep.subr.mxu0 0.0
        %1516 = vmatpush1.msra.mxu0 0.0
        %1517 = vmatprep.subr.mxu0 0.0
        %1518 = vmatpush1.msra.mxu0 0.0
        %1519 = vmatprep.mubr.f32.mxu0 0.0
        %1520 = vmatmul.mubr.f32.gmra.mrb[0].mxu0 %v1133
        %v1521 = vpop.f32.mrb[0].mxu0
        %v1522 = vadd.f32 %v1297, %v1521
        %v1523 = vpop.f32.mrb[0].mxu0
        %1524 = vmatprep.mubr.f32.mxu0 0.0
        %1525 = vmatmul.mubr.f32.gmra.mrb[0].mxu0 %v1134
        %v1526 = vpop.f32.mrb[0].mxu0
        %v1527 = vadd.f32 %v1302, %v1526
        %v1528 = vpop.f32.mrb[0].mxu0
        %1529 = vmatprep.mubr.f32.mxu0 0.0
        %1530 = vmatmul.mubr.f32.gmra.mrb[0].mxu0 %v1135
        %v1531 = vpop.f32.mrb[0].mxu0
        %v1532 = vadd.f32 %v1307, %v1531
        %v1533 = vpop.f32.mrb[0].mxu0
        %1534 = vmatprep.mubr.f32.mxu0 0.0
        %1535 = vmatmul.mubr.f32.gmra.mrb[0].mxu0 %v1136
        %v1536 = vpop.f32.mrb[0].mxu0
        %v1537 = vadd.f32 %v1312, %v1536
        %v1538 = vpop.f32.mrb[0].mxu0
        %1539 = vmatprep.mubr.f32.mxu0 0.0
        %1540 = vmatmul.mubr.f32.gmra.mrb[0].mxu0 %v1137
        %v1541 = vpop.f32.mrb[0].mxu0
        %v1542 = vadd.f32 %v1317, %v1541
        %v1543 = vpop.f32.mrb[0].mxu0
        %1544 = vmatprep.mubr.f32.mxu0 0.0
        %1545 = vmatmul.mubr.f32.gmra.mrb[0].mxu0 %v1138
        %v1546 = vpop.f32.mrb[0].mxu0
        %v1547 = vadd.f32 %v1322, %v1546
        %v1548 = vpop.f32.mrb[0].mxu0
        %1549 = vmatprep.mubr.f32.mxu0 0.0
        %1550 = vmatmul.mubr.f32.gmra.mrb[0].mxu0 %v1139
        %v1551 = vpop.f32.mrb[0].mxu0
        %v1552 = vadd.f32 %v1327, %v1551
        %v1553 = vpop.f32.mrb[0].mxu0
        %1554 = vmatprep.mubr.f32.mxu0 0.0
        %1555 = vmatmul.mubr.f32.gmra.mrb[0].mxu0 %v1140
        %v1556 = vpop.f32.mrb[0].mxu0
        %v1557 = vadd.f32 %v1332, %v1556
        %v1558 = vpop.f32.mrb[0].mxu0
        %1559 = vmatprep.mubr.f32.mxu0 0.0
        %1560 = vmatmul.mubr.f32.gmra.mrb[0].mxu0 %v1141
        %v1561 = vpop.f32.mrb[0].mxu0
        %v1562 = vadd.f32 %v1337, %v1561
        %v1563 = vpop.f32.mrb[0].mxu0
        %1564 = vmatprep.mubr.f32.mxu0 0.0
        %1565 = vmatmul.mubr.f32.gmra.mrb[0].mxu0 %v1142
        %v1566 = vpop.f32.mrb[0].mxu0
        %v1567 = vadd.f32 %v1342, %v1566
        %v1568 = vpop.f32.mrb[0].mxu0
        %1569 = vmatprep.mubr.f32.mxu0 0.0
        %1570 = vmatmul.mubr.f32.gmra.mrb[0].mxu0 %v1143
        %v1571 = vpop.f32.mrb[0].mxu0
        %v1572 = vadd.f32 %v1347, %v1571
        %v1573 = vpop.f32.mrb[0].mxu0
        %1574 = vmatprep.mubr.f32.mxu0 0.0
        %1575 = vmatmul.mubr.f32.gmra.mrb[0].mxu0 %v1144
        %v1576 = vpop.f32.mrb[0].mxu0
        %v1577 = vadd.f32 %v1352, %v1576
        %v1578 = vpop.f32.mrb[0].mxu0
        %1579 = vmatprep.mubr.f32.mxu0 0.0
        %1580 = vmatmul.mubr.f32.gmra.mrb[0].mxu0 %v1145
        %v1581 = vpop.f32.mrb[0].mxu0
        %v1582 = vadd.f32 %v1357, %v1581
        %v1583 = vpop.f32.mrb[0].mxu0
        %1584 = vmatprep.mubr.f32.mxu0 0.0
        %1585 = vmatmul.mubr.f32.gmra.mrb[0].mxu0 %v1146
        %v1586 = vpop.f32.mrb[0].mxu0
        %v1587 = vadd.f32 %v1362, %v1586
        %v1588 = vpop.f32.mrb[0].mxu0
        %1589 = vmatprep.mubr.f32.mxu0 0.0
        %1590 = vmatmul.mubr.f32.gmra.mrb[0].mxu0 %v1147
        %v1591 = vpop.f32.mrb[0].mxu0
        %v1592 = vadd.f32 %v1367, %v1591
        %v1593 = vpop.f32.mrb[0].mxu0
        %1594 = vmatprep.mubr.f32.mxu0 0.0
        %1595 = vmatmul.mubr.f32.gmra.mrb[0].mxu0 %v1148
        %v1596 = vpop.f32.mrb[0].mxu0
        %v1597 = vadd.f32 %v1372, %v1596
        %v1598 = vpop.f32.mrb[0].mxu0
        %1599 = vmatprep.mubr.f32.mxu0 0.0
        %1600 = vmatmul.mubr.f32.gmra.mrb[0].mxu0 %v1149
        %v1601 = vpop.f32.mrb[0].mxu0
        %v1602 = vadd.f32 %v1377, %v1601
        %v1603 = vpop.f32.mrb[0].mxu0
        %1604 = vmatprep.mubr.f32.mxu0 0.0
        %1605 = vmatmul.mubr.f32.gmra.mrb[0].mxu0 %v1150
        %v1606 = vpop.f32.mrb[0].mxu0
        %v1607 = vadd.f32 %v1382, %v1606
        %v1608 = vpop.f32.mrb[0].mxu0
        %1609 = vmatprep.mubr.f32.mxu0 0.0
        %1610 = vmatmul.mubr.f32.gmra.mrb[0].mxu0 %v1151
        %v1611 = vpop.f32.mrb[0].mxu0
        %v1612 = vadd.f32 %v1387, %v1611
        %v1613 = vpop.f32.mrb[0].mxu0
        %1614 = vmatprep.mubr.f32.mxu0 0.0
        %1615 = vmatmul.mubr.f32.gmra.mrb[0].mxu0 %v1152
        %v1616 = vpop.f32.mrb[0].mxu0
        %v1617 = vadd.f32 %v1392, %v1616
        %v1618 = vpop.f32.mrb[0].mxu0
        %1619 = vmatprep.mubr.f32.mxu0 0.0
        %1620 = vmatmul.mubr.f32.gmra.mrb[0].mxu0 %v1153
        %v1621 = vpop.f32.mrb[0].mxu0
        %v1622 = vadd.f32 %v1397, %v1621
        %v1623 = vpop.f32.mrb[0].mxu0
        %1624 = vmatprep.mubr.f32.mxu0 0.0
        %1625 = vmatmul.mubr.f32.gmra.mrb[0].mxu0 %v1154
        %v1626 = vpop.f32.mrb[0].mxu0
        %v1627 = vadd.f32 %v1402, %v1626
        %v1628 = vpop.f32.mrb[0].mxu0
        %1629 = vmatprep.mubr.f32.mxu0 0.0
        %1630 = vmatmul.mubr.f32.gmra.mrb[0].mxu0 %v1155
        %v1631 = vpop.f32.mrb[0].mxu0
        %v1632 = vadd.f32 %v1407, %v1631
        %v1633 = vpop.f32.mrb[0].mxu0
        %1634 = vmatprep.mubr.f32.mxu0 0.0
        %1635 = vmatmul.mubr.f32.gmra.mrb[0].mxu0 %v1156
        %v1636 = vpop.f32.mrb[0].mxu0
        %v1637 = vadd.f32 %v1412, %v1636
        %v1638 = vpop.f32.mrb[0].mxu0
        %1639 = vmatprep.mubr.f32.mxu0 0.0
        %1640 = vmatmul.mubr.f32.gmra.mrb[0].mxu0 %v1157
        %v1641 = vpop.f32.mrb[0].mxu0
        %v1642 = vadd.f32 %v1417, %v1641
        %v1643 = vpop.f32.mrb[0].mxu0
        %1644 = vmatprep.mubr.f32.mxu0 0.0
        %1645 = vmatmul.mubr.f32.gmra.mrb[0].mxu0 %v1158
        %v1646 = vpop.f32.mrb[0].mxu0
        %v1647 = vadd.f32 %v1422, %v1646
        %v1648 = vpop.f32.mrb[0].mxu0
        %1649 = vmatprep.mubr.f32.mxu0 0.0
        %1650 = vmatmul.mubr.f32.gmra.mrb[0].mxu0 %v1159
        %v1651 = vpop.f32.mrb[0].mxu0
        %v1652 = vadd.f32 %v1427, %v1651
        %v1653 = vpop.f32.mrb[0].mxu0
        %1654 = vmatprep.mubr.f32.mxu0 0.0
        %1655 = vmatmul.mubr.f32.gmra.mrb[0].mxu0 %v1160
        %v1656 = vpop.f32.mrb[0].mxu0
        %v1657 = vadd.f32 %v1432, %v1656
        %v1658 = vpop.f32.mrb[0].mxu0
        %1659 = vmatprep.mubr.f32.mxu0 0.0
        %1660 = vmatmul.mubr.f32.gmra.mrb[0].mxu0 %v1161
        %v1661 = vpop.f32.mrb[0].mxu0
        %v1662 = vadd.f32 %v1437, %v1661
        %v1663 = vpop.f32.mrb[0].mxu0
        %1664 = vmatprep.mubr.f32.mxu0 0.0
        %1665 = vmatmul.mubr.f32.gmra.mrb[0].mxu0 %v1162
        %v1666 = vpop.f32.mrb[0].mxu0
        %v1667 = vadd.f32 %v1442, %v1666
        %v1668 = vpop.f32.mrb[0].mxu0
        %1669 = vmatprep.mubr.f32.mxu0 0.0
        %1670 = vmatmul.mubr.f32.gmra.mrb[0].mxu0 %v1163
        %v1671 = vpop.f32.mrb[0].mxu0
        %v1672 = vadd.f32 %v1447, %v1671
        %v1673 = vpop.f32.mrb[0].mxu0
        %1674 = vmatprep.mubr.f32.mxu0 0.0
        %1675 = vmatmul.mubr.f32.gmra.mrb[0].mxu0 %v1164
        %v1676 = vpop.f32.mrb[0].mxu0
        %v1677 = vadd.f32 %v1452, %v1676
        %v1678 = vpop.f32.mrb[0].mxu0
        %1679 = vdwg.mxu0
        %v1680 = vld [vmem:[#allocation2 + $0x2] sm:$0xff]
        %v1681 = vld [vmem:[#allocation2 + $0xa] sm:$0xff]
        %v1682 = vld [vmem:[#allocation2 + $0x12] sm:$0xff]
        %v1683 = vld [vmem:[#allocation2 + $0x1a] sm:$0xff]
        %v1684 = vld [vmem:[#allocation2 + $0x22] sm:$0xff]
        %v1685 = vld [vmem:[#allocation2 + $0x2a] sm:$0xff]
        %v1686 = vld [vmem:[#allocation2 + $0x32] sm:$0xff]
        %v1687 = vld [vmem:[#allocation2 + $0x3a] sm:$0xff]
        %v1688 = vld [vmem:[#allocation2 + $0x42] sm:$0xff]
        %v1689 = vld [vmem:[#allocation2 + $0x4a] sm:$0xff]
        %v1690 = vld [vmem:[#allocation2 + $0x52] sm:$0xff]
        %v1691 = vld [vmem:[#allocation2 + $0x5a] sm:$0xff]
        %v1692 = vld [vmem:[#allocation2 + $0x62] sm:$0xff]
        %v1693 = vld [vmem:[#allocation2 + $0x6a] sm:$0xff]
        %v1694 = vld [vmem:[#allocation2 + $0x72] sm:$0xff]
        %v1695 = vld [vmem:[#allocation2 + $0x7a] sm:$0xff]
        %v1696 = vld [vmem:[#allocation2 + $0x82] sm:$0xff]
        %v1697 = vld [vmem:[#allocation2 + $0x8a] sm:$0xff]
        %v1698 = vld [vmem:[#allocation2 + $0x92] sm:$0xff]
        %v1699 = vld [vmem:[#allocation2 + $0x9a] sm:$0xff]
        %v1700 = vld [vmem:[#allocation2 + $0xa2] sm:$0xff]
        %v1701 = vld [vmem:[#allocation2 + $0xaa] sm:$0xff]
        %v1702 = vld [vmem:[#allocation2 + $0xb2] sm:$0xff]
        %v1703 = vld [vmem:[#allocation2 + $0xba] sm:$0xff]
        %v1704 = vld [vmem:[#allocation2 + $0xc2] sm:$0xff]
        %v1705 = vld [vmem:[#allocation2 + $0xca] sm:$0xff]
        %v1706 = vld [vmem:[#allocation2 + $0xd2] sm:$0xff]
        %v1707 = vld [vmem:[#allocation2 + $0xda] sm:$0xff]
        %v1708 = vld [vmem:[#allocation2 + $0xe2] sm:$0xff]
        %v1709 = vld [vmem:[#allocation2 + $0xea] sm:$0xff]
        %v1710 = vld [vmem:[#allocation2 + $0xf2] sm:$0xff]
        %v1711 = vld [vmem:[#allocation2 + $0xfa] sm:$0xff]
        %s1712 = scalar_lea.vmem %s4, 256
        %v1713 = vld [vmem:[%s1712] sm:$0xff]
        %v1714 = vld [vmem:[%s1712 + $0x8] sm:$0xff]
        %v1715 = vld [vmem:[%s1712 + $0x10] sm:$0xff]
        %v1716 = vld [vmem:[%s1712 + $0x18] sm:$0xff]
        %v1717 = vld [vmem:[%s1712 + $0x20] sm:$0xff]
        %v1718 = vld [vmem:[%s1712 + $0x28] sm:$0xff]
        %v1719 = vld [vmem:[%s1712 + $0x30] sm:$0xff]
        %v1720 = vld [vmem:[%s1712 + $0x38] sm:$0xff]
        %v1721 = vld [vmem:[%s1712 + $0x40] sm:$0xff]
        %v1722 = vld [vmem:[%s1712 + $0x48] sm:$0xff]
        %v1723 = vld [vmem:[%s1712 + $0x50] sm:$0xff]
        %v1724 = vld [vmem:[%s1712 + $0x58] sm:$0xff]
        %v1725 = vld [vmem:[%s1712 + $0x60] sm:$0xff]
        %v1726 = vld [vmem:[%s1712 + $0x68] sm:$0xff]
        %v1727 = vld [vmem:[%s1712 + $0x70] sm:$0xff]
        %v1728 = vld [vmem:[%s1712 + $0x78] sm:$0xff]
        %1729 = vmatprep.subr.mxu0 0.0
        %1730 = vmatpush1.msra.mxu0 %v1713
        %1731 = vmatprep.subr.mxu0 0.0
        %1732 = vmatpush1.msra.mxu0 %v1714
        %1733 = vmatprep.subr.mxu0 0.0
        %1734 = vmatpush1.msra.mxu0 %v1715
        %1735 = vmatprep.subr.mxu0 0.0
        %1736 = vmatpush1.msra.mxu0 %v1716
        %1737 = vmatprep.subr.mxu0 0.0
        %1738 = vmatpush1.msra.mxu0 %v1717
        %1739 = vmatprep.subr.mxu0 0.0
        %1740 = vmatpush1.msra.mxu0 %v1718
        %1741 = vmatprep.subr.mxu0 0.0
        %1742 = vmatpush1.msra.mxu0 %v1719
        %1743 = vmatprep.subr.mxu0 0.0
        %1744 = vmatpush1.msra.mxu0 %v1720
        %1745 = vmatprep.subr.mxu0 0.0
        %1746 = vmatpush1.msra.mxu0 %v1721
        %1747 = vmatprep.subr.mxu0 0.0
        %1748 = vmatpush1.msra.mxu0 %v1722
        %1749 = vmatprep.subr.mxu0 0.0
        %1750 = vmatpush1.msra.mxu0 %v1723
        %1751 = vmatprep.subr.mxu0 0.0
        %1752 = vmatpush1.msra.mxu0 %v1724
        %1753 = vmatprep.subr.mxu0 0.0
        %1754 = vmatpush1.msra.mxu0 %v1725
        %1755 = vmatprep.subr.mxu0 0.0
        %1756 = vmatpush1.msra.mxu0 %v1726
        %1757 = vmatprep.subr.mxu0 0.0
        %1758 = vmatpush1.msra.mxu0 %v1727
        %1759 = vmatprep.subr.mxu0 0.0
        %1760 = vmatpush1.msra.mxu0 %v1728
        %1761 = vmatprep.subr.mxu0 0.0
        %1762 = vmatpush1.msra.mxu0 0.0
        %1763 = vmatprep.subr.mxu0 0.0
        %1764 = vmatpush1.msra.mxu0 0.0
        %1765 = vmatprep.subr.mxu0 0.0
        %1766 = vmatpush1.msra.mxu0 0.0
        %1767 = vmatprep.subr.mxu0 0.0
        %1768 = vmatpush1.msra.mxu0 0.0
        %1769 = vmatprep.subr.mxu0 0.0
        %1770 = vmatpush1.msra.mxu0 0.0
        %1771 = vmatprep.subr.mxu0 0.0
        %1772 = vmatpush1.msra.mxu0 0.0
        %1773 = vmatprep.subr.mxu0 0.0
        %1774 = vmatpush1.msra.mxu0 0.0
        %1775 = vmatprep.subr.mxu0 0.0
        %1776 = vmatpush1.msra.mxu0 0.0
        %1777 = vmatprep.subr.mxu0 0.0
        %1778 = vmatpush1.msra.mxu0 0.0
        %1779 = vmatprep.subr.mxu0 0.0
        %1780 = vmatpush1.msra.mxu0 0.0
        %1781 = vmatprep.subr.mxu0 0.0
        %1782 = vmatpush1.msra.mxu0 0.0
        %1783 = vmatprep.subr.mxu0 0.0
        %1784 = vmatpush1.msra.mxu0 0.0
        %1785 = vmatprep.subr.mxu0 0.0
        %1786 = vmatpush1.msra.mxu0 0.0
        %1787 = vmatprep.subr.mxu0 0.0
        %1788 = vmatpush1.msra.mxu0 0.0
        %1789 = vmatprep.subr.mxu0 0.0
        %1790 = vmatpush1.msra.mxu0 0.0
        %1791 = vmatprep.subr.mxu0 0.0
        %1792 = vmatpush1.msra.mxu0 0.0
        %1793 = vmatprep.mubr.f32.mxu0 0.0
        %1794 = vmatmul.mubr.f32.gmra.mrb[0].mxu0 %v1680
        %v1795 = vpop.f32.mrb[0].mxu0
        %v1796 = vadd.f32 0.0, %v1795
        %v1797 = vpop.f32.mrb[0].mxu0
        %1798 = vmatprep.mubr.f32.mxu0 0.0
        %1799 = vmatmul.mubr.f32.gmra.mrb[0].mxu0 %v1681
        %v1800 = vpop.f32.mrb[0].mxu0
        %v1801 = vadd.f32 0.0, %v1800
        %v1802 = vpop.f32.mrb[0].mxu0
        %1803 = vmatprep.mubr.f32.mxu0 0.0
        %1804 = vmatmul.mubr.f32.gmra.mrb[0].mxu0 %v1682
        %v1805 = vpop.f32.mrb[0].mxu0
        %v1806 = vadd.f32 0.0, %v1805
        %v1807 = vpop.f32.mrb[0].mxu0
        %1808 = vmatprep.mubr.f32.mxu0 0.0
        %1809 = vmatmul.mubr.f32.gmra.mrb[0].mxu0 %v1683
        %v1810 = vpop.f32.mrb[0].mxu0
        %v1811 = vadd.f32 0.0, %v1810
        %v1812 = vpop.f32.mrb[0].mxu0
        %1813 = vmatprep.mubr.f32.mxu0 0.0
        %1814 = vmatmul.mubr.f32.gmra.mrb[0].mxu0 %v1684
        %v1815 = vpop.f32.mrb[0].mxu0
        %v1816 = vadd.f32 0.0, %v1815
        %v1817 = vpop.f32.mrb[0].mxu0
        %1818 = vmatprep.mubr.f32.mxu0 0.0
        %1819 = vmatmul.mubr.f32.gmra.mrb[0].mxu0 %v1685
        %v1820 = vpop.f32.mrb[0].mxu0
        %v1821 = vadd.f32 0.0, %v1820
        %v1822 = vpop.f32.mrb[0].mxu0
        %1823 = vmatprep.mubr.f32.mxu0 0.0
        %1824 = vmatmul.mubr.f32.gmra.mrb[0].mxu0 %v1686
        %v1825 = vpop.f32.mrb[0].mxu0
        %v1826 = vadd.f32 0.0, %v1825
        %v1827 = vpop.f32.mrb[0].mxu0
        %1828 = vmatprep.mubr.f32.mxu0 0.0
        %1829 = vmatmul.mubr.f32.gmra.mrb[0].mxu0 %v1687
        %v1830 = vpop.f32.mrb[0].mxu0
        %v1831 = vadd.f32 0.0, %v1830
        %v1832 = vpop.f32.mrb[0].mxu0
        %1833 = vmatprep.mubr.f32.mxu0 0.0
        %1834 = vmatmul.mubr.f32.gmra.mrb[0].mxu0 %v1688
        %v1835 = vpop.f32.mrb[0].mxu0
        %v1836 = vadd.f32 0.0, %v1835
        %v1837 = vpop.f32.mrb[0].mxu0
        %1838 = vmatprep.mubr.f32.mxu0 0.0
        %1839 = vmatmul.mubr.f32.gmra.mrb[0].mxu0 %v1689
        %v1840 = vpop.f32.mrb[0].mxu0
        %v1841 = vadd.f32 0.0, %v1840
        %v1842 = vpop.f32.mrb[0].mxu0
        %1843 = vmatprep.mubr.f32.mxu0 0.0
        %1844 = vmatmul.mubr.f32.gmra.mrb[0].mxu0 %v1690
        %v1845 = vpop.f32.mrb[0].mxu0
        %v1846 = vadd.f32 0.0, %v1845
        %v1847 = vpop.f32.mrb[0].mxu0
        %1848 = vmatprep.mubr.f32.mxu0 0.0
        %1849 = vmatmul.mubr.f32.gmra.mrb[0].mxu0 %v1691
        %v1850 = vpop.f32.mrb[0].mxu0
        %v1851 = vadd.f32 0.0, %v1850
        %v1852 = vpop.f32.mrb[0].mxu0
        %1853 = vmatprep.mubr.f32.mxu0 0.0
        %1854 = vmatmul.mubr.f32.gmra.mrb[0].mxu0 %v1692
        %v1855 = vpop.f32.mrb[0].mxu0
        %v1856 = vadd.f32 0.0, %v1855
        %v1857 = vpop.f32.mrb[0].mxu0
        %1858 = vmatprep.mubr.f32.mxu0 0.0
        %1859 = vmatmul.mubr.f32.gmra.mrb[0].mxu0 %v1693
        %v1860 = vpop.f32.mrb[0].mxu0
        %v1861 = vadd.f32 0.0, %v1860
        %v1862 = vpop.f32.mrb[0].mxu0
        %1863 = vmatprep.mubr.f32.mxu0 0.0
        %1864 = vmatmul.mubr.f32.gmra.mrb[0].mxu0 %v1694
        %v1865 = vpop.f32.mrb[0].mxu0
        %v1866 = vadd.f32 0.0, %v1865
        %v1867 = vpop.f32.mrb[0].mxu0
        %1868 = vmatprep.mubr.f32.mxu0 0.0
        %1869 = vmatmul.mubr.f32.gmra.mrb[0].mxu0 %v1695
        %v1870 = vpop.f32.mrb[0].mxu0
        %v1871 = vadd.f32 0.0, %v1870
        %v1872 = vpop.f32.mrb[0].mxu0
        %1873 = vmatprep.mubr.f32.mxu0 0.0
        %1874 = vmatmul.mubr.f32.gmra.mrb[0].mxu0 %v1696
        %v1875 = vpop.f32.mrb[0].mxu0
        %v1876 = vadd.f32 0.0, %v1875
        %v1877 = vpop.f32.mrb[0].mxu0
        %1878 = vmatprep.mubr.f32.mxu0 0.0
        %1879 = vmatmul.mubr.f32.gmra.mrb[0].mxu0 %v1697
        %v1880 = vpop.f32.mrb[0].mxu0
        %v1881 = vadd.f32 0.0, %v1880
        %v1882 = vpop.f32.mrb[0].mxu0
        %1883 = vmatprep.mubr.f32.mxu0 0.0
        %1884 = vmatmul.mubr.f32.gmra.mrb[0].mxu0 %v1698
        %v1885 = vpop.f32.mrb[0].mxu0
        %v1886 = vadd.f32 0.0, %v1885
        %v1887 = vpop.f32.mrb[0].mxu0
        %1888 = vmatprep.mubr.f32.mxu0 0.0
        %1889 = vmatmul.mubr.f32.gmra.mrb[0].mxu0 %v1699
        %v1890 = vpop.f32.mrb[0].mxu0
        %v1891 = vadd.f32 0.0, %v1890
        %v1892 = vpop.f32.mrb[0].mxu0
        %1893 = vmatprep.mubr.f32.mxu0 0.0
        %1894 = vmatmul.mubr.f32.gmra.mrb[0].mxu0 %v1700
        %v1895 = vpop.f32.mrb[0].mxu0
        %v1896 = vadd.f32 0.0, %v1895
        %v1897 = vpop.f32.mrb[0].mxu0
        %1898 = vmatprep.mubr.f32.mxu0 0.0
        %1899 = vmatmul.mubr.f32.gmra.mrb[0].mxu0 %v1701
        %v1900 = vpop.f32.mrb[0].mxu0
        %v1901 = vadd.f32 0.0, %v1900
        %v1902 = vpop.f32.mrb[0].mxu0
        %1903 = vmatprep.mubr.f32.mxu0 0.0
        %1904 = vmatmul.mubr.f32.gmra.mrb[0].mxu0 %v1702
        %v1905 = vpop.f32.mrb[0].mxu0
        %v1906 = vadd.f32 0.0, %v1905
        %v1907 = vpop.f32.mrb[0].mxu0
        %1908 = vmatprep.mubr.f32.mxu0 0.0
        %1909 = vmatmul.mubr.f32.gmra.mrb[0].mxu0 %v1703
        %v1910 = vpop.f32.mrb[0].mxu0
        %v1911 = vadd.f32 0.0, %v1910
        %v1912 = vpop.f32.mrb[0].mxu0
        %1913 = vmatprep.mubr.f32.mxu0 0.0
        %1914 = vmatmul.mubr.f32.gmra.mrb[0].mxu0 %v1704
        %v1915 = vpop.f32.mrb[0].mxu0
        %v1916 = vadd.f32 0.0, %v1915
        %v1917 = vpop.f32.mrb[0].mxu0
        %1918 = vmatprep.mubr.f32.mxu0 0.0
        %1919 = vmatmul.mubr.f32.gmra.mrb[0].mxu0 %v1705
        %v1920 = vpop.f32.mrb[0].mxu0
        %v1921 = vadd.f32 0.0, %v1920
        %v1922 = vpop.f32.mrb[0].mxu0
        %1923 = vmatprep.mubr.f32.mxu0 0.0
        %1924 = vmatmul.mubr.f32.gmra.mrb[0].mxu0 %v1706
        %v1925 = vpop.f32.mrb[0].mxu0
        %v1926 = vadd.f32 0.0, %v1925
        %v1927 = vpop.f32.mrb[0].mxu0
        %1928 = vmatprep.mubr.f32.mxu0 0.0
        %1929 = vmatmul.mubr.f32.gmra.mrb[0].mxu0 %v1707
        %v1930 = vpop.f32.mrb[0].mxu0
        %v1931 = vadd.f32 0.0, %v1930
        %v1932 = vpop.f32.mrb[0].mxu0
        %1933 = vmatprep.mubr.f32.mxu0 0.0
        %1934 = vmatmul.mubr.f32.gmra.mrb[0].mxu0 %v1708
        %v1935 = vpop.f32.mrb[0].mxu0
        %v1936 = vadd.f32 0.0, %v1935
        %v1937 = vpop.f32.mrb[0].mxu0
        %1938 = vmatprep.mubr.f32.mxu0 0.0
        %1939 = vmatmul.mubr.f32.gmra.mrb[0].mxu0 %v1709
        %v1940 = vpop.f32.mrb[0].mxu0
        %v1941 = vadd.f32 0.0, %v1940
        %v1942 = vpop.f32.mrb[0].mxu0
        %1943 = vmatprep.mubr.f32.mxu0 0.0
        %1944 = vmatmul.mubr.f32.gmra.mrb[0].mxu0 %v1710
        %v1945 = vpop.f32.mrb[0].mxu0
        %v1946 = vadd.f32 0.0, %v1945
        %v1947 = vpop.f32.mrb[0].mxu0
        %1948 = vmatprep.mubr.f32.mxu0 0.0
        %1949 = vmatmul.mubr.f32.gmra.mrb[0].mxu0 %v1711
        %v1950 = vpop.f32.mrb[0].mxu0
        %v1951 = vadd.f32 0.0, %v1950
        %v1952 = vpop.f32.mrb[0].mxu0
        %1953 = vdwg.mxu0
        %v1954 = vadd.f32 %v1522, %v1796
        %v1955 = vadd.f32 %v1527, %v1801
        %v1956 = vadd.f32 %v1532, %v1806
        %v1957 = vadd.f32 %v1537, %v1811
        %v1958 = vadd.f32 %v1542, %v1816
        %v1959 = vadd.f32 %v1547, %v1821
        %v1960 = vadd.f32 %v1552, %v1826
        %v1961 = vadd.f32 %v1557, %v1831
        %v1962 = vadd.f32 %v1562, %v1836
        %v1963 = vadd.f32 %v1567, %v1841
        %v1964 = vadd.f32 %v1572, %v1846
        %v1965 = vadd.f32 %v1577, %v1851
        %v1966 = vadd.f32 %v1582, %v1856
        %v1967 = vadd.f32 %v1587, %v1861
        %v1968 = vadd.f32 %v1592, %v1866
        %v1969 = vadd.f32 %v1597, %v1871
        %v1970 = vadd.f32 %v1602, %v1876
        %v1971 = vadd.f32 %v1607, %v1881
        %v1972 = vadd.f32 %v1612, %v1886
        %v1973 = vadd.f32 %v1617, %v1891
        %v1974 = vadd.f32 %v1622, %v1896
        %v1975 = vadd.f32 %v1627, %v1901
        %v1976 = vadd.f32 %v1632, %v1906
        %v1977 = vadd.f32 %v1637, %v1911
        %v1978 = vadd.f32 %v1642, %v1916
        %v1979 = vadd.f32 %v1647, %v1921
        %v1980 = vadd.f32 %v1652, %v1926
        %v1981 = vadd.f32 %v1657, %v1931
        %v1982 = vadd.f32 %v1662, %v1936
        %v1983 = vadd.f32 %v1667, %v1941
        %v1984 = vadd.f32 %v1672, %v1946
        %v1985 = vadd.f32 %v1677, %v1951
        %v1986 = vld [vmem:[#allocation2 + $0x12] sm:$0xff]
        %v1987 = vld [vmem:[#allocation2 + $0x1a] sm:$0xff]
        %v1988 = vld [vmem:[#allocation2 + $0x22] sm:$0xff]
        %v1989 = vld [vmem:[#allocation2 + $0x2a] sm:$0xff]
        %v1990 = vld [vmem:[#allocation2 + $0x32] sm:$0xff]
        %v1991 = vld [vmem:[#allocation2 + $0x3a] sm:$0xff]
        %v1992 = vld [vmem:[#allocation2 + $0x42] sm:$0xff]
        %v1993 = vld [vmem:[#allocation2 + $0x4a] sm:$0xff]
        %v1994 = vld [vmem:[#allocation2 + $0x52] sm:$0xff]
        %v1995 = vld [vmem:[#allocation2 + $0x5a] sm:$0xff]
        %v1996 = vld [vmem:[#allocation2 + $0x62] sm:$0xff]
        %v1997 = vld [vmem:[#allocation2 + $0x6a] sm:$0xff]
        %v1998 = vld [vmem:[#allocation2 + $0x72] sm:$0xff]
        %v1999 = vld [vmem:[#allocation2 + $0x7a] sm:$0xff]
        %v2000 = vld [vmem:[#allocation2 + $0x82] sm:$0xff]
        %v2001 = vld [vmem:[#allocation2 + $0x8a] sm:$0xff]
        %v2002 = vld [vmem:[#allocation2 + $0x92] sm:$0xff]
        %v2003 = vld [vmem:[#allocation2 + $0x9a] sm:$0xff]
        %v2004 = vld [vmem:[#allocation2 + $0xa2] sm:$0xff]
        %v2005 = vld [vmem:[#allocation2 + $0xaa] sm:$0xff]
        %v2006 = vld [vmem:[#allocation2 + $0xb2] sm:$0xff]
        %v2007 = vld [vmem:[#allocation2 + $0xba] sm:$0xff]
        %v2008 = vld [vmem:[#allocation2 + $0xc2] sm:$0xff]
        %v2009 = vld [vmem:[#allocation2 + $0xca] sm:$0xff]
        %v2010 = vld [vmem:[#allocation2 + $0xd2] sm:$0xff]
        %v2011 = vld [vmem:[#allocation2 + $0xda] sm:$0xff]
        %v2012 = vld [vmem:[#allocation2 + $0xe2] sm:$0xff]
        %v2013 = vld [vmem:[#allocation2 + $0xea] sm:$0xff]
        %v2014 = vld [vmem:[#allocation2 + $0xf2] sm:$0xff]
        %v2015 = vld [vmem:[#allocation2 + $0xfa] sm:$0xff]
        %v2016 = vld [vmem:[#allocation2 + $0x102] sm:$0xff]
        %v2017 = vld [vmem:[#allocation2 + $0x10a] sm:$0xff]
        %s2018 = scalar_lea.vmem %s4, 384
        %v2019 = vld [vmem:[%s2018] sm:$0xff]
        %v2020 = vld [vmem:[%s2018 + $0x8] sm:$0xff]
        %v2021 = vld [vmem:[%s2018 + $0x10] sm:$0xff]
        %v2022 = vld [vmem:[%s2018 + $0x18] sm:$0xff]
        %v2023 = vld [vmem:[%s2018 + $0x20] sm:$0xff]
        %v2024 = vld [vmem:[%s2018 + $0x28] sm:$0xff]
        %v2025 = vld [vmem:[%s2018 + $0x30] sm:$0xff]
        %v2026 = vld [vmem:[%s2018 + $0x38] sm:$0xff]
        %v2027 = vld [vmem:[%s2018 + $0x40] sm:$0xff]
        %v2028 = vld [vmem:[%s2018 + $0x48] sm:$0xff]
        %v2029 = vld [vmem:[%s2018 + $0x50] sm:$0xff]
        %v2030 = vld [vmem:[%s2018 + $0x58] sm:$0xff]
        %v2031 = vld [vmem:[%s2018 + $0x60] sm:$0xff]
        %v2032 = vld [vmem:[%s2018 + $0x68] sm:$0xff]
        %v2033 = vld [vmem:[%s2018 + $0x70] sm:$0xff]
        %v2034 = vld [vmem:[%s2018 + $0x78] sm:$0xff]
        %2035 = vmatprep.subr.mxu0 0.0
        %2036 = vmatpush1.msra.mxu0 %v2019
        %2037 = vmatprep.subr.mxu0 0.0
        %2038 = vmatpush1.msra.mxu0 %v2020
        %2039 = vmatprep.subr.mxu0 0.0
        %2040 = vmatpush1.msra.mxu0 %v2021
        %2041 = vmatprep.subr.mxu0 0.0
        %2042 = vmatpush1.msra.mxu0 %v2022
        %2043 = vmatprep.subr.mxu0 0.0
        %2044 = vmatpush1.msra.mxu0 %v2023
        %2045 = vmatprep.subr.mxu0 0.0
        %2046 = vmatpush1.msra.mxu0 %v2024
        %2047 = vmatprep.subr.mxu0 0.0
        %2048 = vmatpush1.msra.mxu0 %v2025
        %2049 = vmatprep.subr.mxu0 0.0
        %2050 = vmatpush1.msra.mxu0 %v2026
        %2051 = vmatprep.subr.mxu0 0.0
        %2052 = vmatpush1.msra.mxu0 %v2027
        %2053 = vmatprep.subr.mxu0 0.0
        %2054 = vmatpush1.msra.mxu0 %v2028
        %2055 = vmatprep.subr.mxu0 0.0
        %2056 = vmatpush1.msra.mxu0 %v2029
        %2057 = vmatprep.subr.mxu0 0.0
        %2058 = vmatpush1.msra.mxu0 %v2030
        %2059 = vmatprep.subr.mxu0 0.0
        %2060 = vmatpush1.msra.mxu0 %v2031
        %2061 = vmatprep.subr.mxu0 0.0
        %2062 = vmatpush1.msra.mxu0 %v2032
        %2063 = vmatprep.subr.mxu0 0.0
        %2064 = vmatpush1.msra.mxu0 %v2033
        %2065 = vmatprep.subr.mxu0 0.0
        %2066 = vmatpush1.msra.mxu0 %v2034
        %2067 = vmatprep.subr.mxu0 0.0
        %2068 = vmatpush1.msra.mxu0 0.0
        %2069 = vmatprep.subr.mxu0 0.0
        %2070 = vmatpush1.msra.mxu0 0.0
        %2071 = vmatprep.subr.mxu0 0.0
        %2072 = vmatpush1.msra.mxu0 0.0
        %2073 = vmatprep.subr.mxu0 0.0
        %2074 = vmatpush1.msra.mxu0 0.0
        %2075 = vmatprep.subr.mxu0 0.0
        %2076 = vmatpush1.msra.mxu0 0.0
        %2077 = vmatprep.subr.mxu0 0.0
        %2078 = vmatpush1.msra.mxu0 0.0
        %2079 = vmatprep.subr.mxu0 0.0
        %2080 = vmatpush1.msra.mxu0 0.0
        %2081 = vmatprep.subr.mxu0 0.0
        %2082 = vmatpush1.msra.mxu0 0.0
        %2083 = vmatprep.subr.mxu0 0.0
        %2084 = vmatpush1.msra.mxu0 0.0
        %2085 = vmatprep.subr.mxu0 0.0
        %2086 = vmatpush1.msra.mxu0 0.0
        %2087 = vmatprep.subr.mxu0 0.0
        %2088 = vmatpush1.msra.mxu0 0.0
        %2089 = vmatprep.subr.mxu0 0.0
        %2090 = vmatpush1.msra.mxu0 0.0
        %2091 = vmatprep.subr.mxu0 0.0
        %2092 = vmatpush1.msra.mxu0 0.0
        %2093 = vmatprep.subr.mxu0 0.0
        %2094 = vmatpush1.msra.mxu0 0.0
        %2095 = vmatprep.subr.mxu0 0.0
        %2096 = vmatpush1.msra.mxu0 0.0
        %2097 = vmatprep.subr.mxu0 0.0
        %2098 = vmatpush1.msra.mxu0 0.0
        %2099 = vmatprep.mubr.f32.mxu0 0.0
        %2100 = vmatmul.mubr.f32.gmra.mrb[0].mxu0 %v1986
        %v2101 = vpop.f32.mrb[0].mxu0
        %v2102 = vadd.f32 0.0, %v2101
        %v2103 = vpop.f32.mrb[0].mxu0
        %2104 = vmatprep.mubr.f32.mxu0 0.0
        %2105 = vmatmul.mubr.f32.gmra.mrb[0].mxu0 %v1987
        %v2106 = vpop.f32.mrb[0].mxu0
        %v2107 = vadd.f32 0.0, %v2106
        %v2108 = vpop.f32.mrb[0].mxu0
        %2109 = vmatprep.mubr.f32.mxu0 0.0
        %2110 = vmatmul.mubr.f32.gmra.mrb[0].mxu0 %v1988
        %v2111 = vpop.f32.mrb[0].mxu0
        %v2112 = vadd.f32 0.0, %v2111
        %v2113 = vpop.f32.mrb[0].mxu0
        %2114 = vmatprep.mubr.f32.mxu0 0.0
        %2115 = vmatmul.mubr.f32.gmra.mrb[0].mxu0 %v1989
        %v2116 = vpop.f32.mrb[0].mxu0
        %v2117 = vadd.f32 0.0, %v2116
        %v2118 = vpop.f32.mrb[0].mxu0
        %2119 = vmatprep.mubr.f32.mxu0 0.0
        %2120 = vmatmul.mubr.f32.gmra.mrb[0].mxu0 %v1990
        %v2121 = vpop.f32.mrb[0].mxu0
        %v2122 = vadd.f32 0.0, %v2121
        %v2123 = vpop.f32.mrb[0].mxu0
        %2124 = vmatprep.mubr.f32.mxu0 0.0
        %2125 = vmatmul.mubr.f32.gmra.mrb[0].mxu0 %v1991
        %v2126 = vpop.f32.mrb[0].mxu0
        %v2127 = vadd.f32 0.0, %v2126
        %v2128 = vpop.f32.mrb[0].mxu0
        %2129 = vmatprep.mubr.f32.mxu0 0.0
        %2130 = vmatmul.mubr.f32.gmra.mrb[0].mxu0 %v1992
        %v2131 = vpop.f32.mrb[0].mxu0
        %v2132 = vadd.f32 0.0, %v2131
        %v2133 = vpop.f32.mrb[0].mxu0
        %2134 = vmatprep.mubr.f32.mxu0 0.0
        %2135 = vmatmul.mubr.f32.gmra.mrb[0].mxu0 %v1993
        %v2136 = vpop.f32.mrb[0].mxu0
        %v2137 = vadd.f32 0.0, %v2136
        %v2138 = vpop.f32.mrb[0].mxu0
        %2139 = vmatprep.mubr.f32.mxu0 0.0
        %2140 = vmatmul.mubr.f32.gmra.mrb[0].mxu0 %v1994
        %v2141 = vpop.f32.mrb[0].mxu0
        %v2142 = vadd.f32 0.0, %v2141
        %v2143 = vpop.f32.mrb[0].mxu0
        %2144 = vmatprep.mubr.f32.mxu0 0.0
        %2145 = vmatmul.mubr.f32.gmra.mrb[0].mxu0 %v1995
        %v2146 = vpop.f32.mrb[0].mxu0
        %v2147 = vadd.f32 0.0, %v2146
        %v2148 = vpop.f32.mrb[0].mxu0
        %2149 = vmatprep.mubr.f32.mxu0 0.0
        %2150 = vmatmul.mubr.f32.gmra.mrb[0].mxu0 %v1996
        %v2151 = vpop.f32.mrb[0].mxu0
        %v2152 = vadd.f32 0.0, %v2151
        %v2153 = vpop.f32.mrb[0].mxu0
        %2154 = vmatprep.mubr.f32.mxu0 0.0
        %2155 = vmatmul.mubr.f32.gmra.mrb[0].mxu0 %v1997
        %v2156 = vpop.f32.mrb[0].mxu0
        %v2157 = vadd.f32 0.0, %v2156
        %v2158 = vpop.f32.mrb[0].mxu0
        %2159 = vmatprep.mubr.f32.mxu0 0.0
        %2160 = vmatmul.mubr.f32.gmra.mrb[0].mxu0 %v1998
        %v2161 = vpop.f32.mrb[0].mxu0
        %v2162 = vadd.f32 0.0, %v2161
        %v2163 = vpop.f32.mrb[0].mxu0
        %2164 = vmatprep.mubr.f32.mxu0 0.0
        %2165 = vmatmul.mubr.f32.gmra.mrb[0].mxu0 %v1999
        %v2166 = vpop.f32.mrb[0].mxu0
        %v2167 = vadd.f32 0.0, %v2166
        %v2168 = vpop.f32.mrb[0].mxu0
        %2169 = vmatprep.mubr.f32.mxu0 0.0
        %2170 = vmatmul.mubr.f32.gmra.mrb[0].mxu0 %v2000
        %v2171 = vpop.f32.mrb[0].mxu0
        %v2172 = vadd.f32 0.0, %v2171
        %v2173 = vpop.f32.mrb[0].mxu0
        %2174 = vmatprep.mubr.f32.mxu0 0.0
        %2175 = vmatmul.mubr.f32.gmra.mrb[0].mxu0 %v2001
        %v2176 = vpop.f32.mrb[0].mxu0
        %v2177 = vadd.f32 0.0, %v2176
        %v2178 = vpop.f32.mrb[0].mxu0
        %2179 = vmatprep.mubr.f32.mxu0 0.0
        %2180 = vmatmul.mubr.f32.gmra.mrb[0].mxu0 %v2002
        %v2181 = vpop.f32.mrb[0].mxu0
        %v2182 = vadd.f32 0.0, %v2181
        %v2183 = vpop.f32.mrb[0].mxu0
        %2184 = vmatprep.mubr.f32.mxu0 0.0
        %2185 = vmatmul.mubr.f32.gmra.mrb[0].mxu0 %v2003
        %v2186 = vpop.f32.mrb[0].mxu0
        %v2187 = vadd.f32 0.0, %v2186
        %v2188 = vpop.f32.mrb[0].mxu0
        %2189 = vmatprep.mubr.f32.mxu0 0.0
        %2190 = vmatmul.mubr.f32.gmra.mrb[0].mxu0 %v2004
        %v2191 = vpop.f32.mrb[0].mxu0
        %v2192 = vadd.f32 0.0, %v2191
        %v2193 = vpop.f32.mrb[0].mxu0
        %2194 = vmatprep.mubr.f32.mxu0 0.0
        %2195 = vmatmul.mubr.f32.gmra.mrb[0].mxu0 %v2005
        %v2196 = vpop.f32.mrb[0].mxu0
        %v2197 = vadd.f32 0.0, %v2196
        %v2198 = vpop.f32.mrb[0].mxu0
        %2199 = vmatprep.mubr.f32.mxu0 0.0
        %2200 = vmatmul.mubr.f32.gmra.mrb[0].mxu0 %v2006
        %v2201 = vpop.f32.mrb[0].mxu0
        %v2202 = vadd.f32 0.0, %v2201
        %v2203 = vpop.f32.mrb[0].mxu0
        %2204 = vmatprep.mubr.f32.mxu0 0.0
        %2205 = vmatmul.mubr.f32.gmra.mrb[0].mxu0 %v2007
        %v2206 = vpop.f32.mrb[0].mxu0
        %v2207 = vadd.f32 0.0, %v2206
        %v2208 = vpop.f32.mrb[0].mxu0
        %2209 = vmatprep.mubr.f32.mxu0 0.0
        %2210 = vmatmul.mubr.f32.gmra.mrb[0].mxu0 %v2008
        %v2211 = vpop.f32.mrb[0].mxu0
        %v2212 = vadd.f32 0.0, %v2211
        %v2213 = vpop.f32.mrb[0].mxu0
        %2214 = vmatprep.mubr.f32.mxu0 0.0
        %2215 = vmatmul.mubr.f32.gmra.mrb[0].mxu0 %v2009
        %v2216 = vpop.f32.mrb[0].mxu0
        %v2217 = vadd.f32 0.0, %v2216
        %v2218 = vpop.f32.mrb[0].mxu0
        %2219 = vmatprep.mubr.f32.mxu0 0.0
        %2220 = vmatmul.mubr.f32.gmra.mrb[0].mxu0 %v2010
        %v2221 = vpop.f32.mrb[0].mxu0
        %v2222 = vadd.f32 0.0, %v2221
        %v2223 = vpop.f32.mrb[0].mxu0
        %2224 = vmatprep.mubr.f32.mxu0 0.0
        %2225 = vmatmul.mubr.f32.gmra.mrb[0].mxu0 %v2011
        %v2226 = vpop.f32.mrb[0].mxu0
        %v2227 = vadd.f32 0.0, %v2226
        %v2228 = vpop.f32.mrb[0].mxu0
        %2229 = vmatprep.mubr.f32.mxu0 0.0
        %2230 = vmatmul.mubr.f32.gmra.mrb[0].mxu0 %v2012
        %v2231 = vpop.f32.mrb[0].mxu0
        %v2232 = vadd.f32 0.0, %v2231
        %v2233 = vpop.f32.mrb[0].mxu0
        %2234 = vmatprep.mubr.f32.mxu0 0.0
        %2235 = vmatmul.mubr.f32.gmra.mrb[0].mxu0 %v2013
        %v2236 = vpop.f32.mrb[0].mxu0
        %v2237 = vadd.f32 0.0, %v2236
        %v2238 = vpop.f32.mrb[0].mxu0
        %2239 = vmatprep.mubr.f32.mxu0 0.0
        %2240 = vmatmul.mubr.f32.gmra.mrb[0].mxu0 %v2014
        %v2241 = vpop.f32.mrb[0].mxu0
        %v2242 = vadd.f32 0.0, %v2241
        %v2243 = vpop.f32.mrb[0].mxu0
        %2244 = vmatprep.mubr.f32.mxu0 0.0
        %2245 = vmatmul.mubr.f32.gmra.mrb[0].mxu0 %v2015
        %v2246 = vpop.f32.mrb[0].mxu0
        %v2247 = vadd.f32 0.0, %v2246
        %v2248 = vpop.f32.mrb[0].mxu0
        %2249 = vmatprep.mubr.f32.mxu0 0.0
        %2250 = vmatmul.mubr.f32.gmra.mrb[0].mxu0 %v2016
        %v2251 = vpop.f32.mrb[0].mxu0
        %v2252 = vadd.f32 0.0, %v2251
        %v2253 = vpop.f32.mrb[0].mxu0
        %2254 = vmatprep.mubr.f32.mxu0 0.0
        %2255 = vmatmul.mubr.f32.gmra.mrb[0].mxu0 %v2017
        %v2256 = vpop.f32.mrb[0].mxu0
        %v2257 = vadd.f32 0.0, %v2256
        %v2258 = vpop.f32.mrb[0].mxu0
        %2259 = vdwg.mxu0
        %v2260 = vadd.f32 %v1954, %v2102
        %v2261 = vadd.f32 %v1955, %v2107
        %v2262 = vadd.f32 %v1956, %v2112
        %v2263 = vadd.f32 %v1957, %v2117
        %v2264 = vadd.f32 %v1958, %v2122
        %v2265 = vadd.f32 %v1959, %v2127
        %v2266 = vadd.f32 %v1960, %v2132
        %v2267 = vadd.f32 %v1961, %v2137
        %v2268 = vadd.f32 %v1962, %v2142
        %v2269 = vadd.f32 %v1963, %v2147
        %v2270 = vadd.f32 %v1964, %v2152
        %v2271 = vadd.f32 %v1965, %v2157
        %v2272 = vadd.f32 %v1966, %v2162
        %v2273 = vadd.f32 %v1967, %v2167
        %v2274 = vadd.f32 %v1968, %v2172
        %v2275 = vadd.f32 %v1969, %v2177
        %v2276 = vadd.f32 %v1970, %v2182
        %v2277 = vadd.f32 %v1971, %v2187
        %v2278 = vadd.f32 %v1972, %v2192
        %v2279 = vadd.f32 %v1973, %v2197
        %v2280 = vadd.f32 %v1974, %v2202
        %v2281 = vadd.f32 %v1975, %v2207
        %v2282 = vadd.f32 %v1976, %v2212
        %v2283 = vadd.f32 %v1977, %v2217
        %v2284 = vadd.f32 %v1978, %v2222
        %v2285 = vadd.f32 %v1979, %v2227
        %v2286 = vadd.f32 %v1980, %v2232
        %v2287 = vadd.f32 %v1981, %v2237
        %v2288 = vadd.f32 %v1982, %v2242
        %v2289 = vadd.f32 %v1983, %v2247
        %v2290 = vadd.f32 %v1984, %v2252
        %v2291 = vadd.f32 %v1985, %v2257
        %v2292 = vld [vmem:[#allocation2 + $0x13] sm:$0xff]
        %v2293 = vld [vmem:[#allocation2 + $0x1b] sm:$0xff]
        %v2294 = vld [vmem:[#allocation2 + $0x23] sm:$0xff]
        %v2295 = vld [vmem:[#allocation2 + $0x2b] sm:$0xff]
        %v2296 = vld [vmem:[#allocation2 + $0x33] sm:$0xff]
        %v2297 = vld [vmem:[#allocation2 + $0x3b] sm:$0xff]
        %v2298 = vld [vmem:[#allocation2 + $0x43] sm:$0xff]
        %v2299 = vld [vmem:[#allocation2 + $0x4b] sm:$0xff]
        %v2300 = vld [vmem:[#allocation2 + $0x53] sm:$0xff]
        %v2301 = vld [vmem:[#allocation2 + $0x5b] sm:$0xff]
        %v2302 = vld [vmem:[#allocation2 + $0x63] sm:$0xff]
        %v2303 = vld [vmem:[#allocation2 + $0x6b] sm:$0xff]
        %v2304 = vld [vmem:[#allocation2 + $0x73] sm:$0xff]
        %v2305 = vld [vmem:[#allocation2 + $0x7b] sm:$0xff]
        %v2306 = vld [vmem:[#allocation2 + $0x83] sm:$0xff]
        %v2307 = vld [vmem:[#allocation2 + $0x8b] sm:$0xff]
        %v2308 = vld [vmem:[#allocation2 + $0x93] sm:$0xff]
        %v2309 = vld [vmem:[#allocation2 + $0x9b] sm:$0xff]
        %v2310 = vld [vmem:[#allocation2 + $0xa3] sm:$0xff]
        %v2311 = vld [vmem:[#allocation2 + $0xab] sm:$0xff]
        %v2312 = vld [vmem:[#allocation2 + $0xb3] sm:$0xff]
        %v2313 = vld [vmem:[#allocation2 + $0xbb] sm:$0xff]
        %v2314 = vld [vmem:[#allocation2 + $0xc3] sm:$0xff]
        %v2315 = vld [vmem:[#allocation2 + $0xcb] sm:$0xff]
        %v2316 = vld [vmem:[#allocation2 + $0xd3] sm:$0xff]
        %v2317 = vld [vmem:[#allocation2 + $0xdb] sm:$0xff]
        %v2318 = vld [vmem:[#allocation2 + $0xe3] sm:$0xff]
        %v2319 = vld [vmem:[#allocation2 + $0xeb] sm:$0xff]
        %v2320 = vld [vmem:[#allocation2 + $0xf3] sm:$0xff]
        %v2321 = vld [vmem:[#allocation2 + $0xfb] sm:$0xff]
        %v2322 = vld [vmem:[#allocation2 + $0x103] sm:$0xff]
        %v2323 = vld [vmem:[#allocation2 + $0x10b] sm:$0xff]
        %s2324 = scalar_lea.vmem %s4, 512
        %v2325 = vld [vmem:[%s2324] sm:$0xff]
        %v2326 = vld [vmem:[%s2324 + $0x8] sm:$0xff]
        %v2327 = vld [vmem:[%s2324 + $0x10] sm:$0xff]
        %v2328 = vld [vmem:[%s2324 + $0x18] sm:$0xff]
        %v2329 = vld [vmem:[%s2324 + $0x20] sm:$0xff]
        %v2330 = vld [vmem:[%s2324 + $0x28] sm:$0xff]
        %v2331 = vld [vmem:[%s2324 + $0x30] sm:$0xff]
        %v2332 = vld [vmem:[%s2324 + $0x38] sm:$0xff]
        %v2333 = vld [vmem:[%s2324 + $0x40] sm:$0xff]
        %v2334 = vld [vmem:[%s2324 + $0x48] sm:$0xff]
        %v2335 = vld [vmem:[%s2324 + $0x50] sm:$0xff]
        %v2336 = vld [vmem:[%s2324 + $0x58] sm:$0xff]
        %v2337 = vld [vmem:[%s2324 + $0x60] sm:$0xff]
        %v2338 = vld [vmem:[%s2324 + $0x68] sm:$0xff]
        %v2339 = vld [vmem:[%s2324 + $0x70] sm:$0xff]
        %v2340 = vld [vmem:[%s2324 + $0x78] sm:$0xff]
        %2341 = vmatprep.subr.mxu0 0.0
        %2342 = vmatpush1.msra.mxu0 %v2325
        %2343 = vmatprep.subr.mxu0 0.0
        %2344 = vmatpush1.msra.mxu0 %v2326
        %2345 = vmatprep.subr.mxu0 0.0
        %2346 = vmatpush1.msra.mxu0 %v2327
        %2347 = vmatprep.subr.mxu0 0.0
        %2348 = vmatpush1.msra.mxu0 %v2328
        %2349 = vmatprep.subr.mxu0 0.0
        %2350 = vmatpush1.msra.mxu0 %v2329
        %2351 = vmatprep.subr.mxu0 0.0
        %2352 = vmatpush1.msra.mxu0 %v2330
        %2353 = vmatprep.subr.mxu0 0.0
        %2354 = vmatpush1.msra.mxu0 %v2331
        %2355 = vmatprep.subr.mxu0 0.0
        %2356 = vmatpush1.msra.mxu0 %v2332
        %2357 = vmatprep.subr.mxu0 0.0
        %2358 = vmatpush1.msra.mxu0 %v2333
        %2359 = vmatprep.subr.mxu0 0.0
        %2360 = vmatpush1.msra.mxu0 %v2334
        %2361 = vmatprep.subr.mxu0 0.0
        %2362 = vmatpush1.msra.mxu0 %v2335
        %2363 = vmatprep.subr.mxu0 0.0
        %2364 = vmatpush1.msra.mxu0 %v2336
        %2365 = vmatprep.subr.mxu0 0.0
        %2366 = vmatpush1.msra.mxu0 %v2337
        %2367 = vmatprep.subr.mxu0 0.0
        %2368 = vmatpush1.msra.mxu0 %v2338
        %2369 = vmatprep.subr.mxu0 0.0
        %2370 = vmatpush1.msra.mxu0 %v2339
        %2371 = vmatprep.subr.mxu0 0.0
        %2372 = vmatpush1.msra.mxu0 %v2340
        %2373 = vmatprep.subr.mxu0 0.0
        %2374 = vmatpush1.msra.mxu0 0.0
        %2375 = vmatprep.subr.mxu0 0.0
        %2376 = vmatpush1.msra.mxu0 0.0
        %2377 = vmatprep.subr.mxu0 0.0
        %2378 = vmatpush1.msra.mxu0 0.0
        %2379 = vmatprep.subr.mxu0 0.0
        %2380 = vmatpush1.msra.mxu0 0.0
        %2381 = vmatprep.subr.mxu0 0.0
        %2382 = vmatpush1.msra.mxu0 0.0
        %2383 = vmatprep.subr.mxu0 0.0
        %2384 = vmatpush1.msra.mxu0 0.0
        %2385 = vmatprep.subr.mxu0 0.0
        %2386 = vmatpush1.msra.mxu0 0.0
        %2387 = vmatprep.subr.mxu0 0.0
        %2388 = vmatpush1.msra.mxu0 0.0
        %2389 = vmatprep.subr.mxu0 0.0
        %2390 = vmatpush1.msra.mxu0 0.0
        %2391 = vmatprep.subr.mxu0 0.0
        %2392 = vmatpush1.msra.mxu0 0.0
        %2393 = vmatprep.subr.mxu0 0.0
        %2394 = vmatpush1.msra.mxu0 0.0
        %2395 = vmatprep.subr.mxu0 0.0
        %2396 = vmatpush1.msra.mxu0 0.0
        %2397 = vmatprep.subr.mxu0 0.0
        %2398 = vmatpush1.msra.mxu0 0.0
        %2399 = vmatprep.subr.mxu0 0.0
        %2400 = vmatpush1.msra.mxu0 0.0
        %2401 = vmatprep.subr.mxu0 0.0
        %2402 = vmatpush1.msra.mxu0 0.0
        %2403 = vmatprep.subr.mxu0 0.0
        %2404 = vmatpush1.msra.mxu0 0.0
        %2405 = vmatprep.mubr.f32.mxu0 0.0
        %2406 = vmatmul.mubr.f32.gmra.mrb[0].mxu0 %v2292
        %v2407 = vpop.f32.mrb[0].mxu0
        %v2408 = vadd.f32 0.0, %v2407
        %v2409 = vpop.f32.mrb[0].mxu0
        %2410 = vmatprep.mubr.f32.mxu0 0.0
        %2411 = vmatmul.mubr.f32.gmra.mrb[0].mxu0 %v2293
        %v2412 = vpop.f32.mrb[0].mxu0
        %v2413 = vadd.f32 0.0, %v2412
        %v2414 = vpop.f32.mrb[0].mxu0
        %2415 = vmatprep.mubr.f32.mxu0 0.0
        %2416 = vmatmul.mubr.f32.gmra.mrb[0].mxu0 %v2294
        %v2417 = vpop.f32.mrb[0].mxu0
        %v2418 = vadd.f32 0.0, %v2417
        %v2419 = vpop.f32.mrb[0].mxu0
        %2420 = vmatprep.mubr.f32.mxu0 0.0
        %2421 = vmatmul.mubr.f32.gmra.mrb[0].mxu0 %v2295
        %v2422 = vpop.f32.mrb[0].mxu0
        %v2423 = vadd.f32 0.0, %v2422
        %v2424 = vpop.f32.mrb[0].mxu0
        %2425 = vmatprep.mubr.f32.mxu0 0.0
        %2426 = vmatmul.mubr.f32.gmra.mrb[0].mxu0 %v2296
        %v2427 = vpop.f32.mrb[0].mxu0
        %v2428 = vadd.f32 0.0, %v2427
        %v2429 = vpop.f32.mrb[0].mxu0
        %2430 = vmatprep.mubr.f32.mxu0 0.0
        %2431 = vmatmul.mubr.f32.gmra.mrb[0].mxu0 %v2297
        %v2432 = vpop.f32.mrb[0].mxu0
        %v2433 = vadd.f32 0.0, %v2432
        %v2434 = vpop.f32.mrb[0].mxu0
        %2435 = vmatprep.mubr.f32.mxu0 0.0
        %2436 = vmatmul.mubr.f32.gmra.mrb[0].mxu0 %v2298
        %v2437 = vpop.f32.mrb[0].mxu0
        %v2438 = vadd.f32 0.0, %v2437
        %v2439 = vpop.f32.mrb[0].mxu0
        %2440 = vmatprep.mubr.f32.mxu0 0.0
        %2441 = vmatmul.mubr.f32.gmra.mrb[0].mxu0 %v2299
        %v2442 = vpop.f32.mrb[0].mxu0
        %v2443 = vadd.f32 0.0, %v2442
        %v2444 = vpop.f32.mrb[0].mxu0
        %2445 = vmatprep.mubr.f32.mxu0 0.0
        %2446 = vmatmul.mubr.f32.gmra.mrb[0].mxu0 %v2300
        %v2447 = vpop.f32.mrb[0].mxu0
        %v2448 = vadd.f32 0.0, %v2447
        %v2449 = vpop.f32.mrb[0].mxu0
        %2450 = vmatprep.mubr.f32.mxu0 0.0
        %2451 = vmatmul.mubr.f32.gmra.mrb[0].mxu0 %v2301
        %v2452 = vpop.f32.mrb[0].mxu0
        %v2453 = vadd.f32 0.0, %v2452
        %v2454 = vpop.f32.mrb[0].mxu0
        %2455 = vmatprep.mubr.f32.mxu0 0.0
        %2456 = vmatmul.mubr.f32.gmra.mrb[0].mxu0 %v2302
        %v2457 = vpop.f32.mrb[0].mxu0
        %v2458 = vadd.f32 0.0, %v2457
        %v2459 = vpop.f32.mrb[0].mxu0
        %2460 = vmatprep.mubr.f32.mxu0 0.0
        %2461 = vmatmul.mubr.f32.gmra.mrb[0].mxu0 %v2303
        %v2462 = vpop.f32.mrb[0].mxu0
        %v2463 = vadd.f32 0.0, %v2462
        %v2464 = vpop.f32.mrb[0].mxu0
        %2465 = vmatprep.mubr.f32.mxu0 0.0
        %2466 = vmatmul.mubr.f32.gmra.mrb[0].mxu0 %v2304
        %v2467 = vpop.f32.mrb[0].mxu0
        %v2468 = vadd.f32 0.0, %v2467
        %v2469 = vpop.f32.mrb[0].mxu0
        %2470 = vmatprep.mubr.f32.mxu0 0.0
        %2471 = vmatmul.mubr.f32.gmra.mrb[0].mxu0 %v2305
        %v2472 = vpop.f32.mrb[0].mxu0
        %v2473 = vadd.f32 0.0, %v2472
        %v2474 = vpop.f32.mrb[0].mxu0
        %2475 = vmatprep.mubr.f32.mxu0 0.0
        %2476 = vmatmul.mubr.f32.gmra.mrb[0].mxu0 %v2306
        %v2477 = vpop.f32.mrb[0].mxu0
        %v2478 = vadd.f32 0.0, %v2477
        %v2479 = vpop.f32.mrb[0].mxu0
        %2480 = vmatprep.mubr.f32.mxu0 0.0
        %2481 = vmatmul.mubr.f32.gmra.mrb[0].mxu0 %v2307
        %v2482 = vpop.f32.mrb[0].mxu0
        %v2483 = vadd.f32 0.0, %v2482
        %v2484 = vpop.f32.mrb[0].mxu0
        %2485 = vmatprep.mubr.f32.mxu0 0.0
        %2486 = vmatmul.mubr.f32.gmra.mrb[0].mxu0 %v2308
        %v2487 = vpop.f32.mrb[0].mxu0
        %v2488 = vadd.f32 0.0, %v2487
        %v2489 = vpop.f32.mrb[0].mxu0
        %2490 = vmatprep.mubr.f32.mxu0 0.0
        %2491 = vmatmul.mubr.f32.gmra.mrb[0].mxu0 %v2309
        %v2492 = vpop.f32.mrb[0].mxu0
        %v2493 = vadd.f32 0.0, %v2492
        %v2494 = vpop.f32.mrb[0].mxu0
        %2495 = vmatprep.mubr.f32.mxu0 0.0
        %2496 = vmatmul.mubr.f32.gmra.mrb[0].mxu0 %v2310
        %v2497 = vpop.f32.mrb[0].mxu0
        %v2498 = vadd.f32 0.0, %v2497
        %v2499 = vpop.f32.mrb[0].mxu0
        %2500 = vmatprep.mubr.f32.mxu0 0.0
        %2501 = vmatmul.mubr.f32.gmra.mrb[0].mxu0 %v2311
        %v2502 = vpop.f32.mrb[0].mxu0
        %v2503 = vadd.f32 0.0, %v2502
        %v2504 = vpop.f32.mrb[0].mxu0
        %2505 = vmatprep.mubr.f32.mxu0 0.0
        %2506 = vmatmul.mubr.f32.gmra.mrb[0].mxu0 %v2312
        %v2507 = vpop.f32.mrb[0].mxu0
        %v2508 = vadd.f32 0.0, %v2507
        %v2509 = vpop.f32.mrb[0].mxu0
        %2510 = vmatprep.mubr.f32.mxu0 0.0
        %2511 = vmatmul.mubr.f32.gmra.mrb[0].mxu0 %v2313
        %v2512 = vpop.f32.mrb[0].mxu0
        %v2513 = vadd.f32 0.0, %v2512
        %v2514 = vpop.f32.mrb[0].mxu0
        %2515 = vmatprep.mubr.f32.mxu0 0.0
        %2516 = vmatmul.mubr.f32.gmra.mrb[0].mxu0 %v2314
        %v2517 = vpop.f32.mrb[0].mxu0
        %v2518 = vadd.f32 0.0, %v2517
        %v2519 = vpop.f32.mrb[0].mxu0
        %2520 = vmatprep.mubr.f32.mxu0 0.0
        %2521 = vmatmul.mubr.f32.gmra.mrb[0].mxu0 %v2315
        %v2522 = vpop.f32.mrb[0].mxu0
        %v2523 = vadd.f32 0.0, %v2522
        %v2524 = vpop.f32.mrb[0].mxu0
        %2525 = vmatprep.mubr.f32.mxu0 0.0
        %2526 = vmatmul.mubr.f32.gmra.mrb[0].mxu0 %v2316
        %v2527 = vpop.f32.mrb[0].mxu0
        %v2528 = vadd.f32 0.0, %v2527
        %v2529 = vpop.f32.mrb[0].mxu0
        %2530 = vmatprep.mubr.f32.mxu0 0.0
        %2531 = vmatmul.mubr.f32.gmra.mrb[0].mxu0 %v2317
        %v2532 = vpop.f32.mrb[0].mxu0
        %v2533 = vadd.f32 0.0, %v2532
        %v2534 = vpop.f32.mrb[0].mxu0
        %2535 = vmatprep.mubr.f32.mxu0 0.0
        %2536 = vmatmul.mubr.f32.gmra.mrb[0].mxu0 %v2318
        %v2537 = vpop.f32.mrb[0].mxu0
        %v2538 = vadd.f32 0.0, %v2537
        %v2539 = vpop.f32.mrb[0].mxu0
        %2540 = vmatprep.mubr.f32.mxu0 0.0
        %2541 = vmatmul.mubr.f32.gmra.mrb[0].mxu0 %v2319
        %v2542 = vpop.f32.mrb[0].mxu0
        %v2543 = vadd.f32 0.0, %v2542
        %v2544 = vpop.f32.mrb[0].mxu0
        %2545 = vmatprep.mubr.f32.mxu0 0.0
        %2546 = vmatmul.mubr.f32.gmra.mrb[0].mxu0 %v2320
        %v2547 = vpop.f32.mrb[0].mxu0
        %v2548 = vadd.f32 0.0, %v2547
        %v2549 = vpop.f32.mrb[0].mxu0
        %2550 = vmatprep.mubr.f32.mxu0 0.0
        %2551 = vmatmul.mubr.f32.gmra.mrb[0].mxu0 %v2321
        %v2552 = vpop.f32.mrb[0].mxu0
        %v2553 = vadd.f32 0.0, %v2552
        %v2554 = vpop.f32.mrb[0].mxu0
        %2555 = vmatprep.mubr.f32.mxu0 0.0
        %2556 = vmatmul.mubr.f32.gmra.mrb[0].mxu0 %v2322
        %v2557 = vpop.f32.mrb[0].mxu0
        %v2558 = vadd.f32 0.0, %v2557
        %v2559 = vpop.f32.mrb[0].mxu0
        %2560 = vmatprep.mubr.f32.mxu0 0.0
        %2561 = vmatmul.mubr.f32.gmra.mrb[0].mxu0 %v2323
        %v2562 = vpop.f32.mrb[0].mxu0
        %v2563 = vadd.f32 0.0, %v2562
        %v2564 = vpop.f32.mrb[0].mxu0
        %2565 = vdwg.mxu0
        %v2566 = vadd.f32 %v2260, %v2408
        %v2567 = vadd.f32 %v2261, %v2413
        %v2568 = vadd.f32 %v2262, %v2418
        %v2569 = vadd.f32 %v2263, %v2423
        %v2570 = vadd.f32 %v2264, %v2428
        %v2571 = vadd.f32 %v2265, %v2433
        %v2572 = vadd.f32 %v2266, %v2438
        %v2573 = vadd.f32 %v2267, %v2443
        %v2574 = vadd.f32 %v2268, %v2448
        %v2575 = vadd.f32 %v2269, %v2453
        %v2576 = vadd.f32 %v2270, %v2458
        %v2577 = vadd.f32 %v2271, %v2463
        %v2578 = vadd.f32 %v2272, %v2468
        %v2579 = vadd.f32 %v2273, %v2473
        %v2580 = vadd.f32 %v2274, %v2478
        %v2581 = vadd.f32 %v2275, %v2483
        %v2582 = vadd.f32 %v2276, %v2488
        %v2583 = vadd.f32 %v2277, %v2493
        %v2584 = vadd.f32 %v2278, %v2498
        %v2585 = vadd.f32 %v2279, %v2503
        %v2586 = vadd.f32 %v2280, %v2508
        %v2587 = vadd.f32 %v2281, %v2513
        %v2588 = vadd.f32 %v2282, %v2518
        %v2589 = vadd.f32 %v2283, %v2523
        %v2590 = vadd.f32 %v2284, %v2528
        %v2591 = vadd.f32 %v2285, %v2533
        %v2592 = vadd.f32 %v2286, %v2538
        %v2593 = vadd.f32 %v2287, %v2543
        %v2594 = vadd.f32 %v2288, %v2548
        %v2595 = vadd.f32 %v2289, %v2553
        %v2596 = vadd.f32 %v2290, %v2558
        %v2597 = vadd.f32 %v2291, %v2563
        %v2598 = vld [vmem:[#allocation2 + $0x14] sm:$0xff]
        %v2599 = vld [vmem:[#allocation2 + $0x1c] sm:$0xff]
        %v2600 = vld [vmem:[#allocation2 + $0x24] sm:$0xff]
        %v2601 = vld [vmem:[#allocation2 + $0x2c] sm:$0xff]
        %v2602 = vld [vmem:[#allocation2 + $0x34] sm:$0xff]
        %v2603 = vld [vmem:[#allocation2 + $0x3c] sm:$0xff]
        %v2604 = vld [vmem:[#allocation2 + $0x44] sm:$0xff]
        %v2605 = vld [vmem:[#allocation2 + $0x4c] sm:$0xff]
        %v2606 = vld [vmem:[#allocation2 + $0x54] sm:$0xff]
        %v2607 = vld [vmem:[#allocation2 + $0x5c] sm:$0xff]
        %v2608 = vld [vmem:[#allocation2 + $0x64] sm:$0xff]
        %v2609 = vld [vmem:[#allocation2 + $0x6c] sm:$0xff]
        %v2610 = vld [vmem:[#allocation2 + $0x74] sm:$0xff]
        %v2611 = vld [vmem:[#allocation2 + $0x7c] sm:$0xff]
        %v2612 = vld [vmem:[#allocation2 + $0x84] sm:$0xff]
        %v2613 = vld [vmem:[#allocation2 + $0x8c] sm:$0xff]
        %v2614 = vld [vmem:[#allocation2 + $0x94] sm:$0xff]
        %v2615 = vld [vmem:[#allocation2 + $0x9c] sm:$0xff]
        %v2616 = vld [vmem:[#allocation2 + $0xa4] sm:$0xff]
        %v2617 = vld [vmem:[#allocation2 + $0xac] sm:$0xff]
        %v2618 = vld [vmem:[#allocation2 + $0xb4] sm:$0xff]
        %v2619 = vld [vmem:[#allocation2 + $0xbc] sm:$0xff]
        %v2620 = vld [vmem:[#allocation2 + $0xc4] sm:$0xff]
        %v2621 = vld [vmem:[#allocation2 + $0xcc] sm:$0xff]
        %v2622 = vld [vmem:[#allocation2 + $0xd4] sm:$0xff]
        %v2623 = vld [vmem:[#allocation2 + $0xdc] sm:$0xff]
        %v2624 = vld [vmem:[#allocation2 + $0xe4] sm:$0xff]
        %v2625 = vld [vmem:[#allocation2 + $0xec] sm:$0xff]
        %v2626 = vld [vmem:[#allocation2 + $0xf4] sm:$0xff]
        %v2627 = vld [vmem:[#allocation2 + $0xfc] sm:$0xff]
        %v2628 = vld [vmem:[#allocation2 + $0x104] sm:$0xff]
        %v2629 = vld [vmem:[#allocation2 + $0x10c] sm:$0xff]
        %s2630 = scalar_lea.vmem %s4, 640
        %v2631 = vld [vmem:[%s2630] sm:$0xff]
        %v2632 = vld [vmem:[%s2630 + $0x8] sm:$0xff]
        %v2633 = vld [vmem:[%s2630 + $0x10] sm:$0xff]
        %v2634 = vld [vmem:[%s2630 + $0x18] sm:$0xff]
        %v2635 = vld [vmem:[%s2630 + $0x20] sm:$0xff]
        %v2636 = vld [vmem:[%s2630 + $0x28] sm:$0xff]
        %v2637 = vld [vmem:[%s2630 + $0x30] sm:$0xff]
        %v2638 = vld [vmem:[%s2630 + $0x38] sm:$0xff]
        %v2639 = vld [vmem:[%s2630 + $0x40] sm:$0xff]
        %v2640 = vld [vmem:[%s2630 + $0x48] sm:$0xff]
        %v2641 = vld [vmem:[%s2630 + $0x50] sm:$0xff]
        %v2642 = vld [vmem:[%s2630 + $0x58] sm:$0xff]
        %v2643 = vld [vmem:[%s2630 + $0x60] sm:$0xff]
        %v2644 = vld [vmem:[%s2630 + $0x68] sm:$0xff]
        %v2645 = vld [vmem:[%s2630 + $0x70] sm:$0xff]
        %v2646 = vld [vmem:[%s2630 + $0x78] sm:$0xff]
        %2647 = vmatprep.subr.mxu0 0.0
        %2648 = vmatpush1.msra.mxu0 %v2631
        %2649 = vmatprep.subr.mxu0 0.0
        %2650 = vmatpush1.msra.mxu0 %v2632
        %2651 = vmatprep.subr.mxu0 0.0
        %2652 = vmatpush1.msra.mxu0 %v2633
        %2653 = vmatprep.subr.mxu0 0.0
        %2654 = vmatpush1.msra.mxu0 %v2634
        %2655 = vmatprep.subr.mxu0 0.0
        %2656 = vmatpush1.msra.mxu0 %v2635
        %2657 = vmatprep.subr.mxu0 0.0
        %2658 = vmatpush1.msra.mxu0 %v2636
        %2659 = vmatprep.subr.mxu0 0.0
        %2660 = vmatpush1.msra.mxu0 %v2637
        %2661 = vmatprep.subr.mxu0 0.0
        %2662 = vmatpush1.msra.mxu0 %v2638
        %2663 = vmatprep.subr.mxu0 0.0
        %2664 = vmatpush1.msra.mxu0 %v2639
        %2665 = vmatprep.subr.mxu0 0.0
        %2666 = vmatpush1.msra.mxu0 %v2640
        %2667 = vmatprep.subr.mxu0 0.0
        %2668 = vmatpush1.msra.mxu0 %v2641
        %2669 = vmatprep.subr.mxu0 0.0
        %2670 = vmatpush1.msra.mxu0 %v2642
        %2671 = vmatprep.subr.mxu0 0.0
        %2672 = vmatpush1.msra.mxu0 %v2643
        %2673 = vmatprep.subr.mxu0 0.0
        %2674 = vmatpush1.msra.mxu0 %v2644
        %2675 = vmatprep.subr.mxu0 0.0
        %2676 = vmatpush1.msra.mxu0 %v2645
        %2677 = vmatprep.subr.mxu0 0.0
        %2678 = vmatpush1.msra.mxu0 %v2646
        %2679 = vmatprep.subr.mxu0 0.0
        %2680 = vmatpush1.msra.mxu0 0.0
        %2681 = vmatprep.subr.mxu0 0.0
        %2682 = vmatpush1.msra.mxu0 0.0
        %2683 = vmatprep.subr.mxu0 0.0
        %2684 = vmatpush1.msra.mxu0 0.0
        %2685 = vmatprep.subr.mxu0 0.0
        %2686 = vmatpush1.msra.mxu0 0.0
        %2687 = vmatprep.subr.mxu0 0.0
        %2688 = vmatpush1.msra.mxu0 0.0
        %2689 = vmatprep.subr.mxu0 0.0
        %2690 = vmatpush1.msra.mxu0 0.0
        %2691 = vmatprep.subr.mxu0 0.0
        %2692 = vmatpush1.msra.mxu0 0.0
        %2693 = vmatprep.subr.mxu0 0.0
        %2694 = vmatpush1.msra.mxu0 0.0
        %2695 = vmatprep.subr.mxu0 0.0
        %2696 = vmatpush1.msra.mxu0 0.0
        %2697 = vmatprep.subr.mxu0 0.0
        %2698 = vmatpush1.msra.mxu0 0.0
        %2699 = vmatprep.subr.mxu0 0.0
        %2700 = vmatpush1.msra.mxu0 0.0
        %2701 = vmatprep.subr.mxu0 0.0
        %2702 = vmatpush1.msra.mxu0 0.0
        %2703 = vmatprep.subr.mxu0 0.0
        %2704 = vmatpush1.msra.mxu0 0.0
        %2705 = vmatprep.subr.mxu0 0.0
        %2706 = vmatpush1.msra.mxu0 0.0
        %2707 = vmatprep.subr.mxu0 0.0
        %2708 = vmatpush1.msra.mxu0 0.0
        %2709 = vmatprep.subr.mxu0 0.0
        %2710 = vmatpush1.msra.mxu0 0.0
        %2711 = vmatprep.mubr.f32.mxu0 0.0
        %2712 = vmatmul.mubr.f32.gmra.mrb[0].mxu0 %v2598
        %v2713 = vpop.f32.mrb[0].mxu0
        %v2714 = vadd.f32 0.0, %v2713
        %v2715 = vpop.f32.mrb[0].mxu0
        %2716 = vmatprep.mubr.f32.mxu0 0.0
        %2717 = vmatmul.mubr.f32.gmra.mrb[0].mxu0 %v2599
        %v2718 = vpop.f32.mrb[0].mxu0
        %v2719 = vadd.f32 0.0, %v2718
        %v2720 = vpop.f32.mrb[0].mxu0
        %2721 = vmatprep.mubr.f32.mxu0 0.0
        %2722 = vmatmul.mubr.f32.gmra.mrb[0].mxu0 %v2600
        %v2723 = vpop.f32.mrb[0].mxu0
        %v2724 = vadd.f32 0.0, %v2723
        %v2725 = vpop.f32.mrb[0].mxu0
        %2726 = vmatprep.mubr.f32.mxu0 0.0
        %2727 = vmatmul.mubr.f32.gmra.mrb[0].mxu0 %v2601
        %v2728 = vpop.f32.mrb[0].mxu0
        %v2729 = vadd.f32 0.0, %v2728
        %v2730 = vpop.f32.mrb[0].mxu0
        %2731 = vmatprep.mubr.f32.mxu0 0.0
        %2732 = vmatmul.mubr.f32.gmra.mrb[0].mxu0 %v2602
        %v2733 = vpop.f32.mrb[0].mxu0
        %v2734 = vadd.f32 0.0, %v2733
        %v2735 = vpop.f32.mrb[0].mxu0
        %2736 = vmatprep.mubr.f32.mxu0 0.0
        %2737 = vmatmul.mubr.f32.gmra.mrb[0].mxu0 %v2603
        %v2738 = vpop.f32.mrb[0].mxu0
        %v2739 = vadd.f32 0.0, %v2738
        %v2740 = vpop.f32.mrb[0].mxu0
        %2741 = vmatprep.mubr.f32.mxu0 0.0
        %2742 = vmatmul.mubr.f32.gmra.mrb[0].mxu0 %v2604
        %v2743 = vpop.f32.mrb[0].mxu0
        %v2744 = vadd.f32 0.0, %v2743
        %v2745 = vpop.f32.mrb[0].mxu0
        %2746 = vmatprep.mubr.f32.mxu0 0.0
        %2747 = vmatmul.mubr.f32.gmra.mrb[0].mxu0 %v2605
        %v2748 = vpop.f32.mrb[0].mxu0
        %v2749 = vadd.f32 0.0, %v2748
        %v2750 = vpop.f32.mrb[0].mxu0
        %2751 = vmatprep.mubr.f32.mxu0 0.0
        %2752 = vmatmul.mubr.f32.gmra.mrb[0].mxu0 %v2606
        %v2753 = vpop.f32.mrb[0].mxu0
        %v2754 = vadd.f32 0.0, %v2753
        %v2755 = vpop.f32.mrb[0].mxu0
        %2756 = vmatprep.mubr.f32.mxu0 0.0
        %2757 = vmatmul.mubr.f32.gmra.mrb[0].mxu0 %v2607
        %v2758 = vpop.f32.mrb[0].mxu0
        %v2759 = vadd.f32 0.0, %v2758
        %v2760 = vpop.f32.mrb[0].mxu0
        %2761 = vmatprep.mubr.f32.mxu0 0.0
        %2762 = vmatmul.mubr.f32.gmra.mrb[0].mxu0 %v2608
        %v2763 = vpop.f32.mrb[0].mxu0
        %v2764 = vadd.f32 0.0, %v2763
        %v2765 = vpop.f32.mrb[0].mxu0
        %2766 = vmatprep.mubr.f32.mxu0 0.0
        %2767 = vmatmul.mubr.f32.gmra.mrb[0].mxu0 %v2609
        %v2768 = vpop.f32.mrb[0].mxu0
        %v2769 = vadd.f32 0.0, %v2768
        %v2770 = vpop.f32.mrb[0].mxu0
        %2771 = vmatprep.mubr.f32.mxu0 0.0
        %2772 = vmatmul.mubr.f32.gmra.mrb[0].mxu0 %v2610
        %v2773 = vpop.f32.mrb[0].mxu0
        %v2774 = vadd.f32 0.0, %v2773
        %v2775 = vpop.f32.mrb[0].mxu0
        %2776 = vmatprep.mubr.f32.mxu0 0.0
        %2777 = vmatmul.mubr.f32.gmra.mrb[0].mxu0 %v2611
        %v2778 = vpop.f32.mrb[0].mxu0
        %v2779 = vadd.f32 0.0, %v2778
        %v2780 = vpop.f32.mrb[0].mxu0
        %2781 = vmatprep.mubr.f32.mxu0 0.0
        %2782 = vmatmul.mubr.f32.gmra.mrb[0].mxu0 %v2612
        %v2783 = vpop.f32.mrb[0].mxu0
        %v2784 = vadd.f32 0.0, %v2783
        %v2785 = vpop.f32.mrb[0].mxu0
        %2786 = vmatprep.mubr.f32.mxu0 0.0
        %2787 = vmatmul.mubr.f32.gmra.mrb[0].mxu0 %v2613
        %v2788 = vpop.f32.mrb[0].mxu0
        %v2789 = vadd.f32 0.0, %v2788
        %v2790 = vpop.f32.mrb[0].mxu0
        %2791 = vmatprep.mubr.f32.mxu0 0.0
        %2792 = vmatmul.mubr.f32.gmra.mrb[0].mxu0 %v2614
        %v2793 = vpop.f32.mrb[0].mxu0
        %v2794 = vadd.f32 0.0, %v2793
        %v2795 = vpop.f32.mrb[0].mxu0
        %2796 = vmatprep.mubr.f32.mxu0 0.0
        %2797 = vmatmul.mubr.f32.gmra.mrb[0].mxu0 %v2615
        %v2798 = vpop.f32.mrb[0].mxu0
        %v2799 = vadd.f32 0.0, %v2798
        %v2800 = vpop.f32.mrb[0].mxu0
        %2801 = vmatprep.mubr.f32.mxu0 0.0
        %2802 = vmatmul.mubr.f32.gmra.mrb[0].mxu0 %v2616
        %v2803 = vpop.f32.mrb[0].mxu0
        %v2804 = vadd.f32 0.0, %v2803
        %v2805 = vpop.f32.mrb[0].mxu0
        %2806 = vmatprep.mubr.f32.mxu0 0.0
        %2807 = vmatmul.mubr.f32.gmra.mrb[0].mxu0 %v2617
        %v2808 = vpop.f32.mrb[0].mxu0
        %v2809 = vadd.f32 0.0, %v2808
        %v2810 = vpop.f32.mrb[0].mxu0
        %2811 = vmatprep.mubr.f32.mxu0 0.0
        %2812 = vmatmul.mubr.f32.gmra.mrb[0].mxu0 %v2618
        %v2813 = vpop.f32.mrb[0].mxu0
        %v2814 = vadd.f32 0.0, %v2813
        %v2815 = vpop.f32.mrb[0].mxu0
        %2816 = vmatprep.mubr.f32.mxu0 0.0
        %2817 = vmatmul.mubr.f32.gmra.mrb[0].mxu0 %v2619
        %v2818 = vpop.f32.mrb[0].mxu0
        %v2819 = vadd.f32 0.0, %v2818
        %v2820 = vpop.f32.mrb[0].mxu0
        %2821 = vmatprep.mubr.f32.mxu0 0.0
        %2822 = vmatmul.mubr.f32.gmra.mrb[0].mxu0 %v2620
        %v2823 = vpop.f32.mrb[0].mxu0
        %v2824 = vadd.f32 0.0, %v2823
        %v2825 = vpop.f32.mrb[0].mxu0
        %2826 = vmatprep.mubr.f32.mxu0 0.0
        %2827 = vmatmul.mubr.f32.gmra.mrb[0].mxu0 %v2621
        %v2828 = vpop.f32.mrb[0].mxu0
        %v2829 = vadd.f32 0.0, %v2828
        %v2830 = vpop.f32.mrb[0].mxu0
        %2831 = vmatprep.mubr.f32.mxu0 0.0
        %2832 = vmatmul.mubr.f32.gmra.mrb[0].mxu0 %v2622
        %v2833 = vpop.f32.mrb[0].mxu0
        %v2834 = vadd.f32 0.0, %v2833
        %v2835 = vpop.f32.mrb[0].mxu0
        %2836 = vmatprep.mubr.f32.mxu0 0.0
        %2837 = vmatmul.mubr.f32.gmra.mrb[0].mxu0 %v2623
        %v2838 = vpop.f32.mrb[0].mxu0
        %v2839 = vadd.f32 0.0, %v2838
        %v2840 = vpop.f32.mrb[0].mxu0
        %2841 = vmatprep.mubr.f32.mxu0 0.0
        %2842 = vmatmul.mubr.f32.gmra.mrb[0].mxu0 %v2624
        %v2843 = vpop.f32.mrb[0].mxu0
        %v2844 = vadd.f32 0.0, %v2843
        %v2845 = vpop.f32.mrb[0].mxu0
        %2846 = vmatprep.mubr.f32.mxu0 0.0
        %2847 = vmatmul.mubr.f32.gmra.mrb[0].mxu0 %v2625
        %v2848 = vpop.f32.mrb[0].mxu0
        %v2849 = vadd.f32 0.0, %v2848
        %v2850 = vpop.f32.mrb[0].mxu0
        %2851 = vmatprep.mubr.f32.mxu0 0.0
        %2852 = vmatmul.mubr.f32.gmra.mrb[0].mxu0 %v2626
        %v2853 = vpop.f32.mrb[0].mxu0
        %v2854 = vadd.f32 0.0, %v2853
        %v2855 = vpop.f32.mrb[0].mxu0
        %2856 = vmatprep.mubr.f32.mxu0 0.0
        %2857 = vmatmul.mubr.f32.gmra.mrb[0].mxu0 %v2627
        %v2858 = vpop.f32.mrb[0].mxu0
        %v2859 = vadd.f32 0.0, %v2858
        %v2860 = vpop.f32.mrb[0].mxu0
        %2861 = vmatprep.mubr.f32.mxu0 0.0
        %2862 = vmatmul.mubr.f32.gmra.mrb[0].mxu0 %v2628
        %v2863 = vpop.f32.mrb[0].mxu0
        %v2864 = vadd.f32 0.0, %v2863
        %v2865 = vpop.f32.mrb[0].mxu0
        %2866 = vmatprep.mubr.f32.mxu0 0.0
        %2867 = vmatmul.mubr.f32.gmra.mrb[0].mxu0 %v2629
        %v2868 = vpop.f32.mrb[0].mxu0
        %v2869 = vadd.f32 0.0, %v2868
        %v2870 = vpop.f32.mrb[0].mxu0
        %2871 = vdwg.mxu0
        %v2872 = vadd.f32 %v2566, %v2714
        %v2873 = vadd.f32 %v2567, %v2719
        %v2874 = vadd.f32 %v2568, %v2724
        %v2875 = vadd.f32 %v2569, %v2729
        %v2876 = vadd.f32 %v2570, %v2734
        %v2877 = vadd.f32 %v2571, %v2739
        %v2878 = vadd.f32 %v2572, %v2744
        %v2879 = vadd.f32 %v2573, %v2749
        %v2880 = vadd.f32 %v2574, %v2754
        %v2881 = vadd.f32 %v2575, %v2759
        %v2882 = vadd.f32 %v2576, %v2764
        %v2883 = vadd.f32 %v2577, %v2769
        %v2884 = vadd.f32 %v2578, %v2774
        %v2885 = vadd.f32 %v2579, %v2779
        %v2886 = vadd.f32 %v2580, %v2784
        %v2887 = vadd.f32 %v2581, %v2789
        %v2888 = vadd.f32 %v2582, %v2794
        %v2889 = vadd.f32 %v2583, %v2799
        %v2890 = vadd.f32 %v2584, %v2804
        %v2891 = vadd.f32 %v2585, %v2809
        %v2892 = vadd.f32 %v2586, %v2814
        %v2893 = vadd.f32 %v2587, %v2819
        %v2894 = vadd.f32 %v2588, %v2824
        %v2895 = vadd.f32 %v2589, %v2829
        %v2896 = vadd.f32 %v2590, %v2834
        %v2897 = vadd.f32 %v2591, %v2839
        %v2898 = vadd.f32 %v2592, %v2844
        %v2899 = vadd.f32 %v2593, %v2849
        %v2900 = vadd.f32 %v2594, %v2854
        %v2901 = vadd.f32 %v2595, %v2859
        %v2902 = vadd.f32 %v2596, %v2864
        %v2903 = vadd.f32 %v2597, %v2869
        %v2904 = vld [vmem:[#allocation2 + $0x24] sm:$0xff]
        %v2905 = vld [vmem:[#allocation2 + $0x2c] sm:$0xff]
        %v2906 = vld [vmem:[#allocation2 + $0x34] sm:$0xff]
        %v2907 = vld [vmem:[#allocation2 + $0x3c] sm:$0xff]
        %v2908 = vld [vmem:[#allocation2 + $0x44] sm:$0xff]
        %v2909 = vld [vmem:[#allocation2 + $0x4c] sm:$0xff]
        %v2910 = vld [vmem:[#allocation2 + $0x54] sm:$0xff]
        %v2911 = vld [vmem:[#allocation2 + $0x5c] sm:$0xff]
        %v2912 = vld [vmem:[#allocation2 + $0x64] sm:$0xff]
        %v2913 = vld [vmem:[#allocation2 + $0x6c] sm:$0xff]
        %v2914 = vld [vmem:[#allocation2 + $0x74] sm:$0xff]
        %v2915 = vld [vmem:[#allocation2 + $0x7c] sm:$0xff]
        %v2916 = vld [vmem:[#allocation2 + $0x84] sm:$0xff]
        %v2917 = vld [vmem:[#allocation2 + $0x8c] sm:$0xff]
        %v2918 = vld [vmem:[#allocation2 + $0x94] sm:$0xff]
        %v2919 = vld [vmem:[#allocation2 + $0x9c] sm:$0xff]
        %v2920 = vld [vmem:[#allocation2 + $0xa4] sm:$0xff]
        %v2921 = vld [vmem:[#allocation2 + $0xac] sm:$0xff]
        %v2922 = vld [vmem:[#allocation2 + $0xb4] sm:$0xff]
        %v2923 = vld [vmem:[#allocation2 + $0xbc] sm:$0xff]
        %v2924 = vld [vmem:[#allocation2 + $0xc4] sm:$0xff]
        %v2925 = vld [vmem:[#allocation2 + $0xcc] sm:$0xff]
        %v2926 = vld [vmem:[#allocation2 + $0xd4] sm:$0xff]
        %v2927 = vld [vmem:[#allocation2 + $0xdc] sm:$0xff]
        %v2928 = vld [vmem:[#allocation2 + $0xe4] sm:$0xff]
        %v2929 = vld [vmem:[#allocation2 + $0xec] sm:$0xff]
        %v2930 = vld [vmem:[#allocation2 + $0xf4] sm:$0xff]
        %v2931 = vld [vmem:[#allocation2 + $0xfc] sm:$0xff]
        %v2932 = vld [vmem:[#allocation2 + $0x104] sm:$0xff]
        %v2933 = vld [vmem:[#allocation2 + $0x10c] sm:$0xff]
        %v2934 = vld [vmem:[#allocation2 + $0x114] sm:$0xff]
        %v2935 = vld [vmem:[#allocation2 + $0x11c] sm:$0xff]
        %s2936 = scalar_lea.vmem %s4, 768
        %v2937 = vld [vmem:[%s2936] sm:$0xff]
        %v2938 = vld [vmem:[%s2936 + $0x8] sm:$0xff]
        %v2939 = vld [vmem:[%s2936 + $0x10] sm:$0xff]
        %v2940 = vld [vmem:[%s2936 + $0x18] sm:$0xff]
        %v2941 = vld [vmem:[%s2936 + $0x20] sm:$0xff]
        %v2942 = vld [vmem:[%s2936 + $0x28] sm:$0xff]
        %v2943 = vld [vmem:[%s2936 + $0x30] sm:$0xff]
        %v2944 = vld [vmem:[%s2936 + $0x38] sm:$0xff]
        %v2945 = vld [vmem:[%s2936 + $0x40] sm:$0xff]
        %v2946 = vld [vmem:[%s2936 + $0x48] sm:$0xff]
        %v2947 = vld [vmem:[%s2936 + $0x50] sm:$0xff]
        %v2948 = vld [vmem:[%s2936 + $0x58] sm:$0xff]
        %v2949 = vld [vmem:[%s2936 + $0x60] sm:$0xff]
        %v2950 = vld [vmem:[%s2936 + $0x68] sm:$0xff]
        %v2951 = vld [vmem:[%s2936 + $0x70] sm:$0xff]
        %v2952 = vld [vmem:[%s2936 + $0x78] sm:$0xff]
        %2953 = vmatprep.subr.mxu0 0.0
        %2954 = vmatpush1.msra.mxu0 %v2937
        %2955 = vmatprep.subr.mxu0 0.0
        %2956 = vmatpush1.msra.mxu0 %v2938
        %2957 = vmatprep.subr.mxu0 0.0
        %2958 = vmatpush1.msra.mxu0 %v2939
        %2959 = vmatprep.subr.mxu0 0.0
        %2960 = vmatpush1.msra.mxu0 %v2940
        %2961 = vmatprep.subr.mxu0 0.0
        %2962 = vmatpush1.msra.mxu0 %v2941
        %2963 = vmatprep.subr.mxu0 0.0
        %2964 = vmatpush1.msra.mxu0 %v2942
        %2965 = vmatprep.subr.mxu0 0.0
        %2966 = vmatpush1.msra.mxu0 %v2943
        %2967 = vmatprep.subr.mxu0 0.0
        %2968 = vmatpush1.msra.mxu0 %v2944
        %2969 = vmatprep.subr.mxu0 0.0
        %2970 = vmatpush1.msra.mxu0 %v2945
        %2971 = vmatprep.subr.mxu0 0.0
        %2972 = vmatpush1.msra.mxu0 %v2946
        %2973 = vmatprep.subr.mxu0 0.0
        %2974 = vmatpush1.msra.mxu0 %v2947
        %2975 = vmatprep.subr.mxu0 0.0
        %2976 = vmatpush1.msra.mxu0 %v2948
        %2977 = vmatprep.subr.mxu0 0.0
        %2978 = vmatpush1.msra.mxu0 %v2949
        %2979 = vmatprep.subr.mxu0 0.0
        %2980 = vmatpush1.msra.mxu0 %v2950
        %2981 = vmatprep.subr.mxu0 0.0
        %2982 = vmatpush1.msra.mxu0 %v2951
        %2983 = vmatprep.subr.mxu0 0.0
        %2984 = vmatpush1.msra.mxu0 %v2952
        %2985 = vmatprep.subr.mxu0 0.0
        %2986 = vmatpush1.msra.mxu0 0.0
        %2987 = vmatprep.subr.mxu0 0.0
        %2988 = vmatpush1.msra.mxu0 0.0
        %2989 = vmatprep.subr.mxu0 0.0
        %2990 = vmatpush1.msra.mxu0 0.0
        %2991 = vmatprep.subr.mxu0 0.0
        %2992 = vmatpush1.msra.mxu0 0.0
        %2993 = vmatprep.subr.mxu0 0.0
        %2994 = vmatpush1.msra.mxu0 0.0
        %2995 = vmatprep.subr.mxu0 0.0
        %2996 = vmatpush1.msra.mxu0 0.0
        %2997 = vmatprep.subr.mxu0 0.0
        %2998 = vmatpush1.msra.mxu0 0.0
        %2999 = vmatprep.subr.mxu0 0.0
        %3000 = vmatpush1.msra.mxu0 0.0
        %3001 = vmatprep.subr.mxu0 0.0
        %3002 = vmatpush1.msra.mxu0 0.0
        %3003 = vmatprep.subr.mxu0 0.0
        %3004 = vmatpush1.msra.mxu0 0.0
        %3005 = vmatprep.subr.mxu0 0.0
        %3006 = vmatpush1.msra.mxu0 0.0
        %3007 = vmatprep.subr.mxu0 0.0
        %3008 = vmatpush1.msra.mxu0 0.0
        %3009 = vmatprep.subr.mxu0 0.0
        %3010 = vmatpush1.msra.mxu0 0.0
        %3011 = vmatprep.subr.mxu0 0.0
        %3012 = vmatpush1.msra.mxu0 0.0
        %3013 = vmatprep.subr.mxu0 0.0
        %3014 = vmatpush1.msra.mxu0 0.0
        %3015 = vmatprep.subr.mxu0 0.0
        %3016 = vmatpush1.msra.mxu0 0.0
        %3017 = vmatprep.mubr.f32.mxu0 0.0
        %3018 = vmatmul.mubr.f32.gmra.mrb[0].mxu0 %v2904
        %v3019 = vpop.f32.mrb[0].mxu0
        %v3020 = vadd.f32 0.0, %v3019
        %v3021 = vpop.f32.mrb[0].mxu0
        %3022 = vmatprep.mubr.f32.mxu0 0.0
        %3023 = vmatmul.mubr.f32.gmra.mrb[0].mxu0 %v2905
        %v3024 = vpop.f32.mrb[0].mxu0
        %v3025 = vadd.f32 0.0, %v3024
        %v3026 = vpop.f32.mrb[0].mxu0
        %3027 = vmatprep.mubr.f32.mxu0 0.0
        %3028 = vmatmul.mubr.f32.gmra.mrb[0].mxu0 %v2906
        %v3029 = vpop.f32.mrb[0].mxu0
        %v3030 = vadd.f32 0.0, %v3029
        %v3031 = vpop.f32.mrb[0].mxu0
        %3032 = vmatprep.mubr.f32.mxu0 0.0
        %3033 = vmatmul.mubr.f32.gmra.mrb[0].mxu0 %v2907
        %v3034 = vpop.f32.mrb[0].mxu0
        %v3035 = vadd.f32 0.0, %v3034
        %v3036 = vpop.f32.mrb[0].mxu0
        %3037 = vmatprep.mubr.f32.mxu0 0.0
        %3038 = vmatmul.mubr.f32.gmra.mrb[0].mxu0 %v2908
        %v3039 = vpop.f32.mrb[0].mxu0
        %v3040 = vadd.f32 0.0, %v3039
        %v3041 = vpop.f32.mrb[0].mxu0
        %3042 = vmatprep.mubr.f32.mxu0 0.0
        %3043 = vmatmul.mubr.f32.gmra.mrb[0].mxu0 %v2909
        %v3044 = vpop.f32.mrb[0].mxu0
        %v3045 = vadd.f32 0.0, %v3044
        %v3046 = vpop.f32.mrb[0].mxu0
        %3047 = vmatprep.mubr.f32.mxu0 0.0
        %3048 = vmatmul.mubr.f32.gmra.mrb[0].mxu0 %v2910
        %v3049 = vpop.f32.mrb[0].mxu0
        %v3050 = vadd.f32 0.0, %v3049
        %v3051 = vpop.f32.mrb[0].mxu0
        %3052 = vmatprep.mubr.f32.mxu0 0.0
        %3053 = vmatmul.mubr.f32.gmra.mrb[0].mxu0 %v2911
        %v3054 = vpop.f32.mrb[0].mxu0
        %v3055 = vadd.f32 0.0, %v3054
        %v3056 = vpop.f32.mrb[0].mxu0
        %3057 = vmatprep.mubr.f32.mxu0 0.0
        %3058 = vmatmul.mubr.f32.gmra.mrb[0].mxu0 %v2912
        %v3059 = vpop.f32.mrb[0].mxu0
        %v3060 = vadd.f32 0.0, %v3059
        %v3061 = vpop.f32.mrb[0].mxu0
        %3062 = vmatprep.mubr.f32.mxu0 0.0
        %3063 = vmatmul.mubr.f32.gmra.mrb[0].mxu0 %v2913
        %v3064 = vpop.f32.mrb[0].mxu0
        %v3065 = vadd.f32 0.0, %v3064
        %v3066 = vpop.f32.mrb[0].mxu0
        %3067 = vmatprep.mubr.f32.mxu0 0.0
        %3068 = vmatmul.mubr.f32.gmra.mrb[0].mxu0 %v2914
        %v3069 = vpop.f32.mrb[0].mxu0
        %v3070 = vadd.f32 0.0, %v3069
        %v3071 = vpop.f32.mrb[0].mxu0
        %3072 = vmatprep.mubr.f32.mxu0 0.0
        %3073 = vmatmul.mubr.f32.gmra.mrb[0].mxu0 %v2915
        %v3074 = vpop.f32.mrb[0].mxu0
        %v3075 = vadd.f32 0.0, %v3074
        %v3076 = vpop.f32.mrb[0].mxu0
        %3077 = vmatprep.mubr.f32.mxu0 0.0
        %3078 = vmatmul.mubr.f32.gmra.mrb[0].mxu0 %v2916
        %v3079 = vpop.f32.mrb[0].mxu0
        %v3080 = vadd.f32 0.0, %v3079
        %v3081 = vpop.f32.mrb[0].mxu0
        %3082 = vmatprep.mubr.f32.mxu0 0.0
        %3083 = vmatmul.mubr.f32.gmra.mrb[0].mxu0 %v2917
        %v3084 = vpop.f32.mrb[0].mxu0
        %v3085 = vadd.f32 0.0, %v3084
        %v3086 = vpop.f32.mrb[0].mxu0
        %3087 = vmatprep.mubr.f32.mxu0 0.0
        %3088 = vmatmul.mubr.f32.gmra.mrb[0].mxu0 %v2918
        %v3089 = vpop.f32.mrb[0].mxu0
        %v3090 = vadd.f32 0.0, %v3089
        %v3091 = vpop.f32.mrb[0].mxu0
        %3092 = vmatprep.mubr.f32.mxu0 0.0
        %3093 = vmatmul.mubr.f32.gmra.mrb[0].mxu0 %v2919
        %v3094 = vpop.f32.mrb[0].mxu0
        %v3095 = vadd.f32 0.0, %v3094
        %v3096 = vpop.f32.mrb[0].mxu0
        %3097 = vmatprep.mubr.f32.mxu0 0.0
        %3098 = vmatmul.mubr.f32.gmra.mrb[0].mxu0 %v2920
        %v3099 = vpop.f32.mrb[0].mxu0
        %v3100 = vadd.f32 0.0, %v3099
        %v3101 = vpop.f32.mrb[0].mxu0
        %3102 = vmatprep.mubr.f32.mxu0 0.0
        %3103 = vmatmul.mubr.f32.gmra.mrb[0].mxu0 %v2921
        %v3104 = vpop.f32.mrb[0].mxu0
        %v3105 = vadd.f32 0.0, %v3104
        %v3106 = vpop.f32.mrb[0].mxu0
        %3107 = vmatprep.mubr.f32.mxu0 0.0
        %3108 = vmatmul.mubr.f32.gmra.mrb[0].mxu0 %v2922
        %v3109 = vpop.f32.mrb[0].mxu0
        %v3110 = vadd.f32 0.0, %v3109
        %v3111 = vpop.f32.mrb[0].mxu0
        %3112 = vmatprep.mubr.f32.mxu0 0.0
        %3113 = vmatmul.mubr.f32.gmra.mrb[0].mxu0 %v2923
        %v3114 = vpop.f32.mrb[0].mxu0
        %v3115 = vadd.f32 0.0, %v3114
        %v3116 = vpop.f32.mrb[0].mxu0
        %3117 = vmatprep.mubr.f32.mxu0 0.0
        %3118 = vmatmul.mubr.f32.gmra.mrb[0].mxu0 %v2924
        %v3119 = vpop.f32.mrb[0].mxu0
        %v3120 = vadd.f32 0.0, %v3119
        %v3121 = vpop.f32.mrb[0].mxu0
        %3122 = vmatprep.mubr.f32.mxu0 0.0
        %3123 = vmatmul.mubr.f32.gmra.mrb[0].mxu0 %v2925
        %v3124 = vpop.f32.mrb[0].mxu0
        %v3125 = vadd.f32 0.0, %v3124
        %v3126 = vpop.f32.mrb[0].mxu0
        %3127 = vmatprep.mubr.f32.mxu0 0.0
        %3128 = vmatmul.mubr.f32.gmra.mrb[0].mxu0 %v2926
        %v3129 = vpop.f32.mrb[0].mxu0
        %v3130 = vadd.f32 0.0, %v3129
        %v3131 = vpop.f32.mrb[0].mxu0
        %3132 = vmatprep.mubr.f32.mxu0 0.0
        %3133 = vmatmul.mubr.f32.gmra.mrb[0].mxu0 %v2927
        %v3134 = vpop.f32.mrb[0].mxu0
        %v3135 = vadd.f32 0.0, %v3134
        %v3136 = vpop.f32.mrb[0].mxu0
        %3137 = vmatprep.mubr.f32.mxu0 0.0
        %3138 = vmatmul.mubr.f32.gmra.mrb[0].mxu0 %v2928
        %v3139 = vpop.f32.mrb[0].mxu0
        %v3140 = vadd.f32 0.0, %v3139
        %v3141 = vpop.f32.mrb[0].mxu0
        %3142 = vmatprep.mubr.f32.mxu0 0.0
        %3143 = vmatmul.mubr.f32.gmra.mrb[0].mxu0 %v2929
        %v3144 = vpop.f32.mrb[0].mxu0
        %v3145 = vadd.f32 0.0, %v3144
        %v3146 = vpop.f32.mrb[0].mxu0
        %3147 = vmatprep.mubr.f32.mxu0 0.0
        %3148 = vmatmul.mubr.f32.gmra.mrb[0].mxu0 %v2930
        %v3149 = vpop.f32.mrb[0].mxu0
        %v3150 = vadd.f32 0.0, %v3149
        %v3151 = vpop.f32.mrb[0].mxu0
        %3152 = vmatprep.mubr.f32.mxu0 0.0
        %3153 = vmatmul.mubr.f32.gmra.mrb[0].mxu0 %v2931
        %v3154 = vpop.f32.mrb[0].mxu0
        %v3155 = vadd.f32 0.0, %v3154
        %v3156 = vpop.f32.mrb[0].mxu0
        %3157 = vmatprep.mubr.f32.mxu0 0.0
        %3158 = vmatmul.mubr.f32.gmra.mrb[0].mxu0 %v2932
        %v3159 = vpop.f32.mrb[0].mxu0
        %v3160 = vadd.f32 0.0, %v3159
        %v3161 = vpop.f32.mrb[0].mxu0
        %3162 = vmatprep.mubr.f32.mxu0 0.0
        %3163 = vmatmul.mubr.f32.gmra.mrb[0].mxu0 %v2933
        %v3164 = vpop.f32.mrb[0].mxu0
        %v3165 = vadd.f32 0.0, %v3164
        %v3166 = vpop.f32.mrb[0].mxu0
        %3167 = vmatprep.mubr.f32.mxu0 0.0
        %3168 = vmatmul.mubr.f32.gmra.mrb[0].mxu0 %v2934
        %v3169 = vpop.f32.mrb[0].mxu0
        %v3170 = vadd.f32 0.0, %v3169
        %v3171 = vpop.f32.mrb[0].mxu0
        %3172 = vmatprep.mubr.f32.mxu0 0.0
        %3173 = vmatmul.mubr.f32.gmra.mrb[0].mxu0 %v2935
        %v3174 = vpop.f32.mrb[0].mxu0
        %v3175 = vadd.f32 0.0, %v3174
        %v3176 = vpop.f32.mrb[0].mxu0
        %3177 = vdwg.mxu0
        %v3178 = vadd.f32 %v2872, %v3020
        %v3179 = vadd.f32 %v2873, %v3025
        %v3180 = vadd.f32 %v2874, %v3030
        %v3181 = vadd.f32 %v2875, %v3035
        %v3182 = vadd.f32 %v2876, %v3040
        %v3183 = vadd.f32 %v2877, %v3045
        %v3184 = vadd.f32 %v2878, %v3050
        %v3185 = vadd.f32 %v2879, %v3055
        %v3186 = vadd.f32 %v2880, %v3060
        %v3187 = vadd.f32 %v2881, %v3065
        %v3188 = vadd.f32 %v2882, %v3070
        %v3189 = vadd.f32 %v2883, %v3075
        %v3190 = vadd.f32 %v2884, %v3080
        %v3191 = vadd.f32 %v2885, %v3085
        %v3192 = vadd.f32 %v2886, %v3090
        %v3193 = vadd.f32 %v2887, %v3095
        %v3194 = vadd.f32 %v2888, %v3100
        %v3195 = vadd.f32 %v2889, %v3105
        %v3196 = vadd.f32 %v2890, %v3110
        %v3197 = vadd.f32 %v2891, %v3115
        %v3198 = vadd.f32 %v2892, %v3120
        %v3199 = vadd.f32 %v2893, %v3125
        %v3200 = vadd.f32 %v2894, %v3130
        %v3201 = vadd.f32 %v2895, %v3135
        %v3202 = vadd.f32 %v2896, %v3140
        %v3203 = vadd.f32 %v2897, %v3145
        %v3204 = vadd.f32 %v2898, %v3150
        %v3205 = vadd.f32 %v2899, %v3155
        %v3206 = vadd.f32 %v2900, %v3160
        %v3207 = vadd.f32 %v2901, %v3165
        %v3208 = vadd.f32 %v2902, %v3170
        %v3209 = vadd.f32 %v2903, %v3175
        %v3210 = vld [vmem:[#allocation2 + $0x25] sm:$0xff]
        %v3211 = vld [vmem:[#allocation2 + $0x2d] sm:$0xff]
        %v3212 = vld [vmem:[#allocation2 + $0x35] sm:$0xff]
        %v3213 = vld [vmem:[#allocation2 + $0x3d] sm:$0xff]
        %v3214 = vld [vmem:[#allocation2 + $0x45] sm:$0xff]
        %v3215 = vld [vmem:[#allocation2 + $0x4d] sm:$0xff]
        %v3216 = vld [vmem:[#allocation2 + $0x55] sm:$0xff]
        %v3217 = vld [vmem:[#allocation2 + $0x5d] sm:$0xff]
        %v3218 = vld [vmem:[#allocation2 + $0x65] sm:$0xff]
        %v3219 = vld [vmem:[#allocation2 + $0x6d] sm:$0xff]
        %v3220 = vld [vmem:[#allocation2 + $0x75] sm:$0xff]
        %v3221 = vld [vmem:[#allocation2 + $0x7d] sm:$0xff]
        %v3222 = vld [vmem:[#allocation2 + $0x85] sm:$0xff]
        %v3223 = vld [vmem:[#allocation2 + $0x8d] sm:$0xff]
        %v3224 = vld [vmem:[#allocation2 + $0x95] sm:$0xff]
        %v3225 = vld [vmem:[#allocation2 + $0x9d] sm:$0xff]
        %v3226 = vld [vmem:[#allocation2 + $0xa5] sm:$0xff]
        %v3227 = vld [vmem:[#allocation2 + $0xad] sm:$0xff]
        %v3228 = vld [vmem:[#allocation2 + $0xb5] sm:$0xff]
        %v3229 = vld [vmem:[#allocation2 + $0xbd] sm:$0xff]
        %v3230 = vld [vmem:[#allocation2 + $0xc5] sm:$0xff]
        %v3231 = vld [vmem:[#allocation2 + $0xcd] sm:$0xff]
        %v3232 = vld [vmem:[#allocation2 + $0xd5] sm:$0xff]
        %v3233 = vld [vmem:[#allocation2 + $0xdd] sm:$0xff]
        %v3234 = vld [vmem:[#allocation2 + $0xe5] sm:$0xff]
        %v3235 = vld [vmem:[#allocation2 + $0xed] sm:$0xff]
        %v3236 = vld [vmem:[#allocation2 + $0xf5] sm:$0xff]
        %v3237 = vld [vmem:[#allocation2 + $0xfd] sm:$0xff]
        %v3238 = vld [vmem:[#allocation2 + $0x105] sm:$0xff]
        %v3239 = vld [vmem:[#allocation2 + $0x10d] sm:$0xff]
        %v3240 = vld [vmem:[#allocation2 + $0x115] sm:$0xff]
        %v3241 = vld [vmem:[#allocation2 + $0x11d] sm:$0xff]
        %s3242 = scalar_lea.vmem %s4, 896
        %v3243 = vld [vmem:[%s3242] sm:$0xff]
        %v3244 = vld [vmem:[%s3242 + $0x8] sm:$0xff]
        %v3245 = vld [vmem:[%s3242 + $0x10] sm:$0xff]
        %v3246 = vld [vmem:[%s3242 + $0x18] sm:$0xff]
        %v3247 = vld [vmem:[%s3242 + $0x20] sm:$0xff]
        %v3248 = vld [vmem:[%s3242 + $0x28] sm:$0xff]
        %v3249 = vld [vmem:[%s3242 + $0x30] sm:$0xff]
        %v3250 = vld [vmem:[%s3242 + $0x38] sm:$0xff]
        %v3251 = vld [vmem:[%s3242 + $0x40] sm:$0xff]
        %v3252 = vld [vmem:[%s3242 + $0x48] sm:$0xff]
        %v3253 = vld [vmem:[%s3242 + $0x50] sm:$0xff]
        %v3254 = vld [vmem:[%s3242 + $0x58] sm:$0xff]
        %v3255 = vld [vmem:[%s3242 + $0x60] sm:$0xff]
        %v3256 = vld [vmem:[%s3242 + $0x68] sm:$0xff]
        %v3257 = vld [vmem:[%s3242 + $0x70] sm:$0xff]
        %v3258 = vld [vmem:[%s3242 + $0x78] sm:$0xff]
        %3259 = vmatprep.subr.mxu0 0.0
        %3260 = vmatpush1.msra.mxu0 %v3243
        %3261 = vmatprep.subr.mxu0 0.0
        %3262 = vmatpush1.msra.mxu0 %v3244
        %3263 = vmatprep.subr.mxu0 0.0
        %3264 = vmatpush1.msra.mxu0 %v3245
        %3265 = vmatprep.subr.mxu0 0.0
        %3266 = vmatpush1.msra.mxu0 %v3246
        %3267 = vmatprep.subr.mxu0 0.0
        %3268 = vmatpush1.msra.mxu0 %v3247
        %3269 = vmatprep.subr.mxu0 0.0
        %3270 = vmatpush1.msra.mxu0 %v3248
        %3271 = vmatprep.subr.mxu0 0.0
        %3272 = vmatpush1.msra.mxu0 %v3249
        %3273 = vmatprep.subr.mxu0 0.0
        %3274 = vmatpush1.msra.mxu0 %v3250
        %3275 = vmatprep.subr.mxu0 0.0
        %3276 = vmatpush1.msra.mxu0 %v3251
        %3277 = vmatprep.subr.mxu0 0.0
        %3278 = vmatpush1.msra.mxu0 %v3252
        %3279 = vmatprep.subr.mxu0 0.0
        %3280 = vmatpush1.msra.mxu0 %v3253
        %3281 = vmatprep.subr.mxu0 0.0
        %3282 = vmatpush1.msra.mxu0 %v3254
        %3283 = vmatprep.subr.mxu0 0.0
        %3284 = vmatpush1.msra.mxu0 %v3255
        %3285 = vmatprep.subr.mxu0 0.0
        %3286 = vmatpush1.msra.mxu0 %v3256
        %3287 = vmatprep.subr.mxu0 0.0
        %3288 = vmatpush1.msra.mxu0 %v3257
        %3289 = vmatprep.subr.mxu0 0.0
        %3290 = vmatpush1.msra.mxu0 %v3258
        %3291 = vmatprep.subr.mxu0 0.0
        %3292 = vmatpush1.msra.mxu0 0.0
        %3293 = vmatprep.subr.mxu0 0.0
        %3294 = vmatpush1.msra.mxu0 0.0
        %3295 = vmatprep.subr.mxu0 0.0
        %3296 = vmatpush1.msra.mxu0 0.0
        %3297 = vmatprep.subr.mxu0 0.0
        %3298 = vmatpush1.msra.mxu0 0.0
        %3299 = vmatprep.subr.mxu0 0.0
        %3300 = vmatpush1.msra.mxu0 0.0
        %3301 = vmatprep.subr.mxu0 0.0
        %3302 = vmatpush1.msra.mxu0 0.0
        %3303 = vmatprep.subr.mxu0 0.0
        %3304 = vmatpush1.msra.mxu0 0.0
        %3305 = vmatprep.subr.mxu0 0.0
        %3306 = vmatpush1.msra.mxu0 0.0
        %3307 = vmatprep.subr.mxu0 0.0
        %3308 = vmatpush1.msra.mxu0 0.0
        %3309 = vmatprep.subr.mxu0 0.0
        %3310 = vmatpush1.msra.mxu0 0.0
        %3311 = vmatprep.subr.mxu0 0.0
        %3312 = vmatpush1.msra.mxu0 0.0
        %3313 = vmatprep.subr.mxu0 0.0
        %3314 = vmatpush1.msra.mxu0 0.0
        %3315 = vmatprep.subr.mxu0 0.0
        %3316 = vmatpush1.msra.mxu0 0.0
        %3317 = vmatprep.subr.mxu0 0.0
        %3318 = vmatpush1.msra.mxu0 0.0
        %3319 = vmatprep.subr.mxu0 0.0
        %3320 = vmatpush1.msra.mxu0 0.0
        %3321 = vmatprep.subr.mxu0 0.0
        %3322 = vmatpush1.msra.mxu0 0.0
        %3323 = vmatprep.mubr.f32.mxu0 0.0
        %3324 = vmatmul.mubr.f32.gmra.mrb[0].mxu0 %v3210
        %v3325 = vpop.f32.mrb[0].mxu0
        %v3326 = vadd.f32 0.0, %v3325
        %v3327 = vpop.f32.mrb[0].mxu0
        %3328 = vmatprep.mubr.f32.mxu0 0.0
        %3329 = vmatmul.mubr.f32.gmra.mrb[0].mxu0 %v3211
        %v3330 = vpop.f32.mrb[0].mxu0
        %v3331 = vadd.f32 0.0, %v3330
        %v3332 = vpop.f32.mrb[0].mxu0
        %3333 = vmatprep.mubr.f32.mxu0 0.0
        %3334 = vmatmul.mubr.f32.gmra.mrb[0].mxu0 %v3212
        %v3335 = vpop.f32.mrb[0].mxu0
        %v3336 = vadd.f32 0.0, %v3335
        %v3337 = vpop.f32.mrb[0].mxu0
        %3338 = vmatprep.mubr.f32.mxu0 0.0
        %3339 = vmatmul.mubr.f32.gmra.mrb[0].mxu0 %v3213
        %v3340 = vpop.f32.mrb[0].mxu0
        %v3341 = vadd.f32 0.0, %v3340
        %v3342 = vpop.f32.mrb[0].mxu0
        %3343 = vmatprep.mubr.f32.mxu0 0.0
        %3344 = vmatmul.mubr.f32.gmra.mrb[0].mxu0 %v3214
        %v3345 = vpop.f32.mrb[0].mxu0
        %v3346 = vadd.f32 0.0, %v3345
        %v3347 = vpop.f32.mrb[0].mxu0
        %3348 = vmatprep.mubr.f32.mxu0 0.0
        %3349 = vmatmul.mubr.f32.gmra.mrb[0].mxu0 %v3215
        %v3350 = vpop.f32.mrb[0].mxu0
        %v3351 = vadd.f32 0.0, %v3350
        %v3352 = vpop.f32.mrb[0].mxu0
        %3353 = vmatprep.mubr.f32.mxu0 0.0
        %3354 = vmatmul.mubr.f32.gmra.mrb[0].mxu0 %v3216
        %v3355 = vpop.f32.mrb[0].mxu0
        %v3356 = vadd.f32 0.0, %v3355
        %v3357 = vpop.f32.mrb[0].mxu0
        %3358 = vmatprep.mubr.f32.mxu0 0.0
        %3359 = vmatmul.mubr.f32.gmra.mrb[0].mxu0 %v3217
        %v3360 = vpop.f32.mrb[0].mxu0
        %v3361 = vadd.f32 0.0, %v3360
        %v3362 = vpop.f32.mrb[0].mxu0
        %3363 = vmatprep.mubr.f32.mxu0 0.0
        %3364 = vmatmul.mubr.f32.gmra.mrb[0].mxu0 %v3218
        %v3365 = vpop.f32.mrb[0].mxu0
        %v3366 = vadd.f32 0.0, %v3365
        %v3367 = vpop.f32.mrb[0].mxu0
        %3368 = vmatprep.mubr.f32.mxu0 0.0
        %3369 = vmatmul.mubr.f32.gmra.mrb[0].mxu0 %v3219
        %v3370 = vpop.f32.mrb[0].mxu0
        %v3371 = vadd.f32 0.0, %v3370
        %v3372 = vpop.f32.mrb[0].mxu0
        %3373 = vmatprep.mubr.f32.mxu0 0.0
        %3374 = vmatmul.mubr.f32.gmra.mrb[0].mxu0 %v3220
        %v3375 = vpop.f32.mrb[0].mxu0
        %v3376 = vadd.f32 0.0, %v3375
        %v3377 = vpop.f32.mrb[0].mxu0
        %3378 = vmatprep.mubr.f32.mxu0 0.0
        %3379 = vmatmul.mubr.f32.gmra.mrb[0].mxu0 %v3221
        %v3380 = vpop.f32.mrb[0].mxu0
        %v3381 = vadd.f32 0.0, %v3380
        %v3382 = vpop.f32.mrb[0].mxu0
        %3383 = vmatprep.mubr.f32.mxu0 0.0
        %3384 = vmatmul.mubr.f32.gmra.mrb[0].mxu0 %v3222
        %v3385 = vpop.f32.mrb[0].mxu0
        %v3386 = vadd.f32 0.0, %v3385
        %v3387 = vpop.f32.mrb[0].mxu0
        %3388 = vmatprep.mubr.f32.mxu0 0.0
        %3389 = vmatmul.mubr.f32.gmra.mrb[0].mxu0 %v3223
        %v3390 = vpop.f32.mrb[0].mxu0
        %v3391 = vadd.f32 0.0, %v3390
        %v3392 = vpop.f32.mrb[0].mxu0
        %3393 = vmatprep.mubr.f32.mxu0 0.0
        %3394 = vmatmul.mubr.f32.gmra.mrb[0].mxu0 %v3224
        %v3395 = vpop.f32.mrb[0].mxu0
        %v3396 = vadd.f32 0.0, %v3395
        %v3397 = vpop.f32.mrb[0].mxu0
        %3398 = vmatprep.mubr.f32.mxu0 0.0
        %3399 = vmatmul.mubr.f32.gmra.mrb[0].mxu0 %v3225
        %v3400 = vpop.f32.mrb[0].mxu0
        %v3401 = vadd.f32 0.0, %v3400
        %v3402 = vpop.f32.mrb[0].mxu0
        %3403 = vmatprep.mubr.f32.mxu0 0.0
        %3404 = vmatmul.mubr.f32.gmra.mrb[0].mxu0 %v3226
        %v3405 = vpop.f32.mrb[0].mxu0
        %v3406 = vadd.f32 0.0, %v3405
        %v3407 = vpop.f32.mrb[0].mxu0
        %3408 = vmatprep.mubr.f32.mxu0 0.0
        %3409 = vmatmul.mubr.f32.gmra.mrb[0].mxu0 %v3227
        %v3410 = vpop.f32.mrb[0].mxu0
        %v3411 = vadd.f32 0.0, %v3410
        %v3412 = vpop.f32.mrb[0].mxu0
        %3413 = vmatprep.mubr.f32.mxu0 0.0
        %3414 = vmatmul.mubr.f32.gmra.mrb[0].mxu0 %v3228
        %v3415 = vpop.f32.mrb[0].mxu0
        %v3416 = vadd.f32 0.0, %v3415
        %v3417 = vpop.f32.mrb[0].mxu0
        %3418 = vmatprep.mubr.f32.mxu0 0.0
        %3419 = vmatmul.mubr.f32.gmra.mrb[0].mxu0 %v3229
        %v3420 = vpop.f32.mrb[0].mxu0
        %v3421 = vadd.f32 0.0, %v3420
        %v3422 = vpop.f32.mrb[0].mxu0
        %3423 = vmatprep.mubr.f32.mxu0 0.0
        %3424 = vmatmul.mubr.f32.gmra.mrb[0].mxu0 %v3230
        %v3425 = vpop.f32.mrb[0].mxu0
        %v3426 = vadd.f32 0.0, %v3425
        %v3427 = vpop.f32.mrb[0].mxu0
        %3428 = vmatprep.mubr.f32.mxu0 0.0
        %3429 = vmatmul.mubr.f32.gmra.mrb[0].mxu0 %v3231
        %v3430 = vpop.f32.mrb[0].mxu0
        %v3431 = vadd.f32 0.0, %v3430
        %v3432 = vpop.f32.mrb[0].mxu0
        %3433 = vmatprep.mubr.f32.mxu0 0.0
        %3434 = vmatmul.mubr.f32.gmra.mrb[0].mxu0 %v3232
        %v3435 = vpop.f32.mrb[0].mxu0
        %v3436 = vadd.f32 0.0, %v3435
        %v3437 = vpop.f32.mrb[0].mxu0
        %3438 = vmatprep.mubr.f32.mxu0 0.0
        %3439 = vmatmul.mubr.f32.gmra.mrb[0].mxu0 %v3233
        %v3440 = vpop.f32.mrb[0].mxu0
        %v3441 = vadd.f32 0.0, %v3440
        %v3442 = vpop.f32.mrb[0].mxu0
        %3443 = vmatprep.mubr.f32.mxu0 0.0
        %3444 = vmatmul.mubr.f32.gmra.mrb[0].mxu0 %v3234
        %v3445 = vpop.f32.mrb[0].mxu0
        %v3446 = vadd.f32 0.0, %v3445
        %v3447 = vpop.f32.mrb[0].mxu0
        %3448 = vmatprep.mubr.f32.mxu0 0.0
        %3449 = vmatmul.mubr.f32.gmra.mrb[0].mxu0 %v3235
        %v3450 = vpop.f32.mrb[0].mxu0
        %v3451 = vadd.f32 0.0, %v3450
        %v3452 = vpop.f32.mrb[0].mxu0
        %3453 = vmatprep.mubr.f32.mxu0 0.0
        %3454 = vmatmul.mubr.f32.gmra.mrb[0].mxu0 %v3236
        %v3455 = vpop.f32.mrb[0].mxu0
        %v3456 = vadd.f32 0.0, %v3455
        %v3457 = vpop.f32.mrb[0].mxu0
        %3458 = vmatprep.mubr.f32.mxu0 0.0
        %3459 = vmatmul.mubr.f32.gmra.mrb[0].mxu0 %v3237
        %v3460 = vpop.f32.mrb[0].mxu0
        %v3461 = vadd.f32 0.0, %v3460
        %v3462 = vpop.f32.mrb[0].mxu0
        %3463 = vmatprep.mubr.f32.mxu0 0.0
        %3464 = vmatmul.mubr.f32.gmra.mrb[0].mxu0 %v3238
        %v3465 = vpop.f32.mrb[0].mxu0
        %v3466 = vadd.f32 0.0, %v3465
        %v3467 = vpop.f32.mrb[0].mxu0
        %3468 = vmatprep.mubr.f32.mxu0 0.0
        %3469 = vmatmul.mubr.f32.gmra.mrb[0].mxu0 %v3239
        %v3470 = vpop.f32.mrb[0].mxu0
        %v3471 = vadd.f32 0.0, %v3470
        %v3472 = vpop.f32.mrb[0].mxu0
        %3473 = vmatprep.mubr.f32.mxu0 0.0
        %3474 = vmatmul.mubr.f32.gmra.mrb[0].mxu0 %v3240
        %v3475 = vpop.f32.mrb[0].mxu0
        %v3476 = vadd.f32 0.0, %v3475
        %v3477 = vpop.f32.mrb[0].mxu0
        %3478 = vmatprep.mubr.f32.mxu0 0.0
        %3479 = vmatmul.mubr.f32.gmra.mrb[0].mxu0 %v3241
        %v3480 = vpop.f32.mrb[0].mxu0
        %v3481 = vadd.f32 0.0, %v3480
        %v3482 = vpop.f32.mrb[0].mxu0
        %3483 = vdwg.mxu0
        %v3484 = vadd.f32 %v3178, %v3326
        %v3485 = vadd.f32 %v3179, %v3331
        %v3486 = vadd.f32 %v3180, %v3336
        %v3487 = vadd.f32 %v3181, %v3341
        %v3488 = vadd.f32 %v3182, %v3346
        %v3489 = vadd.f32 %v3183, %v3351
        %v3490 = vadd.f32 %v3184, %v3356
        %v3491 = vadd.f32 %v3185, %v3361
        %v3492 = vadd.f32 %v3186, %v3366
        %v3493 = vadd.f32 %v3187, %v3371
        %v3494 = vadd.f32 %v3188, %v3376
        %v3495 = vadd.f32 %v3189, %v3381
        %v3496 = vadd.f32 %v3190, %v3386
        %v3497 = vadd.f32 %v3191, %v3391
        %v3498 = vadd.f32 %v3192, %v3396
        %v3499 = vadd.f32 %v3193, %v3401
        %v3500 = vadd.f32 %v3194, %v3406
        %v3501 = vadd.f32 %v3195, %v3411
        %v3502 = vadd.f32 %v3196, %v3416
        %v3503 = vadd.f32 %v3197, %v3421
        %v3504 = vadd.f32 %v3198, %v3426
        %v3505 = vadd.f32 %v3199, %v3431
        %v3506 = vadd.f32 %v3200, %v3436
        %v3507 = vadd.f32 %v3201, %v3441
        %v3508 = vadd.f32 %v3202, %v3446
        %v3509 = vadd.f32 %v3203, %v3451
        %v3510 = vadd.f32 %v3204, %v3456
        %v3511 = vadd.f32 %v3205, %v3461
        %v3512 = vadd.f32 %v3206, %v3466
        %v3513 = vadd.f32 %v3207, %v3471
        %v3514 = vadd.f32 %v3208, %v3476
        %v3515 = vadd.f32 %v3209, %v3481
        %v3516 = vld [vmem:[#allocation2 + $0x26] sm:$0xff]
        %v3517 = vld [vmem:[#allocation2 + $0x2e] sm:$0xff]
        %v3518 = vld [vmem:[#allocation2 + $0x36] sm:$0xff]
        %v3519 = vld [vmem:[#allocation2 + $0x3e] sm:$0xff]
        %v3520 = vld [vmem:[#allocation2 + $0x46] sm:$0xff]
        %v3521 = vld [vmem:[#allocation2 + $0x4e] sm:$0xff]
        %v3522 = vld [vmem:[#allocation2 + $0x56] sm:$0xff]
        %v3523 = vld [vmem:[#allocation2 + $0x5e] sm:$0xff]
        %v3524 = vld [vmem:[#allocation2 + $0x66] sm:$0xff]
        %v3525 = vld [vmem:[#allocation2 + $0x6e] sm:$0xff]
        %v3526 = vld [vmem:[#allocation2 + $0x76] sm:$0xff]
        %v3527 = vld [vmem:[#allocation2 + $0x7e] sm:$0xff]
        %v3528 = vld [vmem:[#allocation2 + $0x86] sm:$0xff]
        %v3529 = vld [vmem:[#allocation2 + $0x8e] sm:$0xff]
        %v3530 = vld [vmem:[#allocation2 + $0x96] sm:$0xff]
        %v3531 = vld [vmem:[#allocation2 + $0x9e] sm:$0xff]
        %v3532 = vld [vmem:[#allocation2 + $0xa6] sm:$0xff]
        %v3533 = vld [vmem:[#allocation2 + $0xae] sm:$0xff]
        %v3534 = vld [vmem:[#allocation2 + $0xb6] sm:$0xff]
        %v3535 = vld [vmem:[#allocation2 + $0xbe] sm:$0xff]
        %v3536 = vld [vmem:[#allocation2 + $0xc6] sm:$0xff]
        %v3537 = vld [vmem:[#allocation2 + $0xce] sm:$0xff]
        %v3538 = vld [vmem:[#allocation2 + $0xd6] sm:$0xff]
        %v3539 = vld [vmem:[#allocation2 + $0xde] sm:$0xff]
        %v3540 = vld [vmem:[#allocation2 + $0xe6] sm:$0xff]
        %v3541 = vld [vmem:[#allocation2 + $0xee] sm:$0xff]
        %v3542 = vld [vmem:[#allocation2 + $0xf6] sm:$0xff]
        %v3543 = vld [vmem:[#allocation2 + $0xfe] sm:$0xff]
        %v3544 = vld [vmem:[#allocation2 + $0x106] sm:$0xff]
        %v3545 = vld [vmem:[#allocation2 + $0x10e] sm:$0xff]
        %v3546 = vld [vmem:[#allocation2 + $0x116] sm:$0xff]
        %v3547 = vld [vmem:[#allocation2 + $0x11e] sm:$0xff]
        %s3548 = scalar_lea.vmem %s4, 1024
        %v3549 = vld [vmem:[%s3548] sm:$0xff]
        %v3550 = vld [vmem:[%s3548 + $0x8] sm:$0xff]
        %v3551 = vld [vmem:[%s3548 + $0x10] sm:$0xff]
        %v3552 = vld [vmem:[%s3548 + $0x18] sm:$0xff]
        %v3553 = vld [vmem:[%s3548 + $0x20] sm:$0xff]
        %v3554 = vld [vmem:[%s3548 + $0x28] sm:$0xff]
        %v3555 = vld [vmem:[%s3548 + $0x30] sm:$0xff]
        %v3556 = vld [vmem:[%s3548 + $0x38] sm:$0xff]
        %v3557 = vld [vmem:[%s3548 + $0x40] sm:$0xff]
        %v3558 = vld [vmem:[%s3548 + $0x48] sm:$0xff]
        %v3559 = vld [vmem:[%s3548 + $0x50] sm:$0xff]
        %v3560 = vld [vmem:[%s3548 + $0x58] sm:$0xff]
        %v3561 = vld [vmem:[%s3548 + $0x60] sm:$0xff]
        %v3562 = vld [vmem:[%s3548 + $0x68] sm:$0xff]
        %v3563 = vld [vmem:[%s3548 + $0x70] sm:$0xff]
        %v3564 = vld [vmem:[%s3548 + $0x78] sm:$0xff]
        %3565 = vmatprep.subr.mxu0 0.0
        %3566 = vmatpush1.msra.mxu0 %v3549
        %3567 = vmatprep.subr.mxu0 0.0
        %3568 = vmatpush1.msra.mxu0 %v3550
        %3569 = vmatprep.subr.mxu0 0.0
        %3570 = vmatpush1.msra.mxu0 %v3551
        %3571 = vmatprep.subr.mxu0 0.0
        %3572 = vmatpush1.msra.mxu0 %v3552
        %3573 = vmatprep.subr.mxu0 0.0
        %3574 = vmatpush1.msra.mxu0 %v3553
        %3575 = vmatprep.subr.mxu0 0.0
        %3576 = vmatpush1.msra.mxu0 %v3554
        %3577 = vmatprep.subr.mxu0 0.0
        %3578 = vmatpush1.msra.mxu0 %v3555
        %3579 = vmatprep.subr.mxu0 0.0
        %3580 = vmatpush1.msra.mxu0 %v3556
        %3581 = vmatprep.subr.mxu0 0.0
        %3582 = vmatpush1.msra.mxu0 %v3557
        %3583 = vmatprep.subr.mxu0 0.0
        %3584 = vmatpush1.msra.mxu0 %v3558
        %3585 = vmatprep.subr.mxu0 0.0
        %3586 = vmatpush1.msra.mxu0 %v3559
        %3587 = vmatprep.subr.mxu0 0.0
        %3588 = vmatpush1.msra.mxu0 %v3560
        %3589 = vmatprep.subr.mxu0 0.0
        %3590 = vmatpush1.msra.mxu0 %v3561
        %3591 = vmatprep.subr.mxu0 0.0
        %3592 = vmatpush1.msra.mxu0 %v3562
        %3593 = vmatprep.subr.mxu0 0.0
        %3594 = vmatpush1.msra.mxu0 %v3563
        %3595 = vmatprep.subr.mxu0 0.0
        %3596 = vmatpush1.msra.mxu0 %v3564
        %3597 = vmatprep.subr.mxu0 0.0
        %3598 = vmatpush1.msra.mxu0 0.0
        %3599 = vmatprep.subr.mxu0 0.0
        %3600 = vmatpush1.msra.mxu0 0.0
        %3601 = vmatprep.subr.mxu0 0.0
        %3602 = vmatpush1.msra.mxu0 0.0
        %3603 = vmatprep.subr.mxu0 0.0
        %3604 = vmatpush1.msra.mxu0 0.0
        %3605 = vmatprep.subr.mxu0 0.0
        %3606 = vmatpush1.msra.mxu0 0.0
        %3607 = vmatprep.subr.mxu0 0.0
        %3608 = vmatpush1.msra.mxu0 0.0
        %3609 = vmatprep.subr.mxu0 0.0
        %3610 = vmatpush1.msra.mxu0 0.0
        %3611 = vmatprep.subr.mxu0 0.0
        %3612 = vmatpush1.msra.mxu0 0.0
        %3613 = vmatprep.subr.mxu0 0.0
        %3614 = vmatpush1.msra.mxu0 0.0
        %3615 = vmatprep.subr.mxu0 0.0
        %3616 = vmatpush1.msra.mxu0 0.0
        %3617 = vmatprep.subr.mxu0 0.0
        %3618 = vmatpush1.msra.mxu0 0.0
        %3619 = vmatprep.subr.mxu0 0.0
        %3620 = vmatpush1.msra.mxu0 0.0
        %3621 = vmatprep.subr.mxu0 0.0
        %3622 = vmatpush1.msra.mxu0 0.0
        %3623 = vmatprep.subr.mxu0 0.0
        %3624 = vmatpush1.msra.mxu0 0.0
        %3625 = vmatprep.subr.mxu0 0.0
        %3626 = vmatpush1.msra.mxu0 0.0
        %3627 = vmatprep.subr.mxu0 0.0
        %3628 = vmatpush1.msra.mxu0 0.0
        %3629 = vmatprep.mubr.f32.mxu0 0.0
        %3630 = vmatmul.mubr.f32.gmra.mrb[0].mxu0 %v3516
        %v3631 = vpop.f32.mrb[0].mxu0
        %v3632 = vadd.f32 0.0, %v3631
        %v3633 = vpop.f32.mrb[0].mxu0
        %3634 = vmatprep.mubr.f32.mxu0 0.0
        %3635 = vmatmul.mubr.f32.gmra.mrb[0].mxu0 %v3517
        %v3636 = vpop.f32.mrb[0].mxu0
        %v3637 = vadd.f32 0.0, %v3636
        %v3638 = vpop.f32.mrb[0].mxu0
        %3639 = vmatprep.mubr.f32.mxu0 0.0
        %3640 = vmatmul.mubr.f32.gmra.mrb[0].mxu0 %v3518
        %v3641 = vpop.f32.mrb[0].mxu0
        %v3642 = vadd.f32 0.0, %v3641
        %v3643 = vpop.f32.mrb[0].mxu0
        %3644 = vmatprep.mubr.f32.mxu0 0.0
        %3645 = vmatmul.mubr.f32.gmra.mrb[0].mxu0 %v3519
        %v3646 = vpop.f32.mrb[0].mxu0
        %v3647 = vadd.f32 0.0, %v3646
        %v3648 = vpop.f32.mrb[0].mxu0
        %3649 = vmatprep.mubr.f32.mxu0 0.0
        %3650 = vmatmul.mubr.f32.gmra.mrb[0].mxu0 %v3520
        %v3651 = vpop.f32.mrb[0].mxu0
        %v3652 = vadd.f32 0.0, %v3651
        %v3653 = vpop.f32.mrb[0].mxu0
        %3654 = vmatprep.mubr.f32.mxu0 0.0
        %3655 = vmatmul.mubr.f32.gmra.mrb[0].mxu0 %v3521
        %v3656 = vpop.f32.mrb[0].mxu0
        %v3657 = vadd.f32 0.0, %v3656
        %v3658 = vpop.f32.mrb[0].mxu0
        %3659 = vmatprep.mubr.f32.mxu0 0.0
        %3660 = vmatmul.mubr.f32.gmra.mrb[0].mxu0 %v3522
        %v3661 = vpop.f32.mrb[0].mxu0
        %v3662 = vadd.f32 0.0, %v3661
        %v3663 = vpop.f32.mrb[0].mxu0
        %3664 = vmatprep.mubr.f32.mxu0 0.0
        %3665 = vmatmul.mubr.f32.gmra.mrb[0].mxu0 %v3523
        %v3666 = vpop.f32.mrb[0].mxu0
        %v3667 = vadd.f32 0.0, %v3666
        %v3668 = vpop.f32.mrb[0].mxu0
        %3669 = vmatprep.mubr.f32.mxu0 0.0
        %3670 = vmatmul.mubr.f32.gmra.mrb[0].mxu0 %v3524
        %v3671 = vpop.f32.mrb[0].mxu0
        %v3672 = vadd.f32 0.0, %v3671
        %v3673 = vpop.f32.mrb[0].mxu0
        %3674 = vmatprep.mubr.f32.mxu0 0.0
        %3675 = vmatmul.mubr.f32.gmra.mrb[0].mxu0 %v3525
        %v3676 = vpop.f32.mrb[0].mxu0
        %v3677 = vadd.f32 0.0, %v3676
        %v3678 = vpop.f32.mrb[0].mxu0
        %3679 = vmatprep.mubr.f32.mxu0 0.0
        %3680 = vmatmul.mubr.f32.gmra.mrb[0].mxu0 %v3526
        %v3681 = vpop.f32.mrb[0].mxu0
        %v3682 = vadd.f32 0.0, %v3681
        %v3683 = vpop.f32.mrb[0].mxu0
        %3684 = vmatprep.mubr.f32.mxu0 0.0
        %3685 = vmatmul.mubr.f32.gmra.mrb[0].mxu0 %v3527
        %v3686 = vpop.f32.mrb[0].mxu0
        %v3687 = vadd.f32 0.0, %v3686
        %v3688 = vpop.f32.mrb[0].mxu0
        %3689 = vmatprep.mubr.f32.mxu0 0.0
        %3690 = vmatmul.mubr.f32.gmra.mrb[0].mxu0 %v3528
        %v3691 = vpop.f32.mrb[0].mxu0
        %v3692 = vadd.f32 0.0, %v3691
        %v3693 = vpop.f32.mrb[0].mxu0
        %3694 = vmatprep.mubr.f32.mxu0 0.0
        %3695 = vmatmul.mubr.f32.gmra.mrb[0].mxu0 %v3529
        %v3696 = vpop.f32.mrb[0].mxu0
        %v3697 = vadd.f32 0.0, %v3696
        %v3698 = vpop.f32.mrb[0].mxu0
        %3699 = vmatprep.mubr.f32.mxu0 0.0
        %3700 = vmatmul.mubr.f32.gmra.mrb[0].mxu0 %v3530
        %v3701 = vpop.f32.mrb[0].mxu0
        %v3702 = vadd.f32 0.0, %v3701
        %v3703 = vpop.f32.mrb[0].mxu0
        %3704 = vmatprep.mubr.f32.mxu0 0.0
        %3705 = vmatmul.mubr.f32.gmra.mrb[0].mxu0 %v3531
        %v3706 = vpop.f32.mrb[0].mxu0
        %v3707 = vadd.f32 0.0, %v3706
        %v3708 = vpop.f32.mrb[0].mxu0
        %3709 = vmatprep.mubr.f32.mxu0 0.0
        %3710 = vmatmul.mubr.f32.gmra.mrb[0].mxu0 %v3532
        %v3711 = vpop.f32.mrb[0].mxu0
        %v3712 = vadd.f32 0.0, %v3711
        %v3713 = vpop.f32.mrb[0].mxu0
        %3714 = vmatprep.mubr.f32.mxu0 0.0
        %3715 = vmatmul.mubr.f32.gmra.mrb[0].mxu0 %v3533
        %v3716 = vpop.f32.mrb[0].mxu0
        %v3717 = vadd.f32 0.0, %v3716
        %v3718 = vpop.f32.mrb[0].mxu0
        %3719 = vmatprep.mubr.f32.mxu0 0.0
        %3720 = vmatmul.mubr.f32.gmra.mrb[0].mxu0 %v3534
        %v3721 = vpop.f32.mrb[0].mxu0
        %v3722 = vadd.f32 0.0, %v3721
        %v3723 = vpop.f32.mrb[0].mxu0
        %3724 = vmatprep.mubr.f32.mxu0 0.0
        %3725 = vmatmul.mubr.f32.gmra.mrb[0].mxu0 %v3535
        %v3726 = vpop.f32.mrb[0].mxu0
        %v3727 = vadd.f32 0.0, %v3726
        %v3728 = vpop.f32.mrb[0].mxu0
        %3729 = vmatprep.mubr.f32.mxu0 0.0
        %3730 = vmatmul.mubr.f32.gmra.mrb[0].mxu0 %v3536
        %v3731 = vpop.f32.mrb[0].mxu0
        %v3732 = vadd.f32 0.0, %v3731
        %v3733 = vpop.f32.mrb[0].mxu0
        %3734 = vmatprep.mubr.f32.mxu0 0.0
        %3735 = vmatmul.mubr.f32.gmra.mrb[0].mxu0 %v3537
        %v3736 = vpop.f32.mrb[0].mxu0
        %v3737 = vadd.f32 0.0, %v3736
        %v3738 = vpop.f32.mrb[0].mxu0
        %3739 = vmatprep.mubr.f32.mxu0 0.0
        %3740 = vmatmul.mubr.f32.gmra.mrb[0].mxu0 %v3538
        %v3741 = vpop.f32.mrb[0].mxu0
        %v3742 = vadd.f32 0.0, %v3741
        %v3743 = vpop.f32.mrb[0].mxu0
        %3744 = vmatprep.mubr.f32.mxu0 0.0
        %3745 = vmatmul.mubr.f32.gmra.mrb[0].mxu0 %v3539
        %v3746 = vpop.f32.mrb[0].mxu0
        %v3747 = vadd.f32 0.0, %v3746
        %v3748 = vpop.f32.mrb[0].mxu0
        %3749 = vmatprep.mubr.f32.mxu0 0.0
        %3750 = vmatmul.mubr.f32.gmra.mrb[0].mxu0 %v3540
        %v3751 = vpop.f32.mrb[0].mxu0
        %v3752 = vadd.f32 0.0, %v3751
        %v3753 = vpop.f32.mrb[0].mxu0
        %3754 = vmatprep.mubr.f32.mxu0 0.0
        %3755 = vmatmul.mubr.f32.gmra.mrb[0].mxu0 %v3541
        %v3756 = vpop.f32.mrb[0].mxu0
        %v3757 = vadd.f32 0.0, %v3756
        %v3758 = vpop.f32.mrb[0].mxu0
        %3759 = vmatprep.mubr.f32.mxu0 0.0
        %3760 = vmatmul.mubr.f32.gmra.mrb[0].mxu0 %v3542
        %v3761 = vpop.f32.mrb[0].mxu0
        %v3762 = vadd.f32 0.0, %v3761
        %v3763 = vpop.f32.mrb[0].mxu0
        %3764 = vmatprep.mubr.f32.mxu0 0.0
        %3765 = vmatmul.mubr.f32.gmra.mrb[0].mxu0 %v3543
        %v3766 = vpop.f32.mrb[0].mxu0
        %v3767 = vadd.f32 0.0, %v3766
        %v3768 = vpop.f32.mrb[0].mxu0
        %3769 = vmatprep.mubr.f32.mxu0 0.0
        %3770 = vmatmul.mubr.f32.gmra.mrb[0].mxu0 %v3544
        %v3771 = vpop.f32.mrb[0].mxu0
        %v3772 = vadd.f32 0.0, %v3771
        %v3773 = vpop.f32.mrb[0].mxu0
        %3774 = vmatprep.mubr.f32.mxu0 0.0
        %3775 = vmatmul.mubr.f32.gmra.mrb[0].mxu0 %v3545
        %v3776 = vpop.f32.mrb[0].mxu0
        %v3777 = vadd.f32 0.0, %v3776
        %v3778 = vpop.f32.mrb[0].mxu0
        %3779 = vmatprep.mubr.f32.mxu0 0.0
        %3780 = vmatmul.mubr.f32.gmra.mrb[0].mxu0 %v3546
        %v3781 = vpop.f32.mrb[0].mxu0
        %v3782 = vadd.f32 0.0, %v3781
        %v3783 = vpop.f32.mrb[0].mxu0
        %3784 = vmatprep.mubr.f32.mxu0 0.0
        %3785 = vmatmul.mubr.f32.gmra.mrb[0].mxu0 %v3547
        %v3786 = vpop.f32.mrb[0].mxu0
        %v3787 = vadd.f32 0.0, %v3786
        %v3788 = vpop.f32.mrb[0].mxu0
        %3789 = vdwg.mxu0
        %v3790 = vadd.f32 %v3484, %v3632
        %v3791 = vadd.f32 %v3485, %v3637
        %v3792 = vadd.f32 %v3486, %v3642
        %v3793 = vadd.f32 %v3487, %v3647
        %v3794 = vadd.f32 %v3488, %v3652
        %v3795 = vadd.f32 %v3489, %v3657
        %v3796 = vadd.f32 %v3490, %v3662
        %v3797 = vadd.f32 %v3491, %v3667
        %v3798 = vadd.f32 %v3492, %v3672
        %v3799 = vadd.f32 %v3493, %v3677
        %v3800 = vadd.f32 %v3494, %v3682
        %v3801 = vadd.f32 %v3495, %v3687
        %v3802 = vadd.f32 %v3496, %v3692
        %v3803 = vadd.f32 %v3497, %v3697
        %v3804 = vadd.f32 %v3498, %v3702
        %v3805 = vadd.f32 %v3499, %v3707
        %v3806 = vadd.f32 %v3500, %v3712
        %v3807 = vadd.f32 %v3501, %v3717
        %v3808 = vadd.f32 %v3502, %v3722
        %v3809 = vadd.f32 %v3503, %v3727
        %v3810 = vadd.f32 %v3504, %v3732
        %v3811 = vadd.f32 %v3505, %v3737
        %v3812 = vadd.f32 %v3506, %v3742
        %v3813 = vadd.f32 %v3507, %v3747
        %v3814 = vadd.f32 %v3508, %v3752
        %v3815 = vadd.f32 %v3509, %v3757
        %v3816 = vadd.f32 %v3510, %v3762
        %v3817 = vadd.f32 %v3511, %v3767
        %v3818 = vadd.f32 %v3512, %v3772
        %v3819 = vadd.f32 %v3513, %v3777
        %v3820 = vadd.f32 %v3514, %v3782
        %v3821 = vadd.f32 %v3515, %v3787
        %v3823 = vlaneseq
        %v3824 = vshrl.u32 %v3823, 7
        %v3825 = vsub.s32 0, %v3824
        %v3826 = vrot.slane %v1131, %v3825
        %v3828 = vadd.f32 %v3790, %v3826
        %v3829 = vadd.f32 %v3791, %v3826
        %v3830 = vadd.f32 %v3792, %v3826
        %v3831 = vadd.f32 %v3793, %v3826
        %v3832 = vadd.f32 %v3794, %v3826
        %v3833 = vadd.f32 %v3795, %v3826
        %v3834 = vadd.f32 %v3796, %v3826
        %v3835 = vadd.f32 %v3797, %v3826
        %v3836 = vadd.f32 %v3798, %v3826
        %v3837 = vadd.f32 %v3799, %v3826
        %v3838 = vadd.f32 %v3800, %v3826
        %v3839 = vadd.f32 %v3801, %v3826
        %v3840 = vadd.f32 %v3802, %v3826
        %v3841 = vadd.f32 %v3803, %v3826
        %v3842 = vadd.f32 %v3804, %v3826
        %v3843 = vadd.f32 %v3805, %v3826
        %v3844 = vadd.f32 %v3806, %v3826
        %v3845 = vadd.f32 %v3807, %v3826
        %v3846 = vadd.f32 %v3808, %v3826
        %v3847 = vadd.f32 %v3809, %v3826
        %v3848 = vadd.f32 %v3810, %v3826
        %v3849 = vadd.f32 %v3811, %v3826
        %v3850 = vadd.f32 %v3812, %v3826
        %v3851 = vadd.f32 %v3813, %v3826
        %v3852 = vadd.f32 %v3814, %v3826
        %v3853 = vadd.f32 %v3815, %v3826
        %v3854 = vadd.f32 %v3816, %v3826
        %v3855 = vadd.f32 %v3817, %v3826
        %v3856 = vadd.f32 %v3818, %v3826
        %v3857 = vadd.f32 %v3819, %v3826
        %v3858 = vadd.f32 %v3820, %v3826
        %v3859 = vadd.f32 %v3821, %v3826
        %v3860 = vmax.f32 %v3828, 0.0
        %v3861 = vmax.f32 %v3829, 0.0
        %v3862 = vmax.f32 %v3830, 0.0
        %v3863 = vmax.f32 %v3831, 0.0
        %v3864 = vmax.f32 %v3832, 0.0
        %v3865 = vmax.f32 %v3833, 0.0
        %v3866 = vmax.f32 %v3834, 0.0
        %v3867 = vmax.f32 %v3835, 0.0
        %v3868 = vmax.f32 %v3836, 0.0
        %v3869 = vmax.f32 %v3837, 0.0
        %v3870 = vmax.f32 %v3838, 0.0
        %v3871 = vmax.f32 %v3839, 0.0
        %v3872 = vmax.f32 %v3840, 0.0
        %v3873 = vmax.f32 %v3841, 0.0
        %v3874 = vmax.f32 %v3842, 0.0
        %v3875 = vmax.f32 %v3843, 0.0
        %v3876 = vmax.f32 %v3844, 0.0
        %v3877 = vmax.f32 %v3845, 0.0
        %v3878 = vmax.f32 %v3846, 0.0
        %v3879 = vmax.f32 %v3847, 0.0
        %v3880 = vmax.f32 %v3848, 0.0
        %v3881 = vmax.f32 %v3849, 0.0
        %v3882 = vmax.f32 %v3850, 0.0
        %v3883 = vmax.f32 %v3851, 0.0
        %v3884 = vmax.f32 %v3852, 0.0
        %v3885 = vmax.f32 %v3853, 0.0
        %v3886 = vmax.f32 %v3854, 0.0
        %v3887 = vmax.f32 %v3855, 0.0
        %v3888 = vmax.f32 %v3856, 0.0
        %v3889 = vmax.f32 %v3857, 0.0
        %v3890 = vmax.f32 %v3858, 0.0
        %v3891 = vmax.f32 %v3859, 0.0
        %v3893 = vlaneseq
        %v3894 = vshrl.u32 %v3893, 7
        %v3895 = vsub.s32 0, %v3894
        %v3896 = vrot.slane %v1132, %v3895
        %3898 = vmatprep.subr.mxu0 0.0
        %3899 = vmatpush1.msra.mxu0 %v1115
        %3900 = vmatprep.subr.mxu0 0.0
        %3901 = vmatpush1.msra.mxu0 %v1116
        %3902 = vmatprep.subr.mxu0 0.0
        %3903 = vmatpush1.msra.mxu0 %v1117
        %3904 = vmatprep.subr.mxu0 0.0
        %3905 = vmatpush1.msra.mxu0 %v1118
        %3906 = vmatprep.subr.mxu0 0.0
        %3907 = vmatpush1.msra.mxu0 %v1119
        %3908 = vmatprep.subr.mxu0 0.0
        %3909 = vmatpush1.msra.mxu0 %v1120
        %3910 = vmatprep.subr.mxu0 0.0
        %3911 = vmatpush1.msra.mxu0 %v1121
        %3912 = vmatprep.subr.mxu0 0.0
        %3913 = vmatpush1.msra.mxu0 %v1122
        %3914 = vmatprep.subr.mxu0 0.0
        %3915 = vmatpush1.msra.mxu0 %v1123
        %3916 = vmatprep.subr.mxu0 0.0
        %3917 = vmatpush1.msra.mxu0 %v1124
        %3918 = vmatprep.subr.mxu0 0.0
        %3919 = vmatpush1.msra.mxu0 %v1125
        %3920 = vmatprep.subr.mxu0 0.0
        %3921 = vmatpush1.msra.mxu0 %v1126
        %3922 = vmatprep.subr.mxu0 0.0
        %3923 = vmatpush1.msra.mxu0 %v1127
        %3924 = vmatprep.subr.mxu0 0.0
        %3925 = vmatpush1.msra.mxu0 %v1128
        %3926 = vmatprep.subr.mxu0 0.0
        %3927 = vmatpush1.msra.mxu0 %v1129
        %3928 = vmatprep.subr.mxu0 0.0
        %3929 = vmatpush1.msra.mxu0 %v1130
        %3930 = vmatprep.subr.mxu0 0.0
        %3931 = vmatpush1.msra.mxu0 0.0
        %3932 = vmatprep.subr.mxu0 0.0
        %3933 = vmatpush1.msra.mxu0 0.0
        %3934 = vmatprep.subr.mxu0 0.0
        %3935 = vmatpush1.msra.mxu0 0.0
        %3936 = vmatprep.subr.mxu0 0.0
        %3937 = vmatpush1.msra.mxu0 0.0
        %3938 = vmatprep.subr.mxu0 0.0
        %3939 = vmatpush1.msra.mxu0 0.0
        %3940 = vmatprep.subr.mxu0 0.0
        %3941 = vmatpush1.msra.mxu0 0.0
        %3942 = vmatprep.subr.mxu0 0.0
        %3943 = vmatpush1.msra.mxu0 0.0
        %3944 = vmatprep.subr.mxu0 0.0
        %3945 = vmatpush1.msra.mxu0 0.0
        %3946 = vmatprep.subr.mxu0 0.0
        %3947 = vmatpush1.msra.mxu0 0.0
        %3948 = vmatprep.subr.mxu0 0.0
        %3949 = vmatpush1.msra.mxu0 0.0
        %3950 = vmatprep.subr.mxu0 0.0
        %3951 = vmatpush1.msra.mxu0 0.0
        %3952 = vmatprep.subr.mxu0 0.0
        %3953 = vmatpush1.msra.mxu0 0.0
        %3954 = vmatprep.subr.mxu0 0.0
        %3955 = vmatpush1.msra.mxu0 0.0
        %3956 = vmatprep.subr.mxu0 0.0
        %3957 = vmatpush1.msra.mxu0 0.0
        %3958 = vmatprep.subr.mxu0 0.0
        %3959 = vmatpush1.msra.mxu0 0.0
        %3960 = vmatprep.subr.mxu0 0.0
        %3961 = vmatpush1.msra.mxu0 0.0
        %3962 = vmatprep.mubr.f32.mxu0 0.0
        %3963 = vmatmul.mubr.f32.gmra.mrb[0].mxu0 %v3860
        %v3964 = vpop.f32.mrb[0].mxu0
        %v3965 = vadd.f32 %v3896, %v3964
        %v3966 = vpop.f32.mrb[0].mxu0
        %3967 = vmatprep.mubr.f32.mxu0 0.0
        %3968 = vmatmul.mubr.f32.gmra.mrb[0].mxu0 %v3861
        %v3969 = vpop.f32.mrb[0].mxu0
        %v3970 = vadd.f32 %v3896, %v3969
        %v3971 = vpop.f32.mrb[0].mxu0
        %3972 = vmatprep.mubr.f32.mxu0 0.0
        %3973 = vmatmul.mubr.f32.gmra.mrb[0].mxu0 %v3862
        %v3974 = vpop.f32.mrb[0].mxu0
        %v3975 = vadd.f32 %v3896, %v3974
        %v3976 = vpop.f32.mrb[0].mxu0
        %3977 = vmatprep.mubr.f32.mxu0 0.0
        %3978 = vmatmul.mubr.f32.gmra.mrb[0].mxu0 %v3863
        %v3979 = vpop.f32.mrb[0].mxu0
        %v3980 = vadd.f32 %v3896, %v3979
        %v3981 = vpop.f32.mrb[0].mxu0
        %3982 = vmatprep.mubr.f32.mxu0 0.0
        %3983 = vmatmul.mubr.f32.gmra.mrb[0].mxu0 %v3864
        %v3984 = vpop.f32.mrb[0].mxu0
        %v3985 = vadd.f32 %v3896, %v3984
        %v3986 = vpop.f32.mrb[0].mxu0
        %3987 = vmatprep.mubr.f32.mxu0 0.0
        %3988 = vmatmul.mubr.f32.gmra.mrb[0].mxu0 %v3865
        %v3989 = vpop.f32.mrb[0].mxu0
        %v3990 = vadd.f32 %v3896, %v3989
        %v3991 = vpop.f32.mrb[0].mxu0
        %3992 = vmatprep.mubr.f32.mxu0 0.0
        %3993 = vmatmul.mubr.f32.gmra.mrb[0].mxu0 %v3866
        %v3994 = vpop.f32.mrb[0].mxu0
        %v3995 = vadd.f32 %v3896, %v3994
        %v3996 = vpop.f32.mrb[0].mxu0
        %3997 = vmatprep.mubr.f32.mxu0 0.0
        %3998 = vmatmul.mubr.f32.gmra.mrb[0].mxu0 %v3867
        %v3999 = vpop.f32.mrb[0].mxu0
        %v4000 = vadd.f32 %v3896, %v3999
        %v4001 = vpop.f32.mrb[0].mxu0
        %4002 = vmatprep.mubr.f32.mxu0 0.0
        %4003 = vmatmul.mubr.f32.gmra.mrb[0].mxu0 %v3868
        %v4004 = vpop.f32.mrb[0].mxu0
        %v4005 = vadd.f32 %v3896, %v4004
        %v4006 = vpop.f32.mrb[0].mxu0
        %4007 = vmatprep.mubr.f32.mxu0 0.0
        %4008 = vmatmul.mubr.f32.gmra.mrb[0].mxu0 %v3869
        %v4009 = vpop.f32.mrb[0].mxu0
        %v4010 = vadd.f32 %v3896, %v4009
        %v4011 = vpop.f32.mrb[0].mxu0
        %4012 = vmatprep.mubr.f32.mxu0 0.0
        %4013 = vmatmul.mubr.f32.gmra.mrb[0].mxu0 %v3870
        %v4014 = vpop.f32.mrb[0].mxu0
        %v4015 = vadd.f32 %v3896, %v4014
        %v4016 = vpop.f32.mrb[0].mxu0
        %4017 = vmatprep.mubr.f32.mxu0 0.0
        %4018 = vmatmul.mubr.f32.gmra.mrb[0].mxu0 %v3871
        %v4019 = vpop.f32.mrb[0].mxu0
        %v4020 = vadd.f32 %v3896, %v4019
        %v4021 = vpop.f32.mrb[0].mxu0
        %4022 = vmatprep.mubr.f32.mxu0 0.0
        %4023 = vmatmul.mubr.f32.gmra.mrb[0].mxu0 %v3872
        %v4024 = vpop.f32.mrb[0].mxu0
        %v4025 = vadd.f32 %v3896, %v4024
        %v4026 = vpop.f32.mrb[0].mxu0
        %4027 = vmatprep.mubr.f32.mxu0 0.0
        %4028 = vmatmul.mubr.f32.gmra.mrb[0].mxu0 %v3873
        %v4029 = vpop.f32.mrb[0].mxu0
        %v4030 = vadd.f32 %v3896, %v4029
        %v4031 = vpop.f32.mrb[0].mxu0
        %4032 = vmatprep.mubr.f32.mxu0 0.0
        %4033 = vmatmul.mubr.f32.gmra.mrb[0].mxu0 %v3874
        %v4034 = vpop.f32.mrb[0].mxu0
        %v4035 = vadd.f32 %v3896, %v4034
        %v4036 = vpop.f32.mrb[0].mxu0
        %4037 = vmatprep.mubr.f32.mxu0 0.0
        %4038 = vmatmul.mubr.f32.gmra.mrb[0].mxu0 %v3875
        %v4039 = vpop.f32.mrb[0].mxu0
        %v4040 = vadd.f32 %v3896, %v4039
        %v4041 = vpop.f32.mrb[0].mxu0
        %4042 = vmatprep.mubr.f32.mxu0 0.0
        %4043 = vmatmul.mubr.f32.gmra.mrb[0].mxu0 %v3876
        %v4044 = vpop.f32.mrb[0].mxu0
        %v4045 = vadd.f32 %v3896, %v4044
        %v4046 = vpop.f32.mrb[0].mxu0
        %4047 = vmatprep.mubr.f32.mxu0 0.0
        %4048 = vmatmul.mubr.f32.gmra.mrb[0].mxu0 %v3877
        %v4049 = vpop.f32.mrb[0].mxu0
        %v4050 = vadd.f32 %v3896, %v4049
        %v4051 = vpop.f32.mrb[0].mxu0
        %4052 = vmatprep.mubr.f32.mxu0 0.0
        %4053 = vmatmul.mubr.f32.gmra.mrb[0].mxu0 %v3878
        %v4054 = vpop.f32.mrb[0].mxu0
        %v4055 = vadd.f32 %v3896, %v4054
        %v4056 = vpop.f32.mrb[0].mxu0
        %4057 = vmatprep.mubr.f32.mxu0 0.0
        %4058 = vmatmul.mubr.f32.gmra.mrb[0].mxu0 %v3879
        %v4059 = vpop.f32.mrb[0].mxu0
        %v4060 = vadd.f32 %v3896, %v4059
        %v4061 = vpop.f32.mrb[0].mxu0
        %4062 = vmatprep.mubr.f32.mxu0 0.0
        %4063 = vmatmul.mubr.f32.gmra.mrb[0].mxu0 %v3880
        %v4064 = vpop.f32.mrb[0].mxu0
        %v4065 = vadd.f32 %v3896, %v4064
        %v4066 = vpop.f32.mrb[0].mxu0
        %4067 = vmatprep.mubr.f32.mxu0 0.0
        %4068 = vmatmul.mubr.f32.gmra.mrb[0].mxu0 %v3881
        %v4069 = vpop.f32.mrb[0].mxu0
        %v4070 = vadd.f32 %v3896, %v4069
        %v4071 = vpop.f32.mrb[0].mxu0
        %4072 = vmatprep.mubr.f32.mxu0 0.0
        %4073 = vmatmul.mubr.f32.gmra.mrb[0].mxu0 %v3882
        %v4074 = vpop.f32.mrb[0].mxu0
        %v4075 = vadd.f32 %v3896, %v4074
        %v4076 = vpop.f32.mrb[0].mxu0
        %4077 = vmatprep.mubr.f32.mxu0 0.0
        %4078 = vmatmul.mubr.f32.gmra.mrb[0].mxu0 %v3883
        %v4079 = vpop.f32.mrb[0].mxu0
        %v4080 = vadd.f32 %v3896, %v4079
        %v4081 = vpop.f32.mrb[0].mxu0
        %4082 = vmatprep.mubr.f32.mxu0 0.0
        %4083 = vmatmul.mubr.f32.gmra.mrb[0].mxu0 %v3884
        %v4084 = vpop.f32.mrb[0].mxu0
        %v4085 = vadd.f32 %v3896, %v4084
        %v4086 = vpop.f32.mrb[0].mxu0
        %4087 = vmatprep.mubr.f32.mxu0 0.0
        %4088 = vmatmul.mubr.f32.gmra.mrb[0].mxu0 %v3885
        %v4089 = vpop.f32.mrb[0].mxu0
        %v4090 = vadd.f32 %v3896, %v4089
        %v4091 = vpop.f32.mrb[0].mxu0
        %4092 = vmatprep.mubr.f32.mxu0 0.0
        %4093 = vmatmul.mubr.f32.gmra.mrb[0].mxu0 %v3886
        %v4094 = vpop.f32.mrb[0].mxu0
        %v4095 = vadd.f32 %v3896, %v4094
        %v4096 = vpop.f32.mrb[0].mxu0
        %4097 = vmatprep.mubr.f32.mxu0 0.0
        %4098 = vmatmul.mubr.f32.gmra.mrb[0].mxu0 %v3887
        %v4099 = vpop.f32.mrb[0].mxu0
        %v4100 = vadd.f32 %v3896, %v4099
        %v4101 = vpop.f32.mrb[0].mxu0
        %4102 = vmatprep.mubr.f32.mxu0 0.0
        %4103 = vmatmul.mubr.f32.gmra.mrb[0].mxu0 %v3888
        %v4104 = vpop.f32.mrb[0].mxu0
        %v4105 = vadd.f32 %v3896, %v4104
        %v4106 = vpop.f32.mrb[0].mxu0
        %4107 = vmatprep.mubr.f32.mxu0 0.0
        %4108 = vmatmul.mubr.f32.gmra.mrb[0].mxu0 %v3889
        %v4109 = vpop.f32.mrb[0].mxu0
        %v4110 = vadd.f32 %v3896, %v4109
        %v4111 = vpop.f32.mrb[0].mxu0
        %4112 = vmatprep.mubr.f32.mxu0 0.0
        %4113 = vmatmul.mubr.f32.gmra.mrb[0].mxu0 %v3890
        %v4114 = vpop.f32.mrb[0].mxu0
        %v4115 = vadd.f32 %v3896, %v4114
        %v4116 = vpop.f32.mrb[0].mxu0
        %4117 = vmatprep.mubr.f32.mxu0 0.0
        %4118 = vmatmul.mubr.f32.gmra.mrb[0].mxu0 %v3891
        %v4119 = vpop.f32.mrb[0].mxu0
        %v4120 = vadd.f32 %v3896, %v4119
        %v4121 = vpop.f32.mrb[0].mxu0
        %4122 = vdwg.mxu0
        %v4123 = vld [vmem:[%s338 + $0x13] sm:$0xff]
        %v4124 = vld [vmem:[%s338 + $0x1b] sm:$0xff]
        %v4125 = vld [vmem:[%s338 + $0x23] sm:$0xff]
        %v4126 = vld [vmem:[%s338 + $0x2b] sm:$0xff]
        %v4127 = vld [vmem:[%s338 + $0x33] sm:$0xff]
        %v4128 = vld [vmem:[%s338 + $0x3b] sm:$0xff]
        %v4129 = vld [vmem:[%s338 + $0x43] sm:$0xff]
        %v4130 = vld [vmem:[%s338 + $0x4b] sm:$0xff]
        %v4131 = vld [vmem:[%s338 + $0x53] sm:$0xff]
        %v4132 = vld [vmem:[%s338 + $0x5b] sm:$0xff]
        %v4133 = vld [vmem:[%s338 + $0x63] sm:$0xff]
        %v4134 = vld [vmem:[%s338 + $0x6b] sm:$0xff]
        %v4135 = vld [vmem:[%s338 + $0x73] sm:$0xff]
        %v4136 = vld [vmem:[%s338 + $0x7b] sm:$0xff]
        %v4137 = vld [vmem:[%s338 + $0x83] sm:$0xff]
        %v4138 = vld [vmem:[%s338 + $0x8b] sm:$0xff]
        %v4139 = vld [vmem:[%s338 + $0x93] sm:$0xff]
        %v4140 = vld [vmem:[%s338 + $0x9b] sm:$0xff]
        %v4141 = vld [vmem:[%s338 + $0xa3] sm:$0xff]
        %v4142 = vld [vmem:[%s338 + $0xab] sm:$0xff]
        %v4143 = vld [vmem:[%s338 + $0xb3] sm:$0xff]
        %v4144 = vld [vmem:[%s338 + $0xbb] sm:$0xff]
        %v4145 = vld [vmem:[%s338 + $0xc3] sm:$0xff]
        %v4146 = vld [vmem:[%s338 + $0xcb] sm:$0xff]
        %v4147 = vld [vmem:[%s338 + $0xd3] sm:$0xff]
        %v4148 = vld [vmem:[%s338 + $0xdb] sm:$0xff]
        %v4149 = vld [vmem:[%s338 + $0xe3] sm:$0xff]
        %v4150 = vld [vmem:[%s338 + $0xeb] sm:$0xff]
        %v4151 = vld [vmem:[%s338 + $0xf3] sm:$0xff]
        %v4152 = vld [vmem:[%s338 + $0xfb] sm:$0xff]
        %v4153 = vld [vmem:[%s338 + $0x103] sm:$0xff]
        %v4154 = vld [vmem:[%s338 + $0x10b] sm:$0xff]
        %v4155 = vadd.f32 %v3965, %v4123
        %v4156 = vadd.f32 %v3970, %v4124
        %v4157 = vadd.f32 %v3975, %v4125
        %v4158 = vadd.f32 %v3980, %v4126
        %v4159 = vadd.f32 %v3985, %v4127
        %v4160 = vadd.f32 %v3990, %v4128
        %v4161 = vadd.f32 %v3995, %v4129
        %v4162 = vadd.f32 %v4000, %v4130
        %v4163 = vadd.f32 %v4005, %v4131
        %v4164 = vadd.f32 %v4010, %v4132
        %v4165 = vadd.f32 %v4015, %v4133
        %v4166 = vadd.f32 %v4020, %v4134
        %v4167 = vadd.f32 %v4025, %v4135
        %v4168 = vadd.f32 %v4030, %v4136
        %v4169 = vadd.f32 %v4035, %v4137
        %v4170 = vadd.f32 %v4040, %v4138
        %v4171 = vadd.f32 %v4045, %v4139
        %v4172 = vadd.f32 %v4050, %v4140
        %v4173 = vadd.f32 %v4055, %v4141
        %v4174 = vadd.f32 %v4060, %v4142
        %v4175 = vadd.f32 %v4065, %v4143
        %v4176 = vadd.f32 %v4070, %v4144
        %v4177 = vadd.f32 %v4075, %v4145
        %v4178 = vadd.f32 %v4080, %v4146
        %v4179 = vadd.f32 %v4085, %v4147
        %v4180 = vadd.f32 %v4090, %v4148
        %v4181 = vadd.f32 %v4095, %v4149
        %v4182 = vadd.f32 %v4100, %v4150
        %v4183 = vadd.f32 %v4105, %v4151
        %v4184 = vadd.f32 %v4110, %v4152
        %v4185 = vadd.f32 %v4115, %v4153
        %v4186 = vadd.f32 %v4120, %v4154
        %v4187 = vmax.f32 %v4155, 0.0
        %v4188 = vmax.f32 %v4156, 0.0
        %v4189 = vmax.f32 %v4157, 0.0
        %v4190 = vmax.f32 %v4158, 0.0
        %v4191 = vmax.f32 %v4159, 0.0
        %v4192 = vmax.f32 %v4160, 0.0
        %v4193 = vmax.f32 %v4161, 0.0
        %v4194 = vmax.f32 %v4162, 0.0
        %v4195 = vmax.f32 %v4163, 0.0
        %v4196 = vmax.f32 %v4164, 0.0
        %v4197 = vmax.f32 %v4165, 0.0
        %v4198 = vmax.f32 %v4166, 0.0
        %v4199 = vmax.f32 %v4167, 0.0
        %v4200 = vmax.f32 %v4168, 0.0
        %v4201 = vmax.f32 %v4169, 0.0
        %v4202 = vmax.f32 %v4170, 0.0
        %v4203 = vmax.f32 %v4171, 0.0
        %v4204 = vmax.f32 %v4172, 0.0
        %v4205 = vmax.f32 %v4173, 0.0
        %v4206 = vmax.f32 %v4174, 0.0
        %v4207 = vmax.f32 %v4175, 0.0
        %v4208 = vmax.f32 %v4176, 0.0
        %v4209 = vmax.f32 %v4177, 0.0
        %v4210 = vmax.f32 %v4178, 0.0
        %v4211 = vmax.f32 %v4179, 0.0
        %v4212 = vmax.f32 %v4180, 0.0
        %v4213 = vmax.f32 %v4181, 0.0
        %v4214 = vmax.f32 %v4182, 0.0
        %v4215 = vmax.f32 %v4183, 0.0
        %v4216 = vmax.f32 %v4184, 0.0
        %v4217 = vmax.f32 %v4185, 0.0
        %v4218 = vmax.f32 %v4186, 0.0
        %4219 = vst [vmem:[%s332] sm:$0xff] %v4187
        %4220 = vst [vmem:[%s332 + $0x8] sm:$0xff] %v4188
        %4221 = vst [vmem:[%s332 + $0x10] sm:$0xff] %v4189
        %4222 = vst [vmem:[%s332 + $0x18] sm:$0xff] %v4190
        %4223 = vst [vmem:[%s332 + $0x20] sm:$0xff] %v4191
        %4224 = vst [vmem:[%s332 + $0x28] sm:$0xff] %v4192
        %4225 = vst [vmem:[%s332 + $0x30] sm:$0xff] %v4193
        %4226 = vst [vmem:[%s332 + $0x38] sm:$0xff] %v4194
        %4227 = vst [vmem:[%s332 + $0x40] sm:$0xff] %v4195
        %4228 = vst [vmem:[%s332 + $0x48] sm:$0xff] %v4196
        %4229 = vst [vmem:[%s332 + $0x50] sm:$0xff] %v4197
        %4230 = vst [vmem:[%s332 + $0x58] sm:$0xff] %v4198
        %4231 = vst [vmem:[%s332 + $0x60] sm:$0xff] %v4199
        %4232 = vst [vmem:[%s332 + $0x68] sm:$0xff] %v4200
        %4233 = vst [vmem:[%s332 + $0x70] sm:$0xff] %v4201
        %4234 = vst [vmem:[%s332 + $0x78] sm:$0xff] %v4202
        %4235 = vst [vmem:[%s332 + $0x80] sm:$0xff] %v4203
        %4236 = vst [vmem:[%s332 + $0x88] sm:$0xff] %v4204
        %4237 = vst [vmem:[%s332 + $0x90] sm:$0xff] %v4205
        %4238 = vst [vmem:[%s332 + $0x98] sm:$0xff] %v4206
        %4239 = vst [vmem:[%s332 + $0xa0] sm:$0xff] %v4207
        %4240 = vst [vmem:[%s332 + $0xa8] sm:$0xff] %v4208
        %4241 = vst [vmem:[%s332 + $0xb0] sm:$0xff] %v4209
        %4242 = vst [vmem:[%s332 + $0xb8] sm:$0xff] %v4210
        %4243 = vst [vmem:[%s332 + $0xc0] sm:$0xff] %v4211
        %4244 = vst [vmem:[%s332 + $0xc8] sm:$0xff] %v4212
        %4245 = vst [vmem:[%s332 + $0xd0] sm:$0xff] %v4213
        %4246 = vst [vmem:[%s332 + $0xd8] sm:$0xff] %v4214
        %4247 = vst [vmem:[%s332 + $0xe0] sm:$0xff] %v4215
        %4248 = vst [vmem:[%s332 + $0xe8] sm:$0xff] %v4216
        %4249 = vst [vmem:[%s332 + $0xf0] sm:$0xff] %v4217
        %4250 = vst [vmem:[%s332 + $0xf8] sm:$0xff] %v4218
        %v4251 = vld [vmem:[#allocation2 + $0x100] sm:$0xff]
        %v4252 = vld [vmem:[#allocation2 + $0x108] sm:$0xff]
        %v4253 = vld [vmem:[#allocation2 + $0x110] sm:$0xff]
        %v4254 = vld [vmem:[#allocation2 + $0x118] sm:$0xff]
        %v4255 = vld [vmem:[%s4] sm:$0xff]
        %v4256 = vld [vmem:[%s4 + $0x8] sm:$0xff]
        %v4257 = vld [vmem:[%s4 + $0x10] sm:$0xff]
        %v4258 = vld [vmem:[%s4 + $0x18] sm:$0xff]
        %v4259 = vld [vmem:[%s4 + $0x20] sm:$0xff]
        %v4260 = vld [vmem:[%s4 + $0x28] sm:$0xff]
        %v4261 = vld [vmem:[%s4 + $0x30] sm:$0xff]
        %v4262 = vld [vmem:[%s4 + $0x38] sm:$0xff]
        %v4263 = vld [vmem:[%s4 + $0x40] sm:$0xff]
        %v4264 = vld [vmem:[%s4 + $0x48] sm:$0xff]
        %v4265 = vld [vmem:[%s4 + $0x50] sm:$0xff]
        %v4266 = vld [vmem:[%s4 + $0x58] sm:$0xff]
        %v4267 = vld [vmem:[%s4 + $0x60] sm:$0xff]
        %v4268 = vld [vmem:[%s4 + $0x68] sm:$0xff]
        %v4269 = vld [vmem:[%s4 + $0x70] sm:$0xff]
        %v4270 = vld [vmem:[%s4 + $0x78] sm:$0xff]
        %v4271 = vld [vmem:[#allocation2 + $0x101] sm:$0xff]
        %v4272 = vld [vmem:[#allocation2 + $0x109] sm:$0xff]
        %v4273 = vld [vmem:[#allocation2 + $0x111] sm:$0xff]
        %v4274 = vld [vmem:[#allocation2 + $0x119] sm:$0xff]
        %v4275 = vld [vmem:[%s1213] sm:$0xff]
        %v4276 = vld [vmem:[%s1213 + $0x8] sm:$0xff]
        %v4277 = vld [vmem:[%s1213 + $0x10] sm:$0xff]
        %v4278 = vld [vmem:[%s1213 + $0x18] sm:$0xff]
        %v4279 = vld [vmem:[%s1213 + $0x20] sm:$0xff]
        %v4280 = vld [vmem:[%s1213 + $0x28] sm:$0xff]
        %v4281 = vld [vmem:[%s1213 + $0x30] sm:$0xff]
        %v4282 = vld [vmem:[%s1213 + $0x38] sm:$0xff]
        %v4283 = vld [vmem:[%s1213 + $0x40] sm:$0xff]
        %v4284 = vld [vmem:[%s1213 + $0x48] sm:$0xff]
        %v4285 = vld [vmem:[%s1213 + $0x50] sm:$0xff]
        %v4286 = vld [vmem:[%s1213 + $0x58] sm:$0xff]
        %v4287 = vld [vmem:[%s1213 + $0x60] sm:$0xff]
        %v4288 = vld [vmem:[%s1213 + $0x68] sm:$0xff]
        %v4289 = vld [vmem:[%s1213 + $0x70] sm:$0xff]
        %v4290 = vld [vmem:[%s1213 + $0x78] sm:$0xff]
        %4291 = vmatprep.subr.mxu0 0.0
        %4292 = vmatpush1.msra.mxu0 %v4275
        %4293 = vmatprep.subr.mxu0 0.0
        %4294 = vmatpush1.msra.mxu0 %v4276
        %4295 = vmatprep.subr.mxu0 0.0
        %4296 = vmatpush1.msra.mxu0 %v4277
        %4297 = vmatprep.subr.mxu0 0.0
        %4298 = vmatpush1.msra.mxu0 %v4278
        %4299 = vmatprep.subr.mxu0 0.0
        %4300 = vmatpush1.msra.mxu0 %v4279
        %4301 = vmatprep.subr.mxu0 0.0
        %4302 = vmatpush1.msra.mxu0 %v4280
        %4303 = vmatprep.subr.mxu0 0.0
        %4304 = vmatpush1.msra.mxu0 %v4281
        %4305 = vmatprep.subr.mxu0 0.0
        %4306 = vmatpush1.msra.mxu0 %v4282
        %4307 = vmatprep.subr.mxu0 0.0
        %4308 = vmatpush1.msra.mxu0 %v4283
        %4309 = vmatprep.subr.mxu0 0.0
        %4310 = vmatpush1.msra.mxu0 %v4284
        %4311 = vmatprep.subr.mxu0 0.0
        %4312 = vmatpush1.msra.mxu0 %v4285
        %4313 = vmatprep.subr.mxu0 0.0
        %4314 = vmatpush1.msra.mxu0 %v4286
        %4315 = vmatprep.subr.mxu0 0.0
        %4316 = vmatpush1.msra.mxu0 %v4287
        %4317 = vmatprep.subr.mxu0 0.0
        %4318 = vmatpush1.msra.mxu0 %v4288
        %4319 = vmatprep.subr.mxu0 0.0
        %4320 = vmatpush1.msra.mxu0 %v4289
        %4321 = vmatprep.subr.mxu0 0.0
        %4322 = vmatpush1.msra.mxu0 %v4290
        %4323 = vmatprep.subr.mxu0 0.0
        %4324 = vmatpush1.msra.mxu0 0.0
        %4325 = vmatprep.subr.mxu0 0.0
        %4326 = vmatpush1.msra.mxu0 0.0
        %4327 = vmatprep.subr.mxu0 0.0
        %4328 = vmatpush1.msra.mxu0 0.0
        %4329 = vmatprep.subr.mxu0 0.0
        %4330 = vmatpush1.msra.mxu0 0.0
        %4331 = vmatprep.subr.mxu0 0.0
        %4332 = vmatpush1.msra.mxu0 0.0
        %4333 = vmatprep.subr.mxu0 0.0
        %4334 = vmatpush1.msra.mxu0 0.0
        %4335 = vmatprep.subr.mxu0 0.0
        %4336 = vmatpush1.msra.mxu0 0.0
        %4337 = vmatprep.subr.mxu0 0.0
        %4338 = vmatpush1.msra.mxu0 0.0
        %4339 = vmatprep.subr.mxu0 0.0
        %4340 = vmatpush1.msra.mxu0 0.0
        %4341 = vmatprep.subr.mxu0 0.0
        %4342 = vmatpush1.msra.mxu0 0.0
        %4343 = vmatprep.subr.mxu0 0.0
        %4344 = vmatpush1.msra.mxu0 0.0
        %4345 = vmatprep.subr.mxu0 0.0
        %4346 = vmatpush1.msra.mxu0 0.0
        %4347 = vmatprep.subr.mxu0 0.0
        %4348 = vmatpush1.msra.mxu0 0.0
        %4349 = vmatprep.subr.mxu0 0.0
        %4350 = vmatpush1.msra.mxu0 0.0
        %4351 = vmatprep.subr.mxu0 0.0
        %4352 = vmatpush1.msra.mxu0 0.0
        %4353 = vmatprep.subr.mxu0 0.0
        %4354 = vmatpush1.msra.mxu0 0.0
        %4355 = vmatprep.mubr.f32.mxu0 0.0
        %4356 = vmatmul.mubr.f32.gmra.mrb[0].mxu0 %v4271
        %v4357 = vpop.f32.mrb[0].mxu0
        %v4358 = vadd.f32 0.0, %v4357
        %v4359 = vpop.f32.mrb[0].mxu0
        %4360 = vmatprep.mubr.f32.mxu0 0.0
        %4361 = vmatmul.mubr.f32.gmra.mrb[0].mxu0 %v4272
        %v4362 = vpop.f32.mrb[0].mxu0
        %v4363 = vadd.f32 0.0, %v4362
        %v4364 = vpop.f32.mrb[0].mxu0
        %4365 = vmatprep.mubr.f32.mxu0 0.0
        %4366 = vmatmul.mubr.f32.gmra.mrb[0].mxu0 %v4273
        %v4367 = vpop.f32.mrb[0].mxu0
        %v4368 = vadd.f32 0.0, %v4367
        %v4369 = vpop.f32.mrb[0].mxu0
        %4370 = vmatprep.mubr.f32.mxu0 0.0
        %4371 = vmatmul.mubr.f32.gmra.mrb[0].mxu0 %v4274
        %v4372 = vpop.f32.mrb[0].mxu0
        %v4373 = vadd.f32 0.0, %v4372
        %v4374 = vpop.f32.mrb[0].mxu0
        %4375 = vdwg.mxu0
        %4376 = vmatprep.subr.mxu0 0.0
        %4377 = vmatpush1.msra.mxu0 %v4255
        %4378 = vmatprep.subr.mxu0 0.0
        %4379 = vmatpush1.msra.mxu0 %v4256
        %4380 = vmatprep.subr.mxu0 0.0
        %4381 = vmatpush1.msra.mxu0 %v4257
        %4382 = vmatprep.subr.mxu0 0.0
        %4383 = vmatpush1.msra.mxu0 %v4258
        %4384 = vmatprep.subr.mxu0 0.0
        %4385 = vmatpush1.msra.mxu0 %v4259
        %4386 = vmatprep.subr.mxu0 0.0
        %4387 = vmatpush1.msra.mxu0 %v4260
        %4388 = vmatprep.subr.mxu0 0.0
        %4389 = vmatpush1.msra.mxu0 %v4261
        %4390 = vmatprep.subr.mxu0 0.0
        %4391 = vmatpush1.msra.mxu0 %v4262
        %4392 = vmatprep.subr.mxu0 0.0
        %4393 = vmatpush1.msra.mxu0 %v4263
        %4394 = vmatprep.subr.mxu0 0.0
        %4395 = vmatpush1.msra.mxu0 %v4264
        %4396 = vmatprep.subr.mxu0 0.0
        %4397 = vmatpush1.msra.mxu0 %v4265
        %4398 = vmatprep.subr.mxu0 0.0
        %4399 = vmatpush1.msra.mxu0 %v4266
        %4400 = vmatprep.subr.mxu0 0.0
        %4401 = vmatpush1.msra.mxu0 %v4267
        %4402 = vmatprep.subr.mxu0 0.0
        %4403 = vmatpush1.msra.mxu0 %v4268
        %4404 = vmatprep.subr.mxu0 0.0
        %4405 = vmatpush1.msra.mxu0 %v4269
        %4406 = vmatprep.subr.mxu0 0.0
        %4407 = vmatpush1.msra.mxu0 %v4270
        %4408 = vmatprep.subr.mxu0 0.0
        %4409 = vmatpush1.msra.mxu0 0.0
        %4410 = vmatprep.subr.mxu0 0.0
        %4411 = vmatpush1.msra.mxu0 0.0
        %4412 = vmatprep.subr.mxu0 0.0
        %4413 = vmatpush1.msra.mxu0 0.0
        %4414 = vmatprep.subr.mxu0 0.0
        %4415 = vmatpush1.msra.mxu0 0.0
        %4416 = vmatprep.subr.mxu0 0.0
        %4417 = vmatpush1.msra.mxu0 0.0
        %4418 = vmatprep.subr.mxu0 0.0
        %4419 = vmatpush1.msra.mxu0 0.0
        %4420 = vmatprep.subr.mxu0 0.0
        %4421 = vmatpush1.msra.mxu0 0.0
        %4422 = vmatprep.subr.mxu0 0.0
        %4423 = vmatpush1.msra.mxu0 0.0
        %4424 = vmatprep.subr.mxu0 0.0
        %4425 = vmatpush1.msra.mxu0 0.0
        %4426 = vmatprep.subr.mxu0 0.0
        %4427 = vmatpush1.msra.mxu0 0.0
        %4428 = vmatprep.subr.mxu0 0.0
        %4429 = vmatpush1.msra.mxu0 0.0
        %4430 = vmatprep.subr.mxu0 0.0
        %4431 = vmatpush1.msra.mxu0 0.0
        %4432 = vmatprep.subr.mxu0 0.0
        %4433 = vmatpush1.msra.mxu0 0.0
        %4434 = vmatprep.subr.mxu0 0.0
        %4435 = vmatpush1.msra.mxu0 0.0
        %4436 = vmatprep.subr.mxu0 0.0
        %4437 = vmatpush1.msra.mxu0 0.0
        %4438 = vmatprep.subr.mxu0 0.0
        %4439 = vmatpush1.msra.mxu0 0.0
        %4440 = vmatprep.mubr.f32.mxu0 0.0
        %4441 = vmatmul.mubr.f32.gmra.mrb[0].mxu0 %v4251
        %v4442 = vpop.f32.mrb[0].mxu0
        %v4443 = vadd.f32 %v4358, %v4442
        %v4444 = vpop.f32.mrb[0].mxu0
        %4445 = vmatprep.mubr.f32.mxu0 0.0
        %4446 = vmatmul.mubr.f32.gmra.mrb[0].mxu0 %v4252
        %v4447 = vpop.f32.mrb[0].mxu0
        %v4448 = vadd.f32 %v4363, %v4447
        %v4449 = vpop.f32.mrb[0].mxu0
        %4450 = vmatprep.mubr.f32.mxu0 0.0
        %4451 = vmatmul.mubr.f32.gmra.mrb[0].mxu0 %v4253
        %v4452 = vpop.f32.mrb[0].mxu0
        %v4453 = vadd.f32 %v4368, %v4452
        %v4454 = vpop.f32.mrb[0].mxu0
        %4455 = vmatprep.mubr.f32.mxu0 0.0
        %4456 = vmatmul.mubr.f32.gmra.mrb[0].mxu0 %v4254
        %v4457 = vpop.f32.mrb[0].mxu0
        %v4458 = vadd.f32 %v4373, %v4457
        %v4459 = vpop.f32.mrb[0].mxu0
        %4460 = vdwg.mxu0
        %v4461 = vld [vmem:[#allocation2 + $0x102] sm:$0xff]
        %v4462 = vld [vmem:[#allocation2 + $0x10a] sm:$0xff]
        %v4463 = vld [vmem:[#allocation2 + $0x112] sm:$0xff]
        %v4464 = vld [vmem:[#allocation2 + $0x11a] sm:$0xff]
        %v4465 = vld [vmem:[%s1712] sm:$0xff]
        %v4466 = vld [vmem:[%s1712 + $0x8] sm:$0xff]
        %v4467 = vld [vmem:[%s1712 + $0x10] sm:$0xff]
        %v4468 = vld [vmem:[%s1712 + $0x18] sm:$0xff]
        %v4469 = vld [vmem:[%s1712 + $0x20] sm:$0xff]
        %v4470 = vld [vmem:[%s1712 + $0x28] sm:$0xff]
        %v4471 = vld [vmem:[%s1712 + $0x30] sm:$0xff]
        %v4472 = vld [vmem:[%s1712 + $0x38] sm:$0xff]
        %v4473 = vld [vmem:[%s1712 + $0x40] sm:$0xff]
        %v4474 = vld [vmem:[%s1712 + $0x48] sm:$0xff]
        %v4475 = vld [vmem:[%s1712 + $0x50] sm:$0xff]
        %v4476 = vld [vmem:[%s1712 + $0x58] sm:$0xff]
        %v4477 = vld [vmem:[%s1712 + $0x60] sm:$0xff]
        %v4478 = vld [vmem:[%s1712 + $0x68] sm:$0xff]
        %v4479 = vld [vmem:[%s1712 + $0x70] sm:$0xff]
        %v4480 = vld [vmem:[%s1712 + $0x78] sm:$0xff]
        %4481 = vmatprep.subr.mxu0 0.0
        %4482 = vmatpush1.msra.mxu0 %v4465
        %4483 = vmatprep.subr.mxu0 0.0
        %4484 = vmatpush1.msra.mxu0 %v4466
        %4485 = vmatprep.subr.mxu0 0.0
        %4486 = vmatpush1.msra.mxu0 %v4467
        %4487 = vmatprep.subr.mxu0 0.0
        %4488 = vmatpush1.msra.mxu0 %v4468
        %4489 = vmatprep.subr.mxu0 0.0
        %4490 = vmatpush1.msra.mxu0 %v4469
        %4491 = vmatprep.subr.mxu0 0.0
        %4492 = vmatpush1.msra.mxu0 %v4470
        %4493 = vmatprep.subr.mxu0 0.0
        %4494 = vmatpush1.msra.mxu0 %v4471
        %4495 = vmatprep.subr.mxu0 0.0
        %4496 = vmatpush1.msra.mxu0 %v4472
        %4497 = vmatprep.subr.mxu0 0.0
        %4498 = vmatpush1.msra.mxu0 %v4473
        %4499 = vmatprep.subr.mxu0 0.0
        %4500 = vmatpush1.msra.mxu0 %v4474
        %4501 = vmatprep.subr.mxu0 0.0
        %4502 = vmatpush1.msra.mxu0 %v4475
        %4503 = vmatprep.subr.mxu0 0.0
        %4504 = vmatpush1.msra.mxu0 %v4476
        %4505 = vmatprep.subr.mxu0 0.0
        %4506 = vmatpush1.msra.mxu0 %v4477
        %4507 = vmatprep.subr.mxu0 0.0
        %4508 = vmatpush1.msra.mxu0 %v4478
        %4509 = vmatprep.subr.mxu0 0.0
        %4510 = vmatpush1.msra.mxu0 %v4479
        %4511 = vmatprep.subr.mxu0 0.0
        %4512 = vmatpush1.msra.mxu0 %v4480
        %4513 = vmatprep.subr.mxu0 0.0
        %4514 = vmatpush1.msra.mxu0 0.0
        %4515 = vmatprep.subr.mxu0 0.0
        %4516 = vmatpush1.msra.mxu0 0.0
        %4517 = vmatprep.subr.mxu0 0.0
        %4518 = vmatpush1.msra.mxu0 0.0
        %4519 = vmatprep.subr.mxu0 0.0
        %4520 = vmatpush1.msra.mxu0 0.0
        %4521 = vmatprep.subr.mxu0 0.0
        %4522 = vmatpush1.msra.mxu0 0.0
        %4523 = vmatprep.subr.mxu0 0.0
        %4524 = vmatpush1.msra.mxu0 0.0
        %4525 = vmatprep.subr.mxu0 0.0
        %4526 = vmatpush1.msra.mxu0 0.0
        %4527 = vmatprep.subr.mxu0 0.0
        %4528 = vmatpush1.msra.mxu0 0.0
        %4529 = vmatprep.subr.mxu0 0.0
        %4530 = vmatpush1.msra.mxu0 0.0
        %4531 = vmatprep.subr.mxu0 0.0
        %4532 = vmatpush1.msra.mxu0 0.0
        %4533 = vmatprep.subr.mxu0 0.0
        %4534 = vmatpush1.msra.mxu0 0.0
        %4535 = vmatprep.subr.mxu0 0.0
        %4536 = vmatpush1.msra.mxu0 0.0
        %4537 = vmatprep.subr.mxu0 0.0
        %4538 = vmatpush1.msra.mxu0 0.0
        %4539 = vmatprep.subr.mxu0 0.0
        %4540 = vmatpush1.msra.mxu0 0.0
        %4541 = vmatprep.subr.mxu0 0.0
        %4542 = vmatpush1.msra.mxu0 0.0
        %4543 = vmatprep.subr.mxu0 0.0
        %4544 = vmatpush1.msra.mxu0 0.0
        %4545 = vmatprep.mubr.f32.mxu0 0.0
        %4546 = vmatmul.mubr.f32.gmra.mrb[0].mxu0 %v4461
        %v4547 = vpop.f32.mrb[0].mxu0
        %v4548 = vadd.f32 0.0, %v4547
        %v4549 = vpop.f32.mrb[0].mxu0
        %4550 = vmatprep.mubr.f32.mxu0 0.0
        %4551 = vmatmul.mubr.f32.gmra.mrb[0].mxu0 %v4462
        %v4552 = vpop.f32.mrb[0].mxu0
        %v4553 = vadd.f32 0.0, %v4552
        %v4554 = vpop.f32.mrb[0].mxu0
        %4555 = vmatprep.mubr.f32.mxu0 0.0
        %4556 = vmatmul.mubr.f32.gmra.mrb[0].mxu0 %v4463
        %v4557 = vpop.f32.mrb[0].mxu0
        %v4558 = vadd.f32 0.0, %v4557
        %v4559 = vpop.f32.mrb[0].mxu0
        %4560 = vmatprep.mubr.f32.mxu0 0.0
        %4561 = vmatmul.mubr.f32.gmra.mrb[0].mxu0 %v4464
        %v4562 = vpop.f32.mrb[0].mxu0
        %v4563 = vadd.f32 0.0, %v4562
        %v4564 = vpop.f32.mrb[0].mxu0
        %4565 = vdwg.mxu0
        %v4566 = vadd.f32 %v4443, %v4548
        %v4567 = vadd.f32 %v4448, %v4553
        %v4568 = vadd.f32 %v4453, %v4558
        %v4569 = vadd.f32 %v4458, %v4563
        %v4570 = vld [vmem:[#allocation2 + $0x112] sm:$0xff]
        %v4571 = vld [vmem:[#allocation2 + $0x11a] sm:$0xff]
        %v4572 = vld [vmem:[#allocation2 + $0x122] sm:$0xff]
        %v4573 = vld [vmem:[#allocation2 + $0x12a] sm:$0xff]
        %v4574 = vld [vmem:[%s2018] sm:$0xff]
        %v4575 = vld [vmem:[%s2018 + $0x8] sm:$0xff]
        %v4576 = vld [vmem:[%s2018 + $0x10] sm:$0xff]
        %v4577 = vld [vmem:[%s2018 + $0x18] sm:$0xff]
        %v4578 = vld [vmem:[%s2018 + $0x20] sm:$0xff]
        %v4579 = vld [vmem:[%s2018 + $0x28] sm:$0xff]
        %v4580 = vld [vmem:[%s2018 + $0x30] sm:$0xff]
        %v4581 = vld [vmem:[%s2018 + $0x38] sm:$0xff]
        %v4582 = vld [vmem:[%s2018 + $0x40] sm:$0xff]
        %v4583 = vld [vmem:[%s2018 + $0x48] sm:$0xff]
        %v4584 = vld [vmem:[%s2018 + $0x50] sm:$0xff]
        %v4585 = vld [vmem:[%s2018 + $0x58] sm:$0xff]
        %v4586 = vld [vmem:[%s2018 + $0x60] sm:$0xff]
        %v4587 = vld [vmem:[%s2018 + $0x68] sm:$0xff]
        %v4588 = vld [vmem:[%s2018 + $0x70] sm:$0xff]
        %v4589 = vld [vmem:[%s2018 + $0x78] sm:$0xff]
        %4590 = vmatprep.subr.mxu0 0.0
        %4591 = vmatpush1.msra.mxu0 %v4574
        %4592 = vmatprep.subr.mxu0 0.0
        %4593 = vmatpush1.msra.mxu0 %v4575
        %4594 = vmatprep.subr.mxu0 0.0
        %4595 = vmatpush1.msra.mxu0 %v4576
        %4596 = vmatprep.subr.mxu0 0.0
        %4597 = vmatpush1.msra.mxu0 %v4577
        %4598 = vmatprep.subr.mxu0 0.0
        %4599 = vmatpush1.msra.mxu0 %v4578
        %4600 = vmatprep.subr.mxu0 0.0
        %4601 = vmatpush1.msra.mxu0 %v4579
        %4602 = vmatprep.subr.mxu0 0.0
        %4603 = vmatpush1.msra.mxu0 %v4580
        %4604 = vmatprep.subr.mxu0 0.0
        %4605 = vmatpush1.msra.mxu0 %v4581
        %4606 = vmatprep.subr.mxu0 0.0
        %4607 = vmatpush1.msra.mxu0 %v4582
        %4608 = vmatprep.subr.mxu0 0.0
        %4609 = vmatpush1.msra.mxu0 %v4583
        %4610 = vmatprep.subr.mxu0 0.0
        %4611 = vmatpush1.msra.mxu0 %v4584
        %4612 = vmatprep.subr.mxu0 0.0
        %4613 = vmatpush1.msra.mxu0 %v4585
        %4614 = vmatprep.subr.mxu0 0.0
        %4615 = vmatpush1.msra.mxu0 %v4586
        %4616 = vmatprep.subr.mxu0 0.0
        %4617 = vmatpush1.msra.mxu0 %v4587
        %4618 = vmatprep.subr.mxu0 0.0
        %4619 = vmatpush1.msra.mxu0 %v4588
        %4620 = vmatprep.subr.mxu0 0.0
        %4621 = vmatpush1.msra.mxu0 %v4589
        %4622 = vmatprep.subr.mxu0 0.0
        %4623 = vmatpush1.msra.mxu0 0.0
        %4624 = vmatprep.subr.mxu0 0.0
        %4625 = vmatpush1.msra.mxu0 0.0
        %4626 = vmatprep.subr.mxu0 0.0
        %4627 = vmatpush1.msra.mxu0 0.0
        %4628 = vmatprep.subr.mxu0 0.0
        %4629 = vmatpush1.msra.mxu0 0.0
        %4630 = vmatprep.subr.mxu0 0.0
        %4631 = vmatpush1.msra.mxu0 0.0
        %4632 = vmatprep.subr.mxu0 0.0
        %4633 = vmatpush1.msra.mxu0 0.0
        %4634 = vmatprep.subr.mxu0 0.0
        %4635 = vmatpush1.msra.mxu0 0.0
        %4636 = vmatprep.subr.mxu0 0.0
        %4637 = vmatpush1.msra.mxu0 0.0
        %4638 = vmatprep.subr.mxu0 0.0
        %4639 = vmatpush1.msra.mxu0 0.0
        %4640 = vmatprep.subr.mxu0 0.0
        %4641 = vmatpush1.msra.mxu0 0.0
        %4642 = vmatprep.subr.mxu0 0.0
        %4643 = vmatpush1.msra.mxu0 0.0
        %4644 = vmatprep.subr.mxu0 0.0
        %4645 = vmatpush1.msra.mxu0 0.0
        %4646 = vmatprep.subr.mxu0 0.0
        %4647 = vmatpush1.msra.mxu0 0.0
        %4648 = vmatprep.subr.mxu0 0.0
        %4649 = vmatpush1.msra.mxu0 0.0
        %4650 = vmatprep.subr.mxu0 0.0
        %4651 = vmatpush1.msra.mxu0 0.0
        %4652 = vmatprep.subr.mxu0 0.0
        %4653 = vmatpush1.msra.mxu0 0.0
        %4654 = vmatprep.mubr.f32.mxu0 0.0
        %4655 = vmatmul.mubr.f32.gmra.mrb[0].mxu0 %v4570
        %v4656 = vpop.f32.mrb[0].mxu0
        %v4657 = vadd.f32 0.0, %v4656
        %v4658 = vpop.f32.mrb[0].mxu0
        %4659 = vmatprep.mubr.f32.mxu0 0.0
        %4660 = vmatmul.mubr.f32.gmra.mrb[0].mxu0 %v4571
        %v4661 = vpop.f32.mrb[0].mxu0
        %v4662 = vadd.f32 0.0, %v4661
        %v4663 = vpop.f32.mrb[0].mxu0
        %4664 = vmatprep.mubr.f32.mxu0 0.0
        %4665 = vmatmul.mubr.f32.gmra.mrb[0].mxu0 %v4572
        %v4666 = vpop.f32.mrb[0].mxu0
        %v4667 = vadd.f32 0.0, %v4666
        %v4668 = vpop.f32.mrb[0].mxu0
        %4669 = vmatprep.mubr.f32.mxu0 0.0
        %4670 = vmatmul.mubr.f32.gmra.mrb[0].mxu0 %v4573
        %v4671 = vpop.f32.mrb[0].mxu0
        %v4672 = vadd.f32 0.0, %v4671
        %v4673 = vpop.f32.mrb[0].mxu0
        %4674 = vdwg.mxu0
        %v4675 = vadd.f32 %v4566, %v4657
        %v4676 = vadd.f32 %v4567, %v4662
        %v4677 = vadd.f32 %v4568, %v4667
        %v4678 = vadd.f32 %v4569, %v4672
        %v4679 = vld [vmem:[#allocation2 + $0x113] sm:$0xff]
        %v4680 = vld [vmem:[#allocation2 + $0x11b] sm:$0xff]
        %v4681 = vld [vmem:[#allocation2 + $0x123] sm:$0xff]
        %v4682 = vld [vmem:[#allocation2 + $0x12b] sm:$0xff]
        %v4683 = vld [vmem:[%s2324] sm:$0xff]
        %v4684 = vld [vmem:[%s2324 + $0x8] sm:$0xff]
        %v4685 = vld [vmem:[%s2324 + $0x10] sm:$0xff]
        %v4686 = vld [vmem:[%s2324 + $0x18] sm:$0xff]
        %v4687 = vld [vmem:[%s2324 + $0x20] sm:$0xff]
        %v4688 = vld [vmem:[%s2324 + $0x28] sm:$0xff]
        %v4689 = vld [vmem:[%s2324 + $0x30] sm:$0xff]
        %v4690 = vld [vmem:[%s2324 + $0x38] sm:$0xff]
        %v4691 = vld [vmem:[%s2324 + $0x40] sm:$0xff]
        %v4692 = vld [vmem:[%s2324 + $0x48] sm:$0xff]
        %v4693 = vld [vmem:[%s2324 + $0x50] sm:$0xff]
        %v4694 = vld [vmem:[%s2324 + $0x58] sm:$0xff]
        %v4695 = vld [vmem:[%s2324 + $0x60] sm:$0xff]
        %v4696 = vld [vmem:[%s2324 + $0x68] sm:$0xff]
        %v4697 = vld [vmem:[%s2324 + $0x70] sm:$0xff]
        %v4698 = vld [vmem:[%s2324 + $0x78] sm:$0xff]
        %4699 = vmatprep.subr.mxu0 0.0
        %4700 = vmatpush1.msra.mxu0 %v4683
        %4701 = vmatprep.subr.mxu0 0.0
        %4702 = vmatpush1.msra.mxu0 %v4684
        %4703 = vmatprep.subr.mxu0 0.0
        %4704 = vmatpush1.msra.mxu0 %v4685
        %4705 = vmatprep.subr.mxu0 0.0
        %4706 = vmatpush1.msra.mxu0 %v4686
        %4707 = vmatprep.subr.mxu0 0.0
        %4708 = vmatpush1.msra.mxu0 %v4687
        %4709 = vmatprep.subr.mxu0 0.0
        %4710 = vmatpush1.msra.mxu0 %v4688
        %4711 = vmatprep.subr.mxu0 0.0
        %4712 = vmatpush1.msra.mxu0 %v4689
        %4713 = vmatprep.subr.mxu0 0.0
        %4714 = vmatpush1.msra.mxu0 %v4690
        %4715 = vmatprep.subr.mxu0 0.0
        %4716 = vmatpush1.msra.mxu0 %v4691
        %4717 = vmatprep.subr.mxu0 0.0
        %4718 = vmatpush1.msra.mxu0 %v4692
        %4719 = vmatprep.subr.mxu0 0.0
        %4720 = vmatpush1.msra.mxu0 %v4693
        %4721 = vmatprep.subr.mxu0 0.0
        %4722 = vmatpush1.msra.mxu0 %v4694
        %4723 = vmatprep.subr.mxu0 0.0
        %4724 = vmatpush1.msra.mxu0 %v4695
        %4725 = vmatprep.subr.mxu0 0.0
        %4726 = vmatpush1.msra.mxu0 %v4696
        %4727 = vmatprep.subr.mxu0 0.0
        %4728 = vmatpush1.msra.mxu0 %v4697
        %4729 = vmatprep.subr.mxu0 0.0
        %4730 = vmatpush1.msra.mxu0 %v4698
        %4731 = vmatprep.subr.mxu0 0.0
        %4732 = vmatpush1.msra.mxu0 0.0
        %4733 = vmatprep.subr.mxu0 0.0
        %4734 = vmatpush1.msra.mxu0 0.0
        %4735 = vmatprep.subr.mxu0 0.0
        %4736 = vmatpush1.msra.mxu0 0.0
        %4737 = vmatprep.subr.mxu0 0.0
        %4738 = vmatpush1.msra.mxu0 0.0
        %4739 = vmatprep.subr.mxu0 0.0
        %4740 = vmatpush1.msra.mxu0 0.0
        %4741 = vmatprep.subr.mxu0 0.0
        %4742 = vmatpush1.msra.mxu0 0.0
        %4743 = vmatprep.subr.mxu0 0.0
        %4744 = vmatpush1.msra.mxu0 0.0
        %4745 = vmatprep.subr.mxu0 0.0
        %4746 = vmatpush1.msra.mxu0 0.0
        %4747 = vmatprep.subr.mxu0 0.0
        %4748 = vmatpush1.msra.mxu0 0.0
        %4749 = vmatprep.subr.mxu0 0.0
        %4750 = vmatpush1.msra.mxu0 0.0
        %4751 = vmatprep.subr.mxu0 0.0
        %4752 = vmatpush1.msra.mxu0 0.0
        %4753 = vmatprep.subr.mxu0 0.0
        %4754 = vmatpush1.msra.mxu0 0.0
        %4755 = vmatprep.subr.mxu0 0.0
        %4756 = vmatpush1.msra.mxu0 0.0
        %4757 = vmatprep.subr.mxu0 0.0
        %4758 = vmatpush1.msra.mxu0 0.0
        %4759 = vmatprep.subr.mxu0 0.0
        %4760 = vmatpush1.msra.mxu0 0.0
        %4761 = vmatprep.subr.mxu0 0.0
        %4762 = vmatpush1.msra.mxu0 0.0
        %4763 = vmatprep.mubr.f32.mxu0 0.0
        %4764 = vmatmul.mubr.f32.gmra.mrb[0].mxu0 %v4679
        %v4765 = vpop.f32.mrb[0].mxu0
        %v4766 = vadd.f32 0.0, %v4765
        %v4767 = vpop.f32.mrb[0].mxu0
        %4768 = vmatprep.mubr.f32.mxu0 0.0
        %4769 = vmatmul.mubr.f32.gmra.mrb[0].mxu0 %v4680
        %v4770 = vpop.f32.mrb[0].mxu0
        %v4771 = vadd.f32 0.0, %v4770
        %v4772 = vpop.f32.mrb[0].mxu0
        %4773 = vmatprep.mubr.f32.mxu0 0.0
        %4774 = vmatmul.mubr.f32.gmra.mrb[0].mxu0 %v4681
        %v4775 = vpop.f32.mrb[0].mxu0
        %v4776 = vadd.f32 0.0, %v4775
        %v4777 = vpop.f32.mrb[0].mxu0
        %4778 = vmatprep.mubr.f32.mxu0 0.0
        %4779 = vmatmul.mubr.f32.gmra.mrb[0].mxu0 %v4682
        %v4780 = vpop.f32.mrb[0].mxu0
        %v4781 = vadd.f32 0.0, %v4780
        %v4782 = vpop.f32.mrb[0].mxu0
        %4783 = vdwg.mxu0
        %v4784 = vadd.f32 %v4675, %v4766
        %v4785 = vadd.f32 %v4676, %v4771
        %v4786 = vadd.f32 %v4677, %v4776
        %v4787 = vadd.f32 %v4678, %v4781
        %v4788 = vld [vmem:[#allocation2 + $0x114] sm:$0xff]
        %v4789 = vld [vmem:[#allocation2 + $0x11c] sm:$0xff]
        %v4790 = vld [vmem:[#allocation2 + $0x124] sm:$0xff]
        %v4791 = vld [vmem:[#allocation2 + $0x12c] sm:$0xff]
        %v4792 = vld [vmem:[%s2630] sm:$0xff]
        %v4793 = vld [vmem:[%s2630 + $0x8] sm:$0xff]
        %v4794 = vld [vmem:[%s2630 + $0x10] sm:$0xff]
        %v4795 = vld [vmem:[%s2630 + $0x18] sm:$0xff]
        %v4796 = vld [vmem:[%s2630 + $0x20] sm:$0xff]
        %v4797 = vld [vmem:[%s2630 + $0x28] sm:$0xff]
        %v4798 = vld [vmem:[%s2630 + $0x30] sm:$0xff]
        %v4799 = vld [vmem:[%s2630 + $0x38] sm:$0xff]
        %v4800 = vld [vmem:[%s2630 + $0x40] sm:$0xff]
        %v4801 = vld [vmem:[%s2630 + $0x48] sm:$0xff]
        %v4802 = vld [vmem:[%s2630 + $0x50] sm:$0xff]
        %v4803 = vld [vmem:[%s2630 + $0x58] sm:$0xff]
        %v4804 = vld [vmem:[%s2630 + $0x60] sm:$0xff]
        %v4805 = vld [vmem:[%s2630 + $0x68] sm:$0xff]
        %v4806 = vld [vmem:[%s2630 + $0x70] sm:$0xff]
        %v4807 = vld [vmem:[%s2630 + $0x78] sm:$0xff]
        %4808 = vmatprep.subr.mxu0 0.0
        %4809 = vmatpush1.msra.mxu0 %v4792
        %4810 = vmatprep.subr.mxu0 0.0
        %4811 = vmatpush1.msra.mxu0 %v4793
        %4812 = vmatprep.subr.mxu0 0.0
        %4813 = vmatpush1.msra.mxu0 %v4794
        %4814 = vmatprep.subr.mxu0 0.0
        %4815 = vmatpush1.msra.mxu0 %v4795
        %4816 = vmatprep.subr.mxu0 0.0
        %4817 = vmatpush1.msra.mxu0 %v4796
        %4818 = vmatprep.subr.mxu0 0.0
        %4819 = vmatpush1.msra.mxu0 %v4797
        %4820 = vmatprep.subr.mxu0 0.0
        %4821 = vmatpush1.msra.mxu0 %v4798
        %4822 = vmatprep.subr.mxu0 0.0
        %4823 = vmatpush1.msra.mxu0 %v4799
        %4824 = vmatprep.subr.mxu0 0.0
        %4825 = vmatpush1.msra.mxu0 %v4800
        %4826 = vmatprep.subr.mxu0 0.0
        %4827 = vmatpush1.msra.mxu0 %v4801
        %4828 = vmatprep.subr.mxu0 0.0
        %4829 = vmatpush1.msra.mxu0 %v4802
        %4830 = vmatprep.subr.mxu0 0.0
        %4831 = vmatpush1.msra.mxu0 %v4803
        %4832 = vmatprep.subr.mxu0 0.0
        %4833 = vmatpush1.msra.mxu0 %v4804
        %4834 = vmatprep.subr.mxu0 0.0
        %4835 = vmatpush1.msra.mxu0 %v4805
        %4836 = vmatprep.subr.mxu0 0.0
        %4837 = vmatpush1.msra.mxu0 %v4806
        %4838 = vmatprep.subr.mxu0 0.0
        %4839 = vmatpush1.msra.mxu0 %v4807
        %4840 = vmatprep.subr.mxu0 0.0
        %4841 = vmatpush1.msra.mxu0 0.0
        %4842 = vmatprep.subr.mxu0 0.0
        %4843 = vmatpush1.msra.mxu0 0.0
        %4844 = vmatprep.subr.mxu0 0.0
        %4845 = vmatpush1.msra.mxu0 0.0
        %4846 = vmatprep.subr.mxu0 0.0
        %4847 = vmatpush1.msra.mxu0 0.0
        %4848 = vmatprep.subr.mxu0 0.0
        %4849 = vmatpush1.msra.mxu0 0.0
        %4850 = vmatprep.subr.mxu0 0.0
        %4851 = vmatpush1.msra.mxu0 0.0
        %4852 = vmatprep.subr.mxu0 0.0
        %4853 = vmatpush1.msra.mxu0 0.0
        %4854 = vmatprep.subr.mxu0 0.0
        %4855 = vmatpush1.msra.mxu0 0.0
        %4856 = vmatprep.subr.mxu0 0.0
        %4857 = vmatpush1.msra.mxu0 0.0
        %4858 = vmatprep.subr.mxu0 0.0
        %4859 = vmatpush1.msra.mxu0 0.0
        %4860 = vmatprep.subr.mxu0 0.0
        %4861 = vmatpush1.msra.mxu0 0.0
        %4862 = vmatprep.subr.mxu0 0.0
        %4863 = vmatpush1.msra.mxu0 0.0
        %4864 = vmatprep.subr.mxu0 0.0
        %4865 = vmatpush1.msra.mxu0 0.0
        %4866 = vmatprep.subr.mxu0 0.0
        %4867 = vmatpush1.msra.mxu0 0.0
        %4868 = vmatprep.subr.mxu0 0.0
        %4869 = vmatpush1.msra.mxu0 0.0
        %4870 = vmatprep.subr.mxu0 0.0
        %4871 = vmatpush1.msra.mxu0 0.0
        %4872 = vmatprep.mubr.f32.mxu0 0.0
        %4873 = vmatmul.mubr.f32.gmra.mrb[0].mxu0 %v4788
        %v4874 = vpop.f32.mrb[0].mxu0
        %v4875 = vadd.f32 0.0, %v4874
        %v4876 = vpop.f32.mrb[0].mxu0
        %4877 = vmatprep.mubr.f32.mxu0 0.0
        %4878 = vmatmul.mubr.f32.gmra.mrb[0].mxu0 %v4789
        %v4879 = vpop.f32.mrb[0].mxu0
        %v4880 = vadd.f32 0.0, %v4879
        %v4881 = vpop.f32.mrb[0].mxu0
        %4882 = vmatprep.mubr.f32.mxu0 0.0
        %4883 = vmatmul.mubr.f32.gmra.mrb[0].mxu0 %v4790
        %v4884 = vpop.f32.mrb[0].mxu0
        %v4885 = vadd.f32 0.0, %v4884
        %v4886 = vpop.f32.mrb[0].mxu0
        %4887 = vmatprep.mubr.f32.mxu0 0.0
        %4888 = vmatmul.mubr.f32.gmra.mrb[0].mxu0 %v4791
        %v4889 = vpop.f32.mrb[0].mxu0
        %v4890 = vadd.f32 0.0, %v4889
        %v4891 = vpop.f32.mrb[0].mxu0
        %4892 = vdwg.mxu0
        %v4893 = vadd.f32 %v4784, %v4875
        %v4894 = vadd.f32 %v4785, %v4880
        %v4895 = vadd.f32 %v4786, %v4885
        %v4896 = vadd.f32 %v4787, %v4890
        %v4897 = vld [vmem:[#allocation2 + $0x124] sm:$0xff]
        %v4898 = vld [vmem:[#allocation2 + $0x12c] sm:$0xff]
        %v4899 = vld [vmem:[#allocation2 + $0x134] sm:$0xff]
        %v4900 = vld [vmem:[#allocation2 + $0x13c] sm:$0xff]
        %v4901 = vld [vmem:[%s2936] sm:$0xff]
        %v4902 = vld [vmem:[%s2936 + $0x8] sm:$0xff]
        %v4903 = vld [vmem:[%s2936 + $0x10] sm:$0xff]
        %v4904 = vld [vmem:[%s2936 + $0x18] sm:$0xff]
        %v4905 = vld [vmem:[%s2936 + $0x20] sm:$0xff]
        %v4906 = vld [vmem:[%s2936 + $0x28] sm:$0xff]
        %v4907 = vld [vmem:[%s2936 + $0x30] sm:$0xff]
        %v4908 = vld [vmem:[%s2936 + $0x38] sm:$0xff]
        %v4909 = vld [vmem:[%s2936 + $0x40] sm:$0xff]
        %v4910 = vld [vmem:[%s2936 + $0x48] sm:$0xff]
        %v4911 = vld [vmem:[%s2936 + $0x50] sm:$0xff]
        %v4912 = vld [vmem:[%s2936 + $0x58] sm:$0xff]
        %v4913 = vld [vmem:[%s2936 + $0x60] sm:$0xff]
        %v4914 = vld [vmem:[%s2936 + $0x68] sm:$0xff]
        %v4915 = vld [vmem:[%s2936 + $0x70] sm:$0xff]
        %v4916 = vld [vmem:[%s2936 + $0x78] sm:$0xff]
        %4917 = vmatprep.subr.mxu0 0.0
        %4918 = vmatpush1.msra.mxu0 %v4901
        %4919 = vmatprep.subr.mxu0 0.0
        %4920 = vmatpush1.msra.mxu0 %v4902
        %4921 = vmatprep.subr.mxu0 0.0
        %4922 = vmatpush1.msra.mxu0 %v4903
        %4923 = vmatprep.subr.mxu0 0.0
        %4924 = vmatpush1.msra.mxu0 %v4904
        %4925 = vmatprep.subr.mxu0 0.0
        %4926 = vmatpush1.msra.mxu0 %v4905
        %4927 = vmatprep.subr.mxu0 0.0
        %4928 = vmatpush1.msra.mxu0 %v4906
        %4929 = vmatprep.subr.mxu0 0.0
        %4930 = vmatpush1.msra.mxu0 %v4907
        %4931 = vmatprep.subr.mxu0 0.0
        %4932 = vmatpush1.msra.mxu0 %v4908
        %4933 = vmatprep.subr.mxu0 0.0
        %4934 = vmatpush1.msra.mxu0 %v4909
        %4935 = vmatprep.subr.mxu0 0.0
        %4936 = vmatpush1.msra.mxu0 %v4910
        %4937 = vmatprep.subr.mxu0 0.0
        %4938 = vmatpush1.msra.mxu0 %v4911
        %4939 = vmatprep.subr.mxu0 0.0
        %4940 = vmatpush1.msra.mxu0 %v4912
        %4941 = vmatprep.subr.mxu0 0.0
        %4942 = vmatpush1.msra.mxu0 %v4913
        %4943 = vmatprep.subr.mxu0 0.0
        %4944 = vmatpush1.msra.mxu0 %v4914
        %4945 = vmatprep.subr.mxu0 0.0
        %4946 = vmatpush1.msra.mxu0 %v4915
        %4947 = vmatprep.subr.mxu0 0.0
        %4948 = vmatpush1.msra.mxu0 %v4916
        %4949 = vmatprep.subr.mxu0 0.0
        %4950 = vmatpush1.msra.mxu0 0.0
        %4951 = vmatprep.subr.mxu0 0.0
        %4952 = vmatpush1.msra.mxu0 0.0
        %4953 = vmatprep.subr.mxu0 0.0
        %4954 = vmatpush1.msra.mxu0 0.0
        %4955 = vmatprep.subr.mxu0 0.0
        %4956 = vmatpush1.msra.mxu0 0.0
        %4957 = vmatprep.subr.mxu0 0.0
        %4958 = vmatpush1.msra.mxu0 0.0
        %4959 = vmatprep.subr.mxu0 0.0
        %4960 = vmatpush1.msra.mxu0 0.0
        %4961 = vmatprep.subr.mxu0 0.0
        %4962 = vmatpush1.msra.mxu0 0.0
        %4963 = vmatprep.subr.mxu0 0.0
        %4964 = vmatpush1.msra.mxu0 0.0
        %4965 = vmatprep.subr.mxu0 0.0
        %4966 = vmatpush1.msra.mxu0 0.0
        %4967 = vmatprep.subr.mxu0 0.0
        %4968 = vmatpush1.msra.mxu0 0.0
        %4969 = vmatprep.subr.mxu0 0.0
        %4970 = vmatpush1.msra.mxu0 0.0
        %4971 = vmatprep.subr.mxu0 0.0
        %4972 = vmatpush1.msra.mxu0 0.0
        %4973 = vmatprep.subr.mxu0 0.0
        %4974 = vmatpush1.msra.mxu0 0.0
        %4975 = vmatprep.subr.mxu0 0.0
        %4976 = vmatpush1.msra.mxu0 0.0
        %4977 = vmatprep.subr.mxu0 0.0
        %4978 = vmatpush1.msra.mxu0 0.0
        %4979 = vmatprep.subr.mxu0 0.0
        %4980 = vmatpush1.msra.mxu0 0.0
        %4981 = vmatprep.mubr.f32.mxu0 0.0
        %4982 = vmatmul.mubr.f32.gmra.mrb[0].mxu0 %v4897
        %v4983 = vpop.f32.mrb[0].mxu0
        %v4984 = vadd.f32 0.0, %v4983
        %v4985 = vpop.f32.mrb[0].mxu0
        %4986 = vmatprep.mubr.f32.mxu0 0.0
        %4987 = vmatmul.mubr.f32.gmra.mrb[0].mxu0 %v4898
        %v4988 = vpop.f32.mrb[0].mxu0
        %v4989 = vadd.f32 0.0, %v4988
        %v4990 = vpop.f32.mrb[0].mxu0
        %4991 = vmatprep.mubr.f32.mxu0 0.0
        %4992 = vmatmul.mubr.f32.gmra.mrb[0].mxu0 %v4899
        %v4993 = vpop.f32.mrb[0].mxu0
        %v4994 = vadd.f32 0.0, %v4993
        %v4995 = vpop.f32.mrb[0].mxu0
        %4996 = vmatprep.mubr.f32.mxu0 0.0
        %4997 = vmatmul.mubr.f32.gmra.mrb[0].mxu0 %v4900
        %v4998 = vpop.f32.mrb[0].mxu0
        %v4999 = vadd.f32 0.0, %v4998
        %v5000 = vpop.f32.mrb[0].mxu0
        %5001 = vdwg.mxu0
        %v5002 = vadd.f32 %v4893, %v4984
        %v5003 = vadd.f32 %v4894, %v4989
        %v5004 = vadd.f32 %v4895, %v4994
        %v5005 = vadd.f32 %v4896, %v4999
        %v5006 = vld [vmem:[#allocation2 + $0x125] sm:$0xff]
        %v5007 = vld [vmem:[#allocation2 + $0x12d] sm:$0xff]
        %v5008 = vld [vmem:[#allocation2 + $0x135] sm:$0xff]
        %v5009 = vld [vmem:[#allocation2 + $0x13d] sm:$0xff]
        %v5010 = vld [vmem:[%s3242] sm:$0xff]
        %v5011 = vld [vmem:[%s3242 + $0x8] sm:$0xff]
        %v5012 = vld [vmem:[%s3242 + $0x10] sm:$0xff]
        %v5013 = vld [vmem:[%s3242 + $0x18] sm:$0xff]
        %v5014 = vld [vmem:[%s3242 + $0x20] sm:$0xff]
        %v5015 = vld [vmem:[%s3242 + $0x28] sm:$0xff]
        %v5016 = vld [vmem:[%s3242 + $0x30] sm:$0xff]
        %v5017 = vld [vmem:[%s3242 + $0x38] sm:$0xff]
        %v5018 = vld [vmem:[%s3242 + $0x40] sm:$0xff]
        %v5019 = vld [vmem:[%s3242 + $0x48] sm:$0xff]
        %v5020 = vld [vmem:[%s3242 + $0x50] sm:$0xff]
        %v5021 = vld [vmem:[%s3242 + $0x58] sm:$0xff]
        %v5022 = vld [vmem:[%s3242 + $0x60] sm:$0xff]
        %v5023 = vld [vmem:[%s3242 + $0x68] sm:$0xff]
        %v5024 = vld [vmem:[%s3242 + $0x70] sm:$0xff]
        %v5025 = vld [vmem:[%s3242 + $0x78] sm:$0xff]
        %5026 = vmatprep.subr.mxu0 0.0
        %5027 = vmatpush1.msra.mxu0 %v5010
        %5028 = vmatprep.subr.mxu0 0.0
        %5029 = vmatpush1.msra.mxu0 %v5011
        %5030 = vmatprep.subr.mxu0 0.0
        %5031 = vmatpush1.msra.mxu0 %v5012
        %5032 = vmatprep.subr.mxu0 0.0
        %5033 = vmatpush1.msra.mxu0 %v5013
        %5034 = vmatprep.subr.mxu0 0.0
        %5035 = vmatpush1.msra.mxu0 %v5014
        %5036 = vmatprep.subr.mxu0 0.0
        %5037 = vmatpush1.msra.mxu0 %v5015
        %5038 = vmatprep.subr.mxu0 0.0
        %5039 = vmatpush1.msra.mxu0 %v5016
        %5040 = vmatprep.subr.mxu0 0.0
        %5041 = vmatpush1.msra.mxu0 %v5017
        %5042 = vmatprep.subr.mxu0 0.0
        %5043 = vmatpush1.msra.mxu0 %v5018
        %5044 = vmatprep.subr.mxu0 0.0
        %5045 = vmatpush1.msra.mxu0 %v5019
        %5046 = vmatprep.subr.mxu0 0.0
        %5047 = vmatpush1.msra.mxu0 %v5020
        %5048 = vmatprep.subr.mxu0 0.0
        %5049 = vmatpush1.msra.mxu0 %v5021
        %5050 = vmatprep.subr.mxu0 0.0
        %5051 = vmatpush1.msra.mxu0 %v5022
        %5052 = vmatprep.subr.mxu0 0.0
        %5053 = vmatpush1.msra.mxu0 %v5023
        %5054 = vmatprep.subr.mxu0 0.0
        %5055 = vmatpush1.msra.mxu0 %v5024
        %5056 = vmatprep.subr.mxu0 0.0
        %5057 = vmatpush1.msra.mxu0 %v5025
        %5058 = vmatprep.subr.mxu0 0.0
        %5059 = vmatpush1.msra.mxu0 0.0
        %5060 = vmatprep.subr.mxu0 0.0
        %5061 = vmatpush1.msra.mxu0 0.0
        %5062 = vmatprep.subr.mxu0 0.0
        %5063 = vmatpush1.msra.mxu0 0.0
        %5064 = vmatprep.subr.mxu0 0.0
        %5065 = vmatpush1.msra.mxu0 0.0
        %5066 = vmatprep.subr.mxu0 0.0
        %5067 = vmatpush1.msra.mxu0 0.0
        %5068 = vmatprep.subr.mxu0 0.0
        %5069 = vmatpush1.msra.mxu0 0.0
        %5070 = vmatprep.subr.mxu0 0.0
        %5071 = vmatpush1.msra.mxu0 0.0
        %5072 = vmatprep.subr.mxu0 0.0
        %5073 = vmatpush1.msra.mxu0 0.0
        %5074 = vmatprep.subr.mxu0 0.0
        %5075 = vmatpush1.msra.mxu0 0.0
        %5076 = vmatprep.subr.mxu0 0.0
        %5077 = vmatpush1.msra.mxu0 0.0
        %5078 = vmatprep.subr.mxu0 0.0
        %5079 = vmatpush1.msra.mxu0 0.0
        %5080 = vmatprep.subr.mxu0 0.0
        %5081 = vmatpush1.msra.mxu0 0.0
        %5082 = vmatprep.subr.mxu0 0.0
        %5083 = vmatpush1.msra.mxu0 0.0
        %5084 = vmatprep.subr.mxu0 0.0
        %5085 = vmatpush1.msra.mxu0 0.0
        %5086 = vmatprep.subr.mxu0 0.0
        %5087 = vmatpush1.msra.mxu0 0.0
        %5088 = vmatprep.subr.mxu0 0.0
        %5089 = vmatpush1.msra.mxu0 0.0
        %5090 = vmatprep.mubr.f32.mxu0 0.0
        %5091 = vmatmul.mubr.f32.gmra.mrb[0].mxu0 %v5006
        %v5092 = vpop.f32.mrb[0].mxu0
        %v5093 = vadd.f32 0.0, %v5092
        %v5094 = vpop.f32.mrb[0].mxu0
        %5095 = vmatprep.mubr.f32.mxu0 0.0
        %5096 = vmatmul.mubr.f32.gmra.mrb[0].mxu0 %v5007
        %v5097 = vpop.f32.mrb[0].mxu0
        %v5098 = vadd.f32 0.0, %v5097
        %v5099 = vpop.f32.mrb[0].mxu0
        %5100 = vmatprep.mubr.f32.mxu0 0.0
        %5101 = vmatmul.mubr.f32.gmra.mrb[0].mxu0 %v5008
        %v5102 = vpop.f32.mrb[0].mxu0
        %v5103 = vadd.f32 0.0, %v5102
        %v5104 = vpop.f32.mrb[0].mxu0
        %5105 = vmatprep.mubr.f32.mxu0 0.0
        %5106 = vmatmul.mubr.f32.gmra.mrb[0].mxu0 %v5009
        %v5107 = vpop.f32.mrb[0].mxu0
        %v5108 = vadd.f32 0.0, %v5107
        %v5109 = vpop.f32.mrb[0].mxu0
        %5110 = vdwg.mxu0
        %v5111 = vadd.f32 %v5002, %v5093
        %v5112 = vadd.f32 %v5003, %v5098
        %v5113 = vadd.f32 %v5004, %v5103
        %v5114 = vadd.f32 %v5005, %v5108
        %v5115 = vld [vmem:[#allocation2 + $0x126] sm:$0xff]
        %v5116 = vld [vmem:[#allocation2 + $0x12e] sm:$0xff]
        %v5117 = vld [vmem:[#allocation2 + $0x136] sm:$0xff]
        %v5118 = vld [vmem:[#allocation2 + $0x13e] sm:$0xff]
        %v5119 = vld [vmem:[%s3548] sm:$0xff]
        %v5120 = vld [vmem:[%s3548 + $0x8] sm:$0xff]
        %v5121 = vld [vmem:[%s3548 + $0x10] sm:$0xff]
        %v5122 = vld [vmem:[%s3548 + $0x18] sm:$0xff]
        %v5123 = vld [vmem:[%s3548 + $0x20] sm:$0xff]
        %v5124 = vld [vmem:[%s3548 + $0x28] sm:$0xff]
        %v5125 = vld [vmem:[%s3548 + $0x30] sm:$0xff]
        %v5126 = vld [vmem:[%s3548 + $0x38] sm:$0xff]
        %v5127 = vld [vmem:[%s3548 + $0x40] sm:$0xff]
        %v5128 = vld [vmem:[%s3548 + $0x48] sm:$0xff]
        %v5129 = vld [vmem:[%s3548 + $0x50] sm:$0xff]
        %v5130 = vld [vmem:[%s3548 + $0x58] sm:$0xff]
        %v5131 = vld [vmem:[%s3548 + $0x60] sm:$0xff]
        %v5132 = vld [vmem:[%s3548 + $0x68] sm:$0xff]
        %v5133 = vld [vmem:[%s3548 + $0x70] sm:$0xff]
        %v5134 = vld [vmem:[%s3548 + $0x78] sm:$0xff]
        %5135 = vmatprep.subr.mxu0 0.0
        %5136 = vmatpush1.msra.mxu0 %v5119
        %5137 = vmatprep.subr.mxu0 0.0
        %5138 = vmatpush1.msra.mxu0 %v5120
        %5139 = vmatprep.subr.mxu0 0.0
        %5140 = vmatpush1.msra.mxu0 %v5121
        %5141 = vmatprep.subr.mxu0 0.0
        %5142 = vmatpush1.msra.mxu0 %v5122
        %5143 = vmatprep.subr.mxu0 0.0
        %5144 = vmatpush1.msra.mxu0 %v5123
        %5145 = vmatprep.subr.mxu0 0.0
        %5146 = vmatpush1.msra.mxu0 %v5124
        %5147 = vmatprep.subr.mxu0 0.0
        %5148 = vmatpush1.msra.mxu0 %v5125
        %5149 = vmatprep.subr.mxu0 0.0
        %5150 = vmatpush1.msra.mxu0 %v5126
        %5151 = vmatprep.subr.mxu0 0.0
        %5152 = vmatpush1.msra.mxu0 %v5127
        %5153 = vmatprep.subr.mxu0 0.0
        %5154 = vmatpush1.msra.mxu0 %v5128
        %5155 = vmatprep.subr.mxu0 0.0
        %5156 = vmatpush1.msra.mxu0 %v5129
        %5157 = vmatprep.subr.mxu0 0.0
        %5158 = vmatpush1.msra.mxu0 %v5130
        %5159 = vmatprep.subr.mxu0 0.0
        %5160 = vmatpush1.msra.mxu0 %v5131
        %5161 = vmatprep.subr.mxu0 0.0
        %5162 = vmatpush1.msra.mxu0 %v5132
        %5163 = vmatprep.subr.mxu0 0.0
        %5164 = vmatpush1.msra.mxu0 %v5133
        %5165 = vmatprep.subr.mxu0 0.0
        %5166 = vmatpush1.msra.mxu0 %v5134
        %5167 = vmatprep.subr.mxu0 0.0
        %5168 = vmatpush1.msra.mxu0 0.0
        %5169 = vmatprep.subr.mxu0 0.0
        %5170 = vmatpush1.msra.mxu0 0.0
        %5171 = vmatprep.subr.mxu0 0.0
        %5172 = vmatpush1.msra.mxu0 0.0
        %5173 = vmatprep.subr.mxu0 0.0
        %5174 = vmatpush1.msra.mxu0 0.0
        %5175 = vmatprep.subr.mxu0 0.0
        %5176 = vmatpush1.msra.mxu0 0.0
        %5177 = vmatprep.subr.mxu0 0.0
        %5178 = vmatpush1.msra.mxu0 0.0
        %5179 = vmatprep.subr.mxu0 0.0
        %5180 = vmatpush1.msra.mxu0 0.0
        %5181 = vmatprep.subr.mxu0 0.0
        %5182 = vmatpush1.msra.mxu0 0.0
        %5183 = vmatprep.subr.mxu0 0.0
        %5184 = vmatpush1.msra.mxu0 0.0
        %5185 = vmatprep.subr.mxu0 0.0
        %5186 = vmatpush1.msra.mxu0 0.0
        %5187 = vmatprep.subr.mxu0 0.0
        %5188 = vmatpush1.msra.mxu0 0.0
        %5189 = vmatprep.subr.mxu0 0.0
        %5190 = vmatpush1.msra.mxu0 0.0
        %5191 = vmatprep.subr.mxu0 0.0
        %5192 = vmatpush1.msra.mxu0 0.0
        %5193 = vmatprep.subr.mxu0 0.0
        %5194 = vmatpush1.msra.mxu0 0.0
        %5195 = vmatprep.subr.mxu0 0.0
        %5196 = vmatpush1.msra.mxu0 0.0
        %5197 = vmatprep.subr.mxu0 0.0
        %5198 = vmatpush1.msra.mxu0 0.0
        %5199 = vmatprep.mubr.f32.mxu0 0.0
        %5200 = vmatmul.mubr.f32.gmra.mrb[0].mxu0 %v5115
        %v5201 = vpop.f32.mrb[0].mxu0
        %v5202 = vadd.f32 0.0, %v5201
        %v5203 = vpop.f32.mrb[0].mxu0
        %5204 = vmatprep.mubr.f32.mxu0 0.0
        %5205 = vmatmul.mubr.f32.gmra.mrb[0].mxu0 %v5116
        %v5206 = vpop.f32.mrb[0].mxu0
        %v5207 = vadd.f32 0.0, %v5206
        %v5208 = vpop.f32.mrb[0].mxu0
        %5209 = vmatprep.mubr.f32.mxu0 0.0
        %5210 = vmatmul.mubr.f32.gmra.mrb[0].mxu0 %v5117
        %v5211 = vpop.f32.mrb[0].mxu0
        %v5212 = vadd.f32 0.0, %v5211
        %v5213 = vpop.f32.mrb[0].mxu0
        %5214 = vmatprep.mubr.f32.mxu0 0.0
        %5215 = vmatmul.mubr.f32.gmra.mrb[0].mxu0 %v5118
        %v5216 = vpop.f32.mrb[0].mxu0
        %v5217 = vadd.f32 0.0, %v5216
        %v5218 = vpop.f32.mrb[0].mxu0
        %5219 = vdwg.mxu0
        %v5220 = vadd.f32 %v5111, %v5202
        %v5221 = vadd.f32 %v5112, %v5207
        %v5222 = vadd.f32 %v5113, %v5212
        %v5223 = vadd.f32 %v5114, %v5217
        %v5224 = vadd.f32 %v5220, %v3826
        %v5225 = vadd.f32 %v5221, %v3826
        %v5226 = vadd.f32 %v5222, %v3826
        %v5227 = vadd.f32 %v5223, %v3826
        %v5228 = vmax.f32 %v5224, 0.0
        %v5229 = vmax.f32 %v5225, 0.0
        %v5230 = vmax.f32 %v5226, 0.0
        %v5231 = vmax.f32 %v5227, 0.0
        %5232 = vmatprep.subr.mxu0 0.0
        %5233 = vmatpush1.msra.mxu0 %v1115
        %5234 = vmatprep.subr.mxu0 0.0
        %5235 = vmatpush1.msra.mxu0 %v1116
        %5236 = vmatprep.subr.mxu0 0.0
        %5237 = vmatpush1.msra.mxu0 %v1117
        %5238 = vmatprep.subr.mxu0 0.0
        %5239 = vmatpush1.msra.mxu0 %v1118
        %5240 = vmatprep.subr.mxu0 0.0
        %5241 = vmatpush1.msra.mxu0 %v1119
        %5242 = vmatprep.subr.mxu0 0.0
        %5243 = vmatpush1.msra.mxu0 %v1120
        %5244 = vmatprep.subr.mxu0 0.0
        %5245 = vmatpush1.msra.mxu0 %v1121
        %5246 = vmatprep.subr.mxu0 0.0
        %5247 = vmatpush1.msra.mxu0 %v1122
        %5248 = vmatprep.subr.mxu0 0.0
        %5249 = vmatpush1.msra.mxu0 %v1123
        %5250 = vmatprep.subr.mxu0 0.0
        %5251 = vmatpush1.msra.mxu0 %v1124
        %5252 = vmatprep.subr.mxu0 0.0
        %5253 = vmatpush1.msra.mxu0 %v1125
        %5254 = vmatprep.subr.mxu0 0.0
        %5255 = vmatpush1.msra.mxu0 %v1126
        %5256 = vmatprep.subr.mxu0 0.0
        %5257 = vmatpush1.msra.mxu0 %v1127
        %5258 = vmatprep.subr.mxu0 0.0
        %5259 = vmatpush1.msra.mxu0 %v1128
        %5260 = vmatprep.subr.mxu0 0.0
        %5261 = vmatpush1.msra.mxu0 %v1129
        %5262 = vmatprep.subr.mxu0 0.0
        %5263 = vmatpush1.msra.mxu0 %v1130
        %5264 = vmatprep.subr.mxu0 0.0
        %5265 = vmatpush1.msra.mxu0 0.0
        %5266 = vmatprep.subr.mxu0 0.0
        %5267 = vmatpush1.msra.mxu0 0.0
        %5268 = vmatprep.subr.mxu0 0.0
        %5269 = vmatpush1.msra.mxu0 0.0
        %5270 = vmatprep.subr.mxu0 0.0
        %5271 = vmatpush1.msra.mxu0 0.0
        %5272 = vmatprep.subr.mxu0 0.0
        %5273 = vmatpush1.msra.mxu0 0.0
        %5274 = vmatprep.subr.mxu0 0.0
        %5275 = vmatpush1.msra.mxu0 0.0
        %5276 = vmatprep.subr.mxu0 0.0
        %5277 = vmatpush1.msra.mxu0 0.0
        %5278 = vmatprep.subr.mxu0 0.0
        %5279 = vmatpush1.msra.mxu0 0.0
        %5280 = vmatprep.subr.mxu0 0.0
        %5281 = vmatpush1.msra.mxu0 0.0
        %5282 = vmatprep.subr.mxu0 0.0
        %5283 = vmatpush1.msra.mxu0 0.0
        %5284 = vmatprep.subr.mxu0 0.0
        %5285 = vmatpush1.msra.mxu0 0.0
        %5286 = vmatprep.subr.mxu0 0.0
        %5287 = vmatpush1.msra.mxu0 0.0
        %5288 = vmatprep.subr.mxu0 0.0
        %5289 = vmatpush1.msra.mxu0 0.0
        %5290 = vmatprep.subr.mxu0 0.0
        %5291 = vmatpush1.msra.mxu0 0.0
        %5292 = vmatprep.subr.mxu0 0.0
        %5293 = vmatpush1.msra.mxu0 0.0
        %5294 = vmatprep.subr.mxu0 0.0
        %5295 = vmatpush1.msra.mxu0 0.0
        %5296 = vmatprep.mubr.f32.mxu0 0.0
        %5297 = vmatmul.mubr.f32.gmra.mrb[0].mxu0 %v5228
        %v5298 = vpop.f32.mrb[0].mxu0
        %v5299 = vadd.f32 %v3896, %v5298
        %v5300 = vpop.f32.mrb[0].mxu0
        %5301 = vmatprep.mubr.f32.mxu0 0.0
        %5302 = vmatmul.mubr.f32.gmra.mrb[0].mxu0 %v5229
        %v5303 = vpop.f32.mrb[0].mxu0
        %v5304 = vadd.f32 %v3896, %v5303
        %v5305 = vpop.f32.mrb[0].mxu0
        %5306 = vmatprep.mubr.f32.mxu0 0.0
        %5307 = vmatmul.mubr.f32.gmra.mrb[0].mxu0 %v5230
        %v5308 = vpop.f32.mrb[0].mxu0
        %v5309 = vadd.f32 %v3896, %v5308
        %v5310 = vpop.f32.mrb[0].mxu0
        %5311 = vmatprep.mubr.f32.mxu0 0.0
        %5312 = vmatmul.mubr.f32.gmra.mrb[0].mxu0 %v5231
        %v5313 = vpop.f32.mrb[0].mxu0
        %v5314 = vadd.f32 %v3896, %v5313
        %v5315 = vpop.f32.mrb[0].mxu0
        %5316 = vdwg.mxu0
        %v5317 = vld [vmem:[%s338 + $0x113] sm:$0xff]
        %v5318 = vld [vmem:[%s338 + $0x11b] sm:$0xff]
        %v5319 = vld [vmem:[%s338 + $0x123] sm:$0xff]
        %v5320 = vld [vmem:[%s338 + $0x12b] sm:$0xff]
        %v5321 = vadd.f32 %v5299, %v5317
        %v5322 = vadd.f32 %v5304, %v5318
        %v5323 = vadd.f32 %v5309, %v5319
        %v5324 = vadd.f32 %v5314, %v5320
        %v5325 = vmax.f32 %v5321, 0.0
        %v5326 = vmax.f32 %v5322, 0.0
        %v5327 = vmax.f32 %v5323, 0.0
        %v5328 = vmax.f32 %v5324, 0.0
        %5329 = vst [vmem:[%s332 + $0x100] sm:$0xff] %v5325
        %5330 = vst [vmem:[%s332 + $0x108] sm:$0xff] %v5326
        %5331 = vst [vmem:[%s332 + $0x110] sm:$0xff] %v5327
        %5332 = vst [vmem:[%s332 + $0x118] sm:$0xff] %v5328
        %s5333 = sand.u32 %s224, 1
        %s5334 = scalar_lea.sflag [#allocation4], %s5333
        %s5335 = sand.u32 %s224, 1
        %s5336 = smul.addr %s5335, 288
        %s5337 = scalar_lea.vmem [#allocation3], %s5336
        // Predicated region
        $region53: #{tpu_custom_call.1} parent=51 // pred_check
          %p5338 = pneg %p234
        $region54: #{tpu_custom_call.1} parent=51 // pred_check_branch
          %5340 = sbr.rel (%p5338) target = $region56
        $region55: #{tpu_custom_call.1} parent=51 // pred_region
          %s5341 = sadd.s32 %s26, %s27
          %s5343 = ssub.s32 4608, 4608
          %5344 = vsyncadd %s5334, %s5343
          %s5345 = smul.addr %s5341, 36
          %s5346 = smul.addr %s5345, 128
          %s5347 = scalar_lea.hbm %s8, %s5346
          %s5348 = sshll.u32 %s5337, 4
          %s5349 = int_to_ptr.vmem [resolvable:$true] %s5348
          %5354 = dma.vmem_to_hbm [thread:$0]  %s5349, 4608, %s5347, %s5334, 128, 128, 8
        $region56: #{tpu_custom_call.1} parent=51 // pred_fallthru
          _
      $region52: #{tpu_custom_call.1} parent=5 // pred_fallthru
        _
      %p5355 = scmp.le.s32.totalorder 2, %s17
      // Predicated region
      $region57: #{tpu_custom_call.1} parent=5 // pred_check
        %p5356 = pneg %p5355
      $region58: #{tpu_custom_call.1} parent=5 // pred_check_branch
        %5358 = sbr.rel (%p5356) target = $region60
      $region59: #{tpu_custom_call.1} parent=5 // pred_region
        %s5359 = ssub.s32 %s17, 2
        // Predicated region
        $region61: #{tpu_custom_call.1} parent=59 // pred_check
          %p5360 = pneg %p240
        $region62: #{tpu_custom_call.1} parent=59 // pred_check_branch
          %5362 = sbr.rel (%p5360) target = $region64
        $region63: #{tpu_custom_call.1} parent=59 // pred_region
          %s5363 = sand.u32 %s225, 1
          %s5364 = scalar_lea.sflag [#allocation4], %s5363
          %s5365 = sand.u32 %s225, 1
          %s5366 = smul.addr %s5365, 288
          %s5367 = scalar_lea.vmem [#allocation3], %s5366
          %5368 = dma.done %s5364, 4608
        $region64: #{tpu_custom_call.1} parent=59 // pred_fallthru
          _
      $region60: #{tpu_custom_call.1} parent=5 // pred_fallthru
        _
    $region6: #{tpu_custom_call.1} parent=1 // loop_footer
      %s21 = sadd.s32 1, %s17
    $region7: #{tpu_custom_call.1} parent=1 // loop_footer_branch
      %16 = sbr.rel target = $region3
    $region8: #{tpu_custom_call.1} parent=1 // loop_exit
      _
    %5369 = vsyncpa [#allocation4], 1
    %s5370 = scalar_lea.sflag [#allocation4], 1
    %5371 = vsyncpa %s5370, 1

</llo_original>
